<compile_context>
chip_gen: v5e
topology: v5e:2x2
jax: 0.10.0
libtpu: 0.0.40
codegen_flags: <defaults>
</compile_context>

<pallas_src>
import numpy as np
import jax
import jax.numpy as jnp
from jax import lax
from jax.experimental import pallas as pl
from jax.experimental.pallas import tpu as pltpu

NEG_SLOPE = 0.01   # nn.LeakyReLU() default negative_slope
LANE = 128         # TPU vreg lane width


def _round_up(n, m):
    return ((n + m - 1) // m) * m


# ----------------------------------------------------------------------------
# In-kernel building blocks (pure jnp on VMEM-resident values).
# ----------------------------------------------------------------------------
def _pad_hw(x):
    """Zero halo for a 3x3 / pad=1 conv, built in VMEM (no HBM pad copy).

    H (major dim) gets a 1-row halo; W (sublane dim) gets an 8-column halo on
    each side so every concatenated piece stays sublane-tile aligned.  The
    extra zero columns are never read by the taps."""
    H, W, C = x.shape
    zrow = jnp.zeros((1, W, C), x.dtype)
    xh = jnp.concatenate([zrow, x, zrow], axis=0)            # (H+2, W, C)
    zcol = jnp.zeros((H + 2, 8, C), x.dtype)
    return jnp.concatenate([zcol, xh, zcol], axis=1)         # (H+2, W+16, C)


def _conv3x3_lrelu_pool(x, w, b):
    """3x3 conv (stride 1, pad 1) + bias + LeakyReLU(0.01) + 2x2/2 max pool.

    x: (H, W, Cin) f32
    w: (9*Cin, Cout) f32  im2col layout (lane-aligned Cin, layers >= 2), or
       (9, Cin, Cout) f32 per-tap layout (first layer, tiny Cin)
    b: (1, Cout) f32
    returns (H//2, W//2, Cout) f32
    """
    H, W, Cin = x.shape
    Cout = w.shape[-1]
    assert H % 2 == 0 and W % 2 == 0
    # TODO(synk): odd H/W (PyTorch MaxPool2d floor truncation) not supported.

    xp = _pad_hw(x)
    taps = [xp[dy:dy + H, dx + 7:dx + 7 + W, :]
            for dy in range(3) for dx in range(3)]

    if w.ndim == 2:
        # im2col: lane-aligned concat of the 9 taps + ONE MXU matmul, K=9*Cin.
        patches = jnp.concatenate(taps, axis=-1).reshape(H * W, 9 * Cin)
        acc = jnp.dot(patches, w, preferred_element_type=jnp.float32)
    else:
        # First layer only (Cin not lane-aligned): 9 small dots, negligible.
        acc = jnp.zeros((H * W, Cout), jnp.float32)
        for t, tap in enumerate(taps):
            acc = acc + jnp.dot(tap.reshape(H * W, Cin), w[t],
                                preferred_element_type=jnp.float32)

    acc = acc + b                                            # bias (broadcast)
    acc = jnp.where(acc >= 0.0, acc, NEG_SLOPE * acc)        # LeakyReLU(0.01)

    # 2x2 / stride-2 max pool (rows of acc are ordered h*W + w); elementwise
    # maxima on the VPU, no reduce lowering.
    a = acc.reshape(H * W // 2, 2, Cout)
    y = jnp.maximum(a[:, 0, :], a[:, 1, :])                  # pool along W
    yr = y.reshape(H // 2, 2, W // 2, Cout)
    return jnp.maximum(yr[:, 0], yr[:, 1])                   # pool along H


def _make_encoder_kernel(num_layers):
    def kernel(*refs):
        x_ref = refs[0]
        conv_refs = refs[1:1 + 2 * num_layers]
        wfc_ref = refs[1 + 2 * num_layers]
        bfc_ref = refs[2 + 2 * num_layers]
        o_ref = refs[3 + 2 * num_layers]

        y = x_ref[0]                                         # (H, W, Cin0)
        for l in range(num_layers):
            y = _conv3x3_lrelu_pool(y, conv_refs[2 * l][...],
                                    conv_refs[2 * l + 1][...])

        Hf, Wf, Cp = y.shape
        # Flatten (h, w, c) into one lane-dense row via 128-aligned lane
        # concatenation; stays in VMEM, no transpose, no HBM round-trip.
        feat = jnp.concatenate(
            [y[h][w:w + 1, :] for h in range(Hf) for w in range(Wf)], axis=1)
        o_ref[0] = (jnp.dot(feat, wfc_ref[...],
                            preferred_element_type=jnp.float32)
                    + bfc_ref[...]).astype(o_ref.dtype)
    return kernel


# ----------------------------------------------------------------------------
# Wrapper: one pallas_call for the whole encoder.
# ----------------------------------------------------------------------------
def _zeros_map(rank):
    zeros = (0,) * rank
    return lambda i: zeros


def cnn_encoder_forward(x_nchw, kparams, output_size):
    conv_ws, conv_bs, wfc_k, bfc_k = kparams
    num_layers = len(conv_ws)
    B = x_nchw.shape[0]
    # NCHW -> NHWC for the input only (the pre-FC feature transpose is folded
    # into the pre-permuted FC weight).
    x = jnp.transpose(x_nchw, (0, 2, 3, 1))
    _, H, W, Cin0 = x.shape
    opad = wfc_k.shape[1]

    in_specs = [pl.BlockSpec((1, H, W, Cin0), lambda i: (i, 0, 0, 0))]
    operands = [x]
    for wl, bl in zip(conv_ws, conv_bs):
        in_specs.append(pl.BlockSpec(wl.shape, _zeros_map(wl.ndim)))
        in_specs.append(pl.BlockSpec(bl.shape, _zeros_map(bl.ndim)))
        operands += [wl, bl]
    in_specs += [pl.BlockSpec(wfc_k.shape, _zeros_map(2)),
                 pl.BlockSpec(bfc_k.shape, _zeros_map(2))]
    operands += [wfc_k, bfc_k]

    out_pad = pl.pallas_call(
        _make_encoder_kernel(num_layers),
        out_shape=jax.ShapeDtypeStruct((B, 1, opad), jnp.float32),
        grid=(B,),
        in_specs=in_specs,
        out_specs=pl.BlockSpec((1, 1, opad), lambda i: (i, 0, 0)),
        compiler_params=pltpu.CompilerParams(
            dimension_semantics=("parallel",)),
    )(*operands)
    return out_pad[:, 0, :output_size]


# ----------------------------------------------------------------------------
# Parameters (PyTorch layout) + one-time kernel-layout prep.
# ----------------------------------------------------------------------------
def init_params(key, input_channels, num_layers, num_filters, enc_size, output_size):
    conv_params = []
    in_c, nf = input_channels, num_filters
    for _ in range(num_layers):
        key, kw, kb = jax.random.split(key, 3)
        w = jax.random.normal(kw, (3, 3, in_c, nf), jnp.float32) / np.sqrt(9 * in_c)
        b = jax.random.normal(kb, (nf,), jnp.float32) * 0.01
        conv_params.append((w, b))
        in_c, nf = nf, nf * 2
    key, kw, kb = jax.random.split(key, 3)
    w_fc = jax.random.normal(kw, (enc_size, output_size), jnp.float32) / np.sqrt(enc_size)
    b_fc = jax.random.normal(kb, (output_size,), jnp.float32) * 0.01
    return conv_params, w_fc, b_fc


def prep_kernel_params(conv_params, w_fc, b_fc, input_channels, input_patch_size):
    """One-time layout prep: zero-pad channels to the 128-lane width, reshape
    conv weights to im2col (or per-tap) layout, and pre-permute/pad the FC
    weight to the kernel's NHWC flatten order.  Zero padding keeps results
    exactly equal to the unpadded math."""
    conv_ws, conv_bs = [], []
    cin_used = input_channels
    h = w = input_patch_size
    for wc, bc in conv_params:
        _, _, cin, cout = wc.shape
        cpad = _round_up(cout, LANE)
        wp = jnp.pad(wc, ((0, 0), (0, 0), (0, cin_used - cin), (0, cpad - cout)))
        if cin_used % LANE == 0:
            conv_ws.append(wp.reshape(9 * cin_used, cpad))     # im2col layout
        else:
            conv_ws.append(wp.reshape(9, cin_used, cpad))      # per-tap layout
        conv_bs.append(jnp.pad(bc, (0, cpad - cout)).reshape(1, cpad))
        cin_used = cpad
        h //= 2
        w //= 2
    cf = conv_params[-1][0].shape[-1]            # real channels of last layer
    cpad_f = cin_used                            # padded channels of last layer
    out = w_fc.shape[1]
    opad = _round_up(out, LANE)
    # PyTorch flattens NCHW: feature index = c*Hf*Wf + hh*Wf + ww; the kernel
    # flattens NHWC: hh*Wf*Cp + ww*Cp + c  ->  permute + pad the FC weight.
    wfk = w_fc.reshape(cf, h, w, out).transpose(1, 2, 0, 3)
    wfk = jnp.pad(wfk, ((0, 0), (0, 0), (0, cpad_f - cf), (0, opad - out)))
    wfc_k = wfk.reshape(h * w * cpad_f, opad)
    bfc_k = jnp.pad(b_fc, (0, opad - out)).reshape(1, opad)
    return conv_ws, conv_bs, wfc_k, bfc_k


# ----------------------------------------------------------------------------
# Pure-JAX reference (same math as the PyTorch module, batch_norm=False).
# ----------------------------------------------------------------------------
def reference_forward(x_nchw, conv_params, w_fc, b_fc):
    x = jnp.transpose(x_nchw, (0, 2, 3, 1))
    for w, b in conv_params:
        x = lax.conv_general_dilated(
            x, w, window_strides=(1, 1), padding="SAME",
            dimension_numbers=("NHWC", "HWIO", "NHWC")) + b
        x = jnp.where(x >= 0, x, NEG_SLOPE * x)
        x = lax.reduce_window(x, -jnp.inf, lax.max,
                              (1, 2, 2, 1), (1, 2, 2, 1), "VALID")
    feat = jnp.transpose(x, (0, 3, 1, 2)).reshape(x.shape[0], -1)
    return feat @ w_fc + b_fc


if __name__ == "__main__":
    # Small shapes consistent with the module's constructor arguments.
    B, C, S = 2, 3, 16                 # batch, input_channels, input_patch_size
    num_layers, num_filters, output_size = 2, 8, 32

    key = jax.random.PRNGKey(0)
    key, kx = jax.random.split(key)
    x = jax.random.normal(kx, (B, C, S, S), jnp.float32)

    final_c = num_filters * (2 ** (num_layers - 1))
    final_s = S // (2 ** num_layers)
    enc_size = final_c * final_s * final_s      # == self.enc_size

    conv_params, w_fc, b_fc = init_params(key, C, num_layers, num_filters,
                                          enc_size, output_size)
    kparams = prep_kernel_params(conv_params, w_fc, b_fc, C, S)

    out = cnn_encoder_forward(x, kparams, output_size)
    out = jax.block_until_ready(out)

    ref = reference_forward(x, conv_params, w_fc, b_fc)
    assert out.shape == (B, output_size)
    np.testing.assert_allclose(np.asarray(out), np.asarray(ref),
                               atol=2e-3, rtol=2e-3)
    print("KERNEL_OK")
</pallas_src>

<mosaic_0001>
module attributes {stable_mosaic.version = 11 : i64} {
  func.func @kernel(%arg0: i32, %arg1: memref<1x16x16x3xf32, #tpu.memory_space<vmem>>, %arg2: memref<9x3x128xf32, #tpu.memory_space<vmem>>, %arg3: memref<1x128xf32, #tpu.memory_space<vmem>>, %arg4: memref<1152x128xf32, #tpu.memory_space<vmem>>, %arg5: memref<1x128xf32, #tpu.memory_space<vmem>>, %arg6: memref<2048x128xf32, #tpu.memory_space<vmem>>, %arg7: memref<1x128xf32, #tpu.memory_space<vmem>>, %arg8: memref<1x1x128xf32, #tpu.memory_space<vmem>>) attributes {dimension_semantics = [#tpu.dimension_semantics<parallel>], iteration_bounds = array<i64: 2>, scalar_prefetch = 0 : i64, scratch_operands = 0 : i64, tpu.core_type = #tpu.core_type<tc>, window_params = [{transform_indices = @transform_0, window_bounds = array<i64: 1, 16, 16, 3>}, {pipeline_mode = #tpu.pipeline_mode<synchronous>, transform_indices = @transform_1, window_bounds = array<i64: 9, 3, 128>}, {pipeline_mode = #tpu.pipeline_mode<synchronous>, transform_indices = @transform_2, window_bounds = array<i64: 1, 128>}, {pipeline_mode = #tpu.pipeline_mode<synchronous>, transform_indices = @transform_3, window_bounds = array<i64: 1152, 128>}, {pipeline_mode = #tpu.pipeline_mode<synchronous>, transform_indices = @transform_4, window_bounds = array<i64: 1, 128>}, {pipeline_mode = #tpu.pipeline_mode<synchronous>, transform_indices = @transform_5, window_bounds = array<i64: 2048, 128>}, {pipeline_mode = #tpu.pipeline_mode<synchronous>, transform_indices = @transform_6, window_bounds = array<i64: 1, 128>}, {transform_indices = @transform_7, window_bounds = array<i64: 1, 1, 128>}]} {
    %c0 = arith.constant 0 : index
    %c0_0 = arith.constant 0 : index
    %c0_1 = arith.constant 0 : index
    %c0_2 = arith.constant 0 : index
    %0 = vector.load %arg1[%c0, %c0_0, %c0_1, %c0_2] : memref<1x16x16x3xf32, #tpu.memory_space<vmem>>, vector<1x16x16x3xf32>
    %1 = vector.shape_cast %0 : vector<1x16x16x3xf32> to vector<16x16x3xf32>
    %c0_3 = arith.constant 0 : index
    %c0_4 = arith.constant 0 : index
    %c0_5 = arith.constant 0 : index
    %2 = vector.load %arg2[%c0_3, %c0_4, %c0_5] : memref<9x3x128xf32, #tpu.memory_space<vmem>>, vector<9x3x128xf32>
    %c0_6 = arith.constant 0 : index
    %c0_7 = arith.constant 0 : index
    %3 = vector.load %arg3[%c0_6, %c0_7] : memref<1x128xf32, #tpu.memory_space<vmem>>, vector<1x128xf32>
    %cst = arith.constant 0.000000e+00 : f32
    %4 = vector.broadcast %cst : f32 to vector<1x16x3xf32>
    %5 = tpu.concatenate %4, %1, %4 in 0 : vector<1x16x3xf32>, vector<16x16x3xf32>, vector<1x16x3xf32> -> vector<18x16x3xf32>
    %cst_8 = arith.constant 0.000000e+00 : f32
    %6 = vector.broadcast %cst_8 : f32 to vector<18x8x3xf32>
    %7 = tpu.concatenate %6, %5, %6 in 1 : vector<18x8x3xf32>, vector<18x16x3xf32>, vector<18x8x3xf32> -> vector<18x32x3xf32>
    %8 = vector.extract_strided_slice %7 {offsets = [0, 7, 0], sizes = [16, 16, 3], strides = [1, 1, 1]} : vector<18x32x3xf32> to vector<16x16x3xf32>
    %9 = vector.extract_strided_slice %7 {offsets = [0, 8, 0], sizes = [16, 16, 3], strides = [1, 1, 1]} : vector<18x32x3xf32> to vector<16x16x3xf32>
    %10 = vector.extract_strided_slice %7 {offsets = [0, 9, 0], sizes = [16, 16, 3], strides = [1, 1, 1]} : vector<18x32x3xf32> to vector<16x16x3xf32>
    %11 = vector.extract_strided_slice %7 {offsets = [1, 7, 0], sizes = [16, 16, 3], strides = [1, 1, 1]} : vector<18x32x3xf32> to vector<16x16x3xf32>
    %12 = vector.extract_strided_slice %7 {offsets = [1, 8, 0], sizes = [16, 16, 3], strides = [1, 1, 1]} : vector<18x32x3xf32> to vector<16x16x3xf32>
    %13 = vector.extract_strided_slice %7 {offsets = [1, 9, 0], sizes = [16, 16, 3], strides = [1, 1, 1]} : vector<18x32x3xf32> to vector<16x16x3xf32>
    %14 = vector.extract_strided_slice %7 {offsets = [2, 7, 0], sizes = [16, 16, 3], strides = [1, 1, 1]} : vector<18x32x3xf32> to vector<16x16x3xf32>
    %15 = vector.extract_strided_slice %7 {offsets = [2, 8, 0], sizes = [16, 16, 3], strides = [1, 1, 1]} : vector<18x32x3xf32> to vector<16x16x3xf32>
    %16 = vector.extract_strided_slice %7 {offsets = [2, 9, 0], sizes = [16, 16, 3], strides = [1, 1, 1]} : vector<18x32x3xf32> to vector<16x16x3xf32>
    %cst_9 = arith.constant 0.000000e+00 : f32
    %17 = vector.broadcast %cst_9 : f32 to vector<256x128xf32>
    %18 = vector.shape_cast %8 : vector<16x16x3xf32> to vector<256x3xf32>
    %19 = vector.extract_strided_slice %2 {offsets = [0, 0, 0], sizes = [1, 3, 128], strides = [1, 1, 1]} : vector<9x3x128xf32> to vector<1x3x128xf32>
    %20 = vector.shape_cast %19 : vector<1x3x128xf32> to vector<3x128xf32>
    %cst_10 = arith.constant dense<0.000000e+00> : vector<256x128xf32>
    %21 = tpu.matmul %18, %20, %cst_10 {dimension_numbers = #tpu.dot_dimension_numbers<[1], [0], [0], [1], [0, 0, 1, 1], [], []>} : vector<256x3xf32>, vector<3x128xf32>, vector<256x128xf32> -> vector<256x128xf32>
    %22 = arith.addf %17, %21 : vector<256x128xf32>
    %23 = vector.shape_cast %9 : vector<16x16x3xf32> to vector<256x3xf32>
    %24 = vector.extract_strided_slice %2 {offsets = [1, 0, 0], sizes = [1, 3, 128], strides = [1, 1, 1]} : vector<9x3x128xf32> to vector<1x3x128xf32>
    %25 = vector.shape_cast %24 : vector<1x3x128xf32> to vector<3x128xf32>
    %cst_11 = arith.constant dense<0.000000e+00> : vector<256x128xf32>
    %26 = tpu.matmul %23, %25, %cst_11 {dimension_numbers = #tpu.dot_dimension_numbers<[1], [0], [0], [1], [0, 0, 1, 1], [], []>} : vector<256x3xf32>, vector<3x128xf32>, vector<256x128xf32> -> vector<256x128xf32>
    %27 = arith.addf %22, %26 : vector<256x128xf32>
    %28 = vector.shape_cast %10 : vector<16x16x3xf32> to vector<256x3xf32>
    %29 = vector.extract_strided_slice %2 {offsets = [2, 0, 0], sizes = [1, 3, 128], strides = [1, 1, 1]} : vector<9x3x128xf32> to vector<1x3x128xf32>
    %30 = vector.shape_cast %29 : vector<1x3x128xf32> to vector<3x128xf32>
    %cst_12 = arith.constant dense<0.000000e+00> : vector<256x128xf32>
    %31 = tpu.matmul %28, %30, %cst_12 {dimension_numbers = #tpu.dot_dimension_numbers<[1], [0], [0], [1], [0, 0, 1, 1], [], []>} : vector<256x3xf32>, vector<3x128xf32>, vector<256x128xf32> -> vector<256x128xf32>
    %32 = arith.addf %27, %31 : vector<256x128xf32>
    %33 = vector.shape_cast %11 : vector<16x16x3xf32> to vector<256x3xf32>
    %34 = vector.extract_strided_slice %2 {offsets = [3, 0, 0], sizes = [1, 3, 128], strides = [1, 1, 1]} : vector<9x3x128xf32> to vector<1x3x128xf32>
    %35 = vector.shape_cast %34 : vector<1x3x128xf32> to vector<3x128xf32>
    %cst_13 = arith.constant dense<0.000000e+00> : vector<256x128xf32>
    %36 = tpu.matmul %33, %35, %cst_13 {dimension_numbers = #tpu.dot_dimension_numbers<[1], [0], [0], [1], [0, 0, 1, 1], [], []>} : vector<256x3xf32>, vector<3x128xf32>, vector<256x128xf32> -> vector<256x128xf32>
    %37 = arith.addf %32, %36 : vector<256x128xf32>
    %38 = vector.shape_cast %12 : vector<16x16x3xf32> to vector<256x3xf32>
    %39 = vector.extract_strided_slice %2 {offsets = [4, 0, 0], sizes = [1, 3, 128], strides = [1, 1, 1]} : vector<9x3x128xf32> to vector<1x3x128xf32>
    %40 = vector.shape_cast %39 : vector<1x3x128xf32> to vector<3x128xf32>
    %cst_14 = arith.constant dense<0.000000e+00> : vector<256x128xf32>
    %41 = tpu.matmul %38, %40, %cst_14 {dimension_numbers = #tpu.dot_dimension_numbers<[1], [0], [0], [1], [0, 0, 1, 1], [], []>} : vector<256x3xf32>, vector<3x128xf32>, vector<256x128xf32> -> vector<256x128xf32>
    %42 = arith.addf %37, %41 : vector<256x128xf32>
    %43 = vector.shape_cast %13 : vector<16x16x3xf32> to vector<256x3xf32>
    %44 = vector.extract_strided_slice %2 {offsets = [5, 0, 0], sizes = [1, 3, 128], strides = [1, 1, 1]} : vector<9x3x128xf32> to vector<1x3x128xf32>
    %45 = vector.shape_cast %44 : vector<1x3x128xf32> to vector<3x128xf32>
    %cst_15 = arith.constant dense<0.000000e+00> : vector<256x128xf32>
    %46 = tpu.matmul %43, %45, %cst_15 {dimension_numbers = #tpu.dot_dimension_numbers<[1], [0], [0], [1], [0, 0, 1, 1], [], []>} : vector<256x3xf32>, vector<3x128xf32>, vector<256x128xf32> -> vector<256x128xf32>
    %47 = arith.addf %42, %46 : vector<256x128xf32>
    %48 = vector.shape_cast %14 : vector<16x16x3xf32> to vector<256x3xf32>
    %49 = vector.extract_strided_slice %2 {offsets = [6, 0, 0], sizes = [1, 3, 128], strides = [1, 1, 1]} : vector<9x3x128xf32> to vector<1x3x128xf32>
    %50 = vector.shape_cast %49 : vector<1x3x128xf32> to vector<3x128xf32>
    %cst_16 = arith.constant dense<0.000000e+00> : vector<256x128xf32>
    %51 = tpu.matmul %48, %50, %cst_16 {dimension_numbers = #tpu.dot_dimension_numbers<[1], [0], [0], [1], [0, 0, 1, 1], [], []>} : vector<256x3xf32>, vector<3x128xf32>, vector<256x128xf32> -> vector<256x128xf32>
    %52 = arith.addf %47, %51 : vector<256x128xf32>
    %53 = vector.shape_cast %15 : vector<16x16x3xf32> to vector<256x3xf32>
    %54 = vector.extract_strided_slice %2 {offsets = [7, 0, 0], sizes = [1, 3, 128], strides = [1, 1, 1]} : vector<9x3x128xf32> to vector<1x3x128xf32>
    %55 = vector.shape_cast %54 : vector<1x3x128xf32> to vector<3x128xf32>
    %cst_17 = arith.constant dense<0.000000e+00> : vector<256x128xf32>
    %56 = tpu.matmul %53, %55, %cst_17 {dimension_numbers = #tpu.dot_dimension_numbers<[1], [0], [0], [1], [0, 0, 1, 1], [], []>} : vector<256x3xf32>, vector<3x128xf32>, vector<256x128xf32> -> vector<256x128xf32>
    %57 = arith.addf %52, %56 : vector<256x128xf32>
    %58 = vector.shape_cast %16 : vector<16x16x3xf32> to vector<256x3xf32>
    %59 = vector.extract_strided_slice %2 {offsets = [8, 0, 0], sizes = [1, 3, 128], strides = [1, 1, 1]} : vector<9x3x128xf32> to vector<1x3x128xf32>
    %60 = vector.shape_cast %59 : vector<1x3x128xf32> to vector<3x128xf32>
    %cst_18 = arith.constant dense<0.000000e+00> : vector<256x128xf32>
    %61 = tpu.matmul %58, %60, %cst_18 {dimension_numbers = #tpu.dot_dimension_numbers<[1], [0], [0], [1], [0, 0, 1, 1], [], []>} : vector<256x3xf32>, vector<3x128xf32>, vector<256x128xf32> -> vector<256x128xf32>
    %62 = arith.addf %57, %61 : vector<256x128xf32>
    %63 = vector.broadcast %3 : vector<1x128xf32> to vector<256x128xf32>
    %64 = arith.addf %62, %63 : vector<256x128xf32>
    %cst_19 = arith.constant 0.000000e+00 : f32
    %65 = vector.broadcast %cst_19 : f32 to vector<256x128xf32>
    %66 = arith.cmpf oge, %64, %65 : vector<256x128xf32>
    %cst_20 = arith.constant 0.00999999977 : f32
    %67 = vector.broadcast %cst_20 : f32 to vector<256x128xf32>
    %68 = arith.mulf %67, %64 : vector<256x128xf32>
    %69 = arith.select %66, %64, %68 : vector<256x128xi1>, vector<256x128xf32>
    %70 = vector.shape_cast %69 : vector<256x128xf32> to vector<128x2x128xf32>
    %71 = vector.extract_strided_slice %70 {offsets = [0, 0, 0], sizes = [128, 1, 128], strides = [1, 1, 1]} : vector<128x2x128xf32> to vector<128x1x128xf32>
    %72 = vector.shape_cast %71 : vector<128x1x128xf32> to vector<128x128xf32>
    %73 = vector.extract_strided_slice %70 {offsets = [0, 1, 0], sizes = [128, 1, 128], strides = [1, 1, 1]} : vector<128x2x128xf32> to vector<128x1x128xf32>
    %74 = vector.shape_cast %73 : vector<128x1x128xf32> to vector<128x128xf32>
    %75 = arith.maximumf %72, %74 : vector<128x128xf32>
    %76 = vector.shape_cast %75 : vector<128x128xf32> to vector<8x2x8x128xf32>
    %77 = vector.extract_strided_slice %76 {offsets = [0, 0, 0, 0], sizes = [8, 1, 8, 128], strides = [1, 1, 1, 1]} : vector<8x2x8x128xf32> to vector<8x1x8x128xf32>
    %78 = vector.shape_cast %77 : vector<8x1x8x128xf32> to vector<8x8x128xf32>
    %79 = vector.extract_strided_slice %76 {offsets = [0, 1, 0, 0], sizes = [8, 1, 8, 128], strides = [1, 1, 1, 1]} : vector<8x2x8x128xf32> to vector<8x1x8x128xf32>
    %80 = vector.shape_cast %79 : vector<8x1x8x128xf32> to vector<8x8x128xf32>
    %81 = arith.maximumf %78, %80 : vector<8x8x128xf32>
    %c0_21 = arith.constant 0 : index
    %c0_22 = arith.constant 0 : index
    %82 = vector.load %arg4[%c0_21, %c0_22] : memref<1152x128xf32, #tpu.memory_space<vmem>>, vector<1152x128xf32>
    %c0_23 = arith.constant 0 : index
    %c0_24 = arith.constant 0 : index
    %83 = vector.load %arg5[%c0_23, %c0_24] : memref<1x128xf32, #tpu.memory_space<vmem>>, vector<1x128xf32>
    %cst_25 = arith.constant 0.000000e+00 : f32
    %84 = vector.broadcast %cst_25 : f32 to vector<1x8x128xf32>
    %85 = tpu.concatenate %84, %81, %84 in 0 : vector<1x8x128xf32>, vector<8x8x128xf32>, vector<1x8x128xf32> -> vector<10x8x128xf32>
    %cst_26 = arith.constant 0.000000e+00 : f32
    %86 = vector.broadcast %cst_26 : f32 to vector<10x8x128xf32>
    %87 = tpu.concatenate %86, %85, %86 in 1 : vector<10x8x128xf32>, vector<10x8x128xf32>, vector<10x8x128xf32> -> vector<10x24x128xf32>
    %88 = vector.extract_strided_slice %87 {offsets = [0, 7, 0], sizes = [8, 8, 128], strides = [1, 1, 1]} : vector<10x24x128xf32> to vector<8x8x128xf32>
    %89 = vector.extract_strided_slice %87 {offsets = [0, 8, 0], sizes = [8, 8, 128], strides = [1, 1, 1]} : vector<10x24x128xf32> to vector<8x8x128xf32>
    %90 = vector.extract_strided_slice %87 {offsets = [0, 9, 0], sizes = [8, 8, 128], strides = [1, 1, 1]} : vector<10x24x128xf32> to vector<8x8x128xf32>
    %91 = vector.extract_strided_slice %87 {offsets = [1, 7, 0], sizes = [8, 8, 128], strides = [1, 1, 1]} : vector<10x24x128xf32> to vector<8x8x128xf32>
    %92 = vector.extract_strided_slice %87 {offsets = [1, 8, 0], sizes = [8, 8, 128], strides = [1, 1, 1]} : vector<10x24x128xf32> to vector<8x8x128xf32>
    %93 = vector.extract_strided_slice %87 {offsets = [1, 9, 0], sizes = [8, 8, 128], strides = [1, 1, 1]} : vector<10x24x128xf32> to vector<8x8x128xf32>
    %94 = vector.extract_strided_slice %87 {offsets = [2, 7, 0], sizes = [8, 8, 128], strides = [1, 1, 1]} : vector<10x24x128xf32> to vector<8x8x128xf32>
    %95 = vector.extract_strided_slice %87 {offsets = [2, 8, 0], sizes = [8, 8, 128], strides = [1, 1, 1]} : vector<10x24x128xf32> to vector<8x8x128xf32>
    %96 = vector.extract_strided_slice %87 {offsets = [2, 9, 0], sizes = [8, 8, 128], strides = [1, 1, 1]} : vector<10x24x128xf32> to vector<8x8x128xf32>
    %97 = tpu.concatenate %88, %89, %90, %91, %92, %93, %94, %95, %96 in 2 : vector<8x8x128xf32>, vector<8x8x128xf32>, vector<8x8x128xf32>, vector<8x8x128xf32>, vector<8x8x128xf32>, vector<8x8x128xf32>, vector<8x8x128xf32>, vector<8x8x128xf32>, vector<8x8x128xf32> -> vector<8x8x1152xf32>
    %98 = vector.shape_cast %97 : vector<8x8x1152xf32> to vector<64x1152xf32>
    %cst_27 = arith.constant dense<0.000000e+00> : vector<64x128xf32>
    %99 = tpu.matmul %98, %82, %cst_27 {dimension_numbers = #tpu.dot_dimension_numbers<[1], [0], [0], [1], [0, 0, 1, 1], [], []>} : vector<64x1152xf32>, vector<1152x128xf32>, vector<64x128xf32> -> vector<64x128xf32>
    %100 = vector.broadcast %83 : vector<1x128xf32> to vector<64x128xf32>
    %101 = arith.addf %99, %100 : vector<64x128xf32>
    %cst_28 = arith.constant 0.000000e+00 : f32
    %102 = vector.broadcast %cst_28 : f32 to vector<64x128xf32>
    %103 = arith.cmpf oge, %101, %102 : vector<64x128xf32>
    %cst_29 = arith.constant 0.00999999977 : f32
    %104 = vector.broadcast %cst_29 : f32 to vector<64x128xf32>
    %105 = arith.mulf %104, %101 : vector<64x128xf32>
    %106 = arith.select %103, %101, %105 : vector<64x128xi1>, vector<64x128xf32>
    %107 = vector.shape_cast %106 : vector<64x128xf32> to vector<32x2x128xf32>
    %108 = vector.extract_strided_slice %107 {offsets = [0, 0, 0], sizes = [32, 1, 128], strides = [1, 1, 1]} : vector<32x2x128xf32> to vector<32x1x128xf32>
    %109 = vector.shape_cast %108 : vector<32x1x128xf32> to vector<32x128xf32>
    %110 = vector.extract_strided_slice %107 {offsets = [0, 1, 0], sizes = [32, 1, 128], strides = [1, 1, 1]} : vector<32x2x128xf32> to vector<32x1x128xf32>
    %111 = vector.shape_cast %110 : vector<32x1x128xf32> to vector<32x128xf32>
    %112 = arith.maximumf %109, %111 : vector<32x128xf32>
    %113 = vector.shape_cast %112 : vector<32x128xf32> to vector<4x2x4x128xf32>
    %114 = vector.extract_strided_slice %113 {offsets = [0, 0, 0, 0], sizes = [4, 1, 4, 128], strides = [1, 1, 1, 1]} : vector<4x2x4x128xf32> to vector<4x1x4x128xf32>
    %115 = vector.shape_cast %114 : vector<4x1x4x128xf32> to vector<4x4x128xf32>
    %116 = vector.extract_strided_slice %113 {offsets = [0, 1, 0, 0], sizes = [4, 1, 4, 128], strides = [1, 1, 1, 1]} : vector<4x2x4x128xf32> to vector<4x1x4x128xf32>
    %117 = vector.shape_cast %116 : vector<4x1x4x128xf32> to vector<4x4x128xf32>
    %118 = arith.maximumf %115, %117 : vector<4x4x128xf32>
    %119 = vector.extract_strided_slice %118 {offsets = [0, 0, 0], sizes = [1, 4, 128], strides = [1, 1, 1]} : vector<4x4x128xf32> to vector<1x4x128xf32>
    %120 = vector.shape_cast %119 : vector<1x4x128xf32> to vector<4x128xf32>
    %121 = vector.extract_strided_slice %120 {offsets = [0, 0], sizes = [1, 128], strides = [1, 1]} : vector<4x128xf32> to vector<1x128xf32>
    %122 = vector.extract_strided_slice %118 {offsets = [0, 0, 0], sizes = [1, 4, 128], strides = [1, 1, 1]} : vector<4x4x128xf32> to vector<1x4x128xf32>
    %123 = vector.shape_cast %122 : vector<1x4x128xf32> to vector<4x128xf32>
    %124 = vector.extract_strided_slice %123 {offsets = [1, 0], sizes = [1, 128], strides = [1, 1]} : vector<4x128xf32> to vector<1x128xf32>
    %125 = vector.extract_strided_slice %118 {offsets = [0, 0, 0], sizes = [1, 4, 128], strides = [1, 1, 1]} : vector<4x4x128xf32> to vector<1x4x128xf32>
    %126 = vector.shape_cast %125 : vector<1x4x128xf32> to vector<4x128xf32>
    %127 = vector.extract_strided_slice %126 {offsets = [2, 0], sizes = [1, 128], strides = [1, 1]} : vector<4x128xf32> to vector<1x128xf32>
    %128 = vector.extract_strided_slice %118 {offsets = [0, 0, 0], sizes = [1, 4, 128], strides = [1, 1, 1]} : vector<4x4x128xf32> to vector<1x4x128xf32>
    %129 = vector.shape_cast %128 : vector<1x4x128xf32> to vector<4x128xf32>
    %130 = vector.extract_strided_slice %129 {offsets = [3, 0], sizes = [1, 128], strides = [1, 1]} : vector<4x128xf32> to vector<1x128xf32>
    %131 = vector.extract_strided_slice %118 {offsets = [1, 0, 0], sizes = [1, 4, 128], strides = [1, 1, 1]} : vector<4x4x128xf32> to vector<1x4x128xf32>
    %132 = vector.shape_cast %131 : vector<1x4x128xf32> to vector<4x128xf32>
    %133 = vector.extract_strided_slice %132 {offsets = [0, 0], sizes = [1, 128], strides = [1, 1]} : vector<4x128xf32> to vector<1x128xf32>
    %134 = vector.extract_strided_slice %118 {offsets = [1, 0, 0], sizes = [1, 4, 128], strides = [1, 1, 1]} : vector<4x4x128xf32> to vector<1x4x128xf32>
    %135 = vector.shape_cast %134 : vector<1x4x128xf32> to vector<4x128xf32>
    %136 = vector.extract_strided_slice %135 {offsets = [1, 0], sizes = [1, 128], strides = [1, 1]} : vector<4x128xf32> to vector<1x128xf32>
    %137 = vector.extract_strided_slice %118 {offsets = [1, 0, 0], sizes = [1, 4, 128], strides = [1, 1, 1]} : vector<4x4x128xf32> to vector<1x4x128xf32>
    %138 = vector.shape_cast %137 : vector<1x4x128xf32> to vector<4x128xf32>
    %139 = vector.extract_strided_slice %138 {offsets = [2, 0], sizes = [1, 128], strides = [1, 1]} : vector<4x128xf32> to vector<1x128xf32>
    %140 = vector.extract_strided_slice %118 {offsets = [1, 0, 0], sizes = [1, 4, 128], strides = [1, 1, 1]} : vector<4x4x128xf32> to vector<1x4x128xf32>
    %141 = vector.shape_cast %140 : vector<1x4x128xf32> to vector<4x128xf32>
    %142 = vector.extract_strided_slice %141 {offsets = [3, 0], sizes = [1, 128], strides = [1, 1]} : vector<4x128xf32> to vector<1x128xf32>
    %143 = vector.extract_strided_slice %118 {offsets = [2, 0, 0], sizes = [1, 4, 128], strides = [1, 1, 1]} : vector<4x4x128xf32> to vector<1x4x128xf32>
    %144 = vector.shape_cast %143 : vector<1x4x128xf32> to vector<4x128xf32>
    %145 = vector.extract_strided_slice %144 {offsets = [0, 0], sizes = [1, 128], strides = [1, 1]} : vector<4x128xf32> to vector<1x128xf32>
    %146 = vector.extract_strided_slice %118 {offsets = [2, 0, 0], sizes = [1, 4, 128], strides = [1, 1, 1]} : vector<4x4x128xf32> to vector<1x4x128xf32>
    %147 = vector.shape_cast %146 : vector<1x4x128xf32> to vector<4x128xf32>
    %148 = vector.extract_strided_slice %147 {offsets = [1, 0], sizes = [1, 128], strides = [1, 1]} : vector<4x128xf32> to vector<1x128xf32>
    %149 = vector.extract_strided_slice %118 {offsets = [2, 0, 0], sizes = [1, 4, 128], strides = [1, 1, 1]} : vector<4x4x128xf32> to vector<1x4x128xf32>
    %150 = vector.shape_cast %149 : vector<1x4x128xf32> to vector<4x128xf32>
    %151 = vector.extract_strided_slice %150 {offsets = [2, 0], sizes = [1, 128], strides = [1, 1]} : vector<4x128xf32> to vector<1x128xf32>
    %152 = vector.extract_strided_slice %118 {offsets = [2, 0, 0], sizes = [1, 4, 128], strides = [1, 1, 1]} : vector<4x4x128xf32> to vector<1x4x128xf32>
    %153 = vector.shape_cast %152 : vector<1x4x128xf32> to vector<4x128xf32>
    %154 = vector.extract_strided_slice %153 {offsets = [3, 0], sizes = [1, 128], strides = [1, 1]} : vector<4x128xf32> to vector<1x128xf32>
    %155 = vector.extract_strided_slice %118 {offsets = [3, 0, 0], sizes = [1, 4, 128], strides = [1, 1, 1]} : vector<4x4x128xf32> to vector<1x4x128xf32>
    %156 = vector.shape_cast %155 : vector<1x4x128xf32> to vector<4x128xf32>
    %157 = vector.extract_strided_slice %156 {offsets = [0, 0], sizes = [1, 128], strides = [1, 1]} : vector<4x128xf32> to vector<1x128xf32>
    %158 = vector.extract_strided_slice %118 {offsets = [3, 0, 0], sizes = [1, 4, 128], strides = [1, 1, 1]} : vector<4x4x128xf32> to vector<1x4x128xf32>
    %159 = vector.shape_cast %158 : vector<1x4x128xf32> to vector<4x128xf32>
    %160 = vector.extract_strided_slice %159 {offsets = [1, 0], sizes = [1, 128], strides = [1, 1]} : vector<4x128xf32> to vector<1x128xf32>
    %161 = vector.extract_strided_slice %118 {offsets = [3, 0, 0], sizes = [1, 4, 128], strides = [1, 1, 1]} : vector<4x4x128xf32> to vector<1x4x128xf32>
    %162 = vector.shape_cast %161 : vector<1x4x128xf32> to vector<4x128xf32>
    %163 = vector.extract_strided_slice %162 {offsets = [2, 0], sizes = [1, 128], strides = [1, 1]} : vector<4x128xf32> to vector<1x128xf32>
    %164 = vector.extract_strided_slice %118 {offsets = [3, 0, 0], sizes = [1, 4, 128], strides = [1, 1, 1]} : vector<4x4x128xf32> to vector<1x4x128xf32>
    %165 = vector.shape_cast %164 : vector<1x4x128xf32> to vector<4x128xf32>
    %166 = vector.extract_strided_slice %165 {offsets = [3, 0], sizes = [1, 128], strides = [1, 1]} : vector<4x128xf32> to vector<1x128xf32>
    %167 = tpu.concatenate %121, %124, %127, %130, %133, %136, %139, %142, %145, %148, %151, %154, %157, %160, %163, %166 in 1 : vector<1x128xf32>, vector<1x128xf32>, vector<1x128xf32>, vector<1x128xf32>, vector<1x128xf32>, vector<1x128xf32>, vector<1x128xf32>, vector<1x128xf32>, vector<1x128xf32>, vector<1x128xf32>, vector<1x128xf32>, vector<1x128xf32>, vector<1x128xf32>, vector<1x128xf32>, vector<1x128xf32>, vector<1x128xf32> -> vector<1x2048xf32>
    %c0_30 = arith.constant 0 : index
    %c0_31 = arith.constant 0 : index
    %168 = vector.load %arg6[%c0_30, %c0_31] : memref<2048x128xf32, #tpu.memory_space<vmem>>, vector<2048x128xf32>
    %cst_32 = arith.constant dense<0.000000e+00> : vector<1x128xf32>
    %169 = tpu.matmul %167, %168, %cst_32 {dimension_numbers = #tpu.dot_dimension_numbers<[1], [0], [0], [1], [0, 0, 1, 1], [], []>} : vector<1x2048xf32>, vector<2048x128xf32>, vector<1x128xf32> -> vector<1x128xf32>
    %c0_33 = arith.constant 0 : index
    %c0_34 = arith.constant 0 : index
    %170 = vector.load %arg7[%c0_33, %c0_34] : memref<1x128xf32, #tpu.memory_space<vmem>>, vector<1x128xf32>
    %171 = arith.addf %169, %170 : vector<1x128xf32>
    %c0_35 = arith.constant 0 : index
    %c0_36 = arith.constant 0 : index
    %c0_37 = arith.constant 0 : index
    %172 = vector.load %arg8[%c0_35, %c0_36, %c0_37] : memref<1x1x128xf32, #tpu.memory_space<vmem>>, vector<1x1x128xf32>
    %173 = vector.shape_cast %172 : vector<1x1x128xf32> to vector<1x128xf32>
    %174 = vector.shape_cast %171 : vector<1x128xf32> to vector<1x1x128xf32>
    tpu.vector_store %arg8[%c0_35, %c0_36, %c0_37], %174 {strides = array<i32>} : memref<1x1x128xf32, #tpu.memory_space<vmem>>, vector<1x1x128xf32>,
    return
  }
  func.func @transform_0(%arg0: i32) -> (i32, i32, i32, i32) {
    %c0_i32 = arith.constant 0 : i32
    %c0_i32_0 = arith.constant 0 : i32
    %c0_i32_1 = arith.constant 0 : i32
    %c0_i32_2 = arith.constant 0 : i32
    return %arg0, %c0_i32, %c0_i32_0, %c0_i32_1 : i32, i32, i32, i32
  }
  func.func @transform_1(%arg0: i32) -> (i32, i32, i32) {
    %c0_i32 = arith.constant 0 : i32
    %c0_i32_0 = arith.constant 0 : i32
    %c0_i32_1 = arith.constant 0 : i32
    %c0_i32_2 = arith.constant 0 : i32
    return %c0_i32, %c0_i32_0, %c0_i32_1 : i32, i32, i32
  }
  func.func @transform_2(%arg0: i32) -> (i32, i32) {
    %c0_i32 = arith.constant 0 : i32
    %c0_i32_0 = arith.constant 0 : i32
    %c0_i32_1 = arith.constant 0 : i32
    return %c0_i32, %c0_i32_0 : i32, i32
  }
  func.func @transform_3(%arg0: i32) -> (i32, i32) {
    %c0_i32 = arith.constant 0 : i32
    %c0_i32_0 = arith.constant 0 : i32
    %c0_i32_1 = arith.constant 0 : i32
    return %c0_i32, %c0_i32_0 : i32, i32
  }
  func.func @transform_4(%arg0: i32) -> (i32, i32) {
    %c0_i32 = arith.constant 0 : i32
    %c0_i32_0 = arith.constant 0 : i32
    %c0_i32_1 = arith.constant 0 : i32
    return %c0_i32, %c0_i32_0 : i32, i32
  }
  func.func @transform_5(%arg0: i32) -> (i32, i32) {
    %c0_i32 = arith.constant 0 : i32
    %c0_i32_0 = arith.constant 0 : i32
    %c0_i32_1 = arith.constant 0 : i32
    return %c0_i32, %c0_i32_0 : i32, i32
  }
  func.func @transform_6(%arg0: i32) -> (i32, i32) {
    %c0_i32 = arith.constant 0 : i32
    %c0_i32_0 = arith.constant 0 : i32
    %c0_i32_1 = arith.constant 0 : i32
    return %c0_i32, %c0_i32_0 : i32, i32
  }
  func.func @transform_7(%arg0: i32) -> (i32, i32, i32) {
    %c0_i32 = arith.constant 0 : i32
    %c0_i32_0 = arith.constant 0 : i32
    %c0_i32_1 = arith.constant 0 : i32
    return %arg0, %c0_i32, %c0_i32_0 : i32, i32, i32
  }
}

</mosaic_0001>

<llo_original>
// kernel: tpu_custom_call.1
$region0: #{tpu_custom_call.1}
  #allocation0 [shape = 'u32[]', space=smem, size = 0x4, offset = 0x4, fixed_abs, tag = 'smem constant byte address 0x4 - core index']
  #allocation1 [shape = 'u32[72,128]{1,0:T(1,128)}', space=vmem, size = 0x9000, scoped, tag = 'internal scratch']
  %s0 = inlined_call_operand.vmem [shape: f32[2,16,16,3], index: 0, kind: input, shape index: {}]
  %s1 = inlined_call_operand.vmem [shape: f32[9,3,128], index: 1, kind: input, shape index: {}]
  %s2 = inlined_call_operand.vmem [shape: f32[1,128], index: 2, kind: input, shape index: {}]
  %s3 = inlined_call_operand.hbm [shape: f32[1152,128], index: 3, kind: input, shape index: {}]
  %s4 = inlined_call_operand.vmem [shape: f32[1,128], index: 4, kind: input, shape index: {}]
  %s5 = inlined_call_operand.hbm [shape: f32[2048,128], index: 5, kind: input, shape index: {}]
  %s6 = inlined_call_operand.vmem [shape: f32[1,128], index: 6, kind: input, shape index: {}]
  %s7 = inlined_call_operand.hbm [shape: f32[2,1,128], index: 7, kind: output, shape index: {}]
  %s8 = sld [smem:[#allocation0]]
  $region69: #{tpu_custom_call.1} parent=0
    _
  %s10 = ssub.s32 1, %s8
  %s11 = scalar_select 0, %s10, %s8
  $region1: #{tpu_custom_call.1} parent=0
    #allocation2 [shape = 'u8[589824]{0}', space=vmem, size = 0x90000, scoped, tag = 'input window, operand 3, single buffered']
    #allocation3 [shape = 's32[2]{0}', space=sflag, size = 0x8, scoped, tag = 'scoped memory for tpu_custom_call.1']
    #allocation4 [shape = 's32[2]{0}', space=sflag, size = 0x8, scoped, tag = 'scoped memory for tpu_custom_call.1']
    #allocation5 [shape = 'u8[1048576]{0}', space=vmem, size = 0x100000, scoped, tag = 'input window, operand 5, single buffered']
    #allocation6 [shape = 's32[1]{0}', space=sflag, size = 0x4, scoped, tag = 'scoped memory for tpu_custom_call.1']
    #allocation7 [shape = 'u8[1024]{0}', space=vmem, size = 0x400, scoped, tag = 'output window, operand 0']
    %12 = vsyncpa [#allocation3], 0
    %13 = vsyncpa [#allocation6], 0
    %14 = vsyncpa [#allocation4], 0
    %s15 = scalar_lea.sflag [#allocation4], 1
    %16 = vsyncpa %s15, 0
    loop: start=0, step=1, limit=4
    $region2: #{tpu_custom_call.1} parent=1 // loop_pre_header
      _
    $region3: #{tpu_custom_call.1} parent=1 // loop_header
      %s18 = sphi 0, %s22
      %p19 = scmp.ge.s32.totalorder %s18, 4
      %s28 = sphi 0, %s30
      %s31 = sphi 0, %s28
      %s32 = sphi 0, %s31
      %s48 = sphi 0, %s32
      %s52 = sphi 0, %s52
      %s54 = sphi 0, %s52
      %s55 = sphi 0, %s54
      %s69 = sphi 0, %s55
      %s73 = sphi 0, %s73
      %s75 = sphi 0, %s73
      %s76 = sphi 0, %s75
      %s90 = sphi 0, %s76
      %s94 = sphi 0, %s94
      %s96 = sphi 0, %s94
      %s97 = sphi 0, %s96
      %s111 = sphi 0, %s97
      %s115 = sphi 0, %s115
      %s117 = sphi 0, %s115
      %s118 = sphi 0, %s117
      %s132 = sphi 0, %s118
      %s136 = sphi 0, %s136
      %s138 = sphi 0, %s136
      %s139 = sphi 0, %s138
      %s153 = sphi 0, %s139
      %s157 = sphi 0, %s157
      %s159 = sphi 0, %s157
      %s160 = sphi 0, %s159
      %s174 = sphi 0, %s160
      %s180 = sphi 0, %s182
      %s183 = sphi 0, %s180
      %s184 = sphi 0, %s183
      %s200 = sphi 0, %s184
    $region4: #{tpu_custom_call.1} parent=1 // loop_header_branch
      %21 = sbr.rel (%p19) target = $region8
    $region5: #{tpu_custom_call.1} parent=1 // loop_body
      %s23 = ssub.s32 %s18, 1
      %s24 = ssub.s32 %s18, 2
      %s25 = sadd.s32 %s18, 1
      %s26 = ssub.s32 %s18, %s25
      %p27 = scmp.eq.s32.totalorder %s26, 0
      %s29 = sadd.s32 %s28, 1
      %s30 = scalar_select %p27, %s28, %s29
      %p33 = pneg %p27
      %p34 = scmp.eq.s32.totalorder %s18, 1
      %p35 = por %p33, %p34
      %p36 = scmp.ne.s32.totalorder %s28, %s31
      %p37 = scmp.eq.s32.totalorder %s18, 0
      %p38 = por %p36, %p37
      %p39 = scmp.ne.s32.totalorder %s28, %s31
      %p40 = scmp.eq.s32.totalorder %s23, 1
      %p41 = por %p39, %p40
      %p42 = scmp.ne.s32.totalorder %s31, %s32
      %p43 = scmp.eq.s32.totalorder %s23, 0
      %p44 = por %p42, %p43
      %p45 = scmp.ne.s32.totalorder %s31, %s32
      %p46 = scmp.eq.s32.totalorder %s24, 1
      %p47 = por %p45, %p46
      %p49 = scmp.ne.s32.totalorder %s32, %s48
      %p50 = scmp.eq.s32.totalorder %s24, 0
      %p51 = por %p49, %p50
      %s53 = sadd.s32 %s52, 1
      %p56 = scmp.eq.s32.totalorder %s18, 1
      %p57 = scmp.ne.s32.totalorder %s52, %s54
      %p58 = scmp.eq.s32.totalorder %s18, 0
      %p59 = por %p57, %p58
      %p60 = scmp.ne.s32.totalorder %s52, %s54
      %p61 = scmp.eq.s32.totalorder %s23, 1
      %p62 = por %p60, %p61
      %p63 = scmp.ne.s32.totalorder %s54, %s55
      %p64 = scmp.eq.s32.totalorder %s23, 0
      %p65 = por %p63, %p64
      %p66 = scmp.ne.s32.totalorder %s54, %s55
      %p67 = scmp.eq.s32.totalorder %s24, 1
      %p68 = por %p66, %p67
      %p70 = scmp.ne.s32.totalorder %s55, %s69
      %p71 = scmp.eq.s32.totalorder %s24, 0
      %p72 = por %p70, %p71
      %s74 = sadd.s32 %s73, 1
      %p77 = scmp.eq.s32.totalorder %s18, 1
      %p78 = scmp.ne.s32.totalorder %s73, %s75
      %p79 = scmp.eq.s32.totalorder %s18, 0
      %p80 = por %p78, %p79
      %p81 = scmp.ne.s32.totalorder %s73, %s75
      %p82 = scmp.eq.s32.totalorder %s23, 1
      %p83 = por %p81, %p82
      %p84 = scmp.ne.s32.totalorder %s75, %s76
      %p85 = scmp.eq.s32.totalorder %s23, 0
      %p86 = por %p84, %p85
      %p87 = scmp.ne.s32.totalorder %s75, %s76
      %p88 = scmp.eq.s32.totalorder %s24, 1
      %p89 = por %p87, %p88
      %p91 = scmp.ne.s32.totalorder %s76, %s90
      %p92 = scmp.eq.s32.totalorder %s24, 0
      %p93 = por %p91, %p92
      %s95 = sadd.s32 %s94, 1
      %p98 = scmp.eq.s32.totalorder %s18, 1
      %p99 = scmp.ne.s32.totalorder %s94, %s96
      %p100 = scmp.eq.s32.totalorder %s18, 0
      %p101 = por %p99, %p100
      %p102 = scmp.ne.s32.totalorder %s94, %s96
      %p103 = scmp.eq.s32.totalorder %s23, 1
      %p104 = por %p102, %p103
      %p105 = scmp.ne.s32.totalorder %s96, %s97
      %p106 = scmp.eq.s32.totalorder %s23, 0
      %p107 = por %p105, %p106
      %p108 = scmp.ne.s32.totalorder %s96, %s97
      %p109 = scmp.eq.s32.totalorder %s24, 1
      %p110 = por %p108, %p109
      %p112 = scmp.ne.s32.totalorder %s97, %s111
      %p113 = scmp.eq.s32.totalorder %s24, 0
      %p114 = por %p112, %p113
      %s116 = sadd.s32 %s115, 1
      %p119 = scmp.eq.s32.totalorder %s18, 1
      %p120 = scmp.ne.s32.totalorder %s115, %s117
      %p121 = scmp.eq.s32.totalorder %s18, 0
      %p122 = por %p120, %p121
      %p123 = scmp.ne.s32.totalorder %s115, %s117
      %p124 = scmp.eq.s32.totalorder %s23, 1
      %p125 = por %p123, %p124
      %p126 = scmp.ne.s32.totalorder %s117, %s118
      %p127 = scmp.eq.s32.totalorder %s23, 0
      %p128 = por %p126, %p127
      %p129 = scmp.ne.s32.totalorder %s117, %s118
      %p130 = scmp.eq.s32.totalorder %s24, 1
      %p131 = por %p129, %p130
      %p133 = scmp.ne.s32.totalorder %s118, %s132
      %p134 = scmp.eq.s32.totalorder %s24, 0
      %p135 = por %p133, %p134
      %s137 = sadd.s32 %s136, 1
      %p140 = scmp.eq.s32.totalorder %s18, 1
      %p141 = scmp.ne.s32.totalorder %s136, %s138
      %p142 = scmp.eq.s32.totalorder %s18, 0
      %p143 = por %p141, %p142
      %p144 = scmp.ne.s32.totalorder %s136, %s138
      %p145 = scmp.eq.s32.totalorder %s23, 1
      %p146 = por %p144, %p145
      %p147 = scmp.ne.s32.totalorder %s138, %s139
      %p148 = scmp.eq.s32.totalorder %s23, 0
      %p149 = por %p147, %p148
      %p150 = scmp.ne.s32.totalorder %s138, %s139
      %p151 = scmp.eq.s32.totalorder %s24, 1
      %p152 = por %p150, %p151
      %p154 = scmp.ne.s32.totalorder %s139, %s153
      %p155 = scmp.eq.s32.totalorder %s24, 0
      %p156 = por %p154, %p155
      %s158 = sadd.s32 %s157, 1
      %p161 = scmp.eq.s32.totalorder %s18, 1
      %p162 = scmp.ne.s32.totalorder %s157, %s159
      %p163 = scmp.eq.s32.totalorder %s18, 0
      %p164 = por %p162, %p163
      %p165 = scmp.ne.s32.totalorder %s157, %s159
      %p166 = scmp.eq.s32.totalorder %s23, 1
      %p167 = por %p165, %p166
      %p168 = scmp.ne.s32.totalorder %s159, %s160
      %p169 = scmp.eq.s32.totalorder %s23, 0
      %p170 = por %p168, %p169
      %p171 = scmp.ne.s32.totalorder %s159, %s160
      %p172 = scmp.eq.s32.totalorder %s24, 1
      %p173 = por %p171, %p172
      %p175 = scmp.ne.s32.totalorder %s160, %s174
      %p176 = scmp.eq.s32.totalorder %s24, 0
      %p177 = por %p175, %p176
      %s178 = ssub.s32 %s18, %s25
      %p179 = scmp.eq.s32.totalorder %s178, 0
      %s181 = sadd.s32 %s180, 1
      %s182 = scalar_select %p179, %s180, %s181
      %p185 = pneg %p179
      %p186 = scmp.eq.s32.totalorder %s18, 1
      %p187 = por %p185, %p186
      %p188 = scmp.ne.s32.totalorder %s180, %s183
      %p189 = scmp.eq.s32.totalorder %s18, 0
      %p190 = por %p188, %p189
      %p191 = scmp.ne.s32.totalorder %s180, %s183
      %p192 = scmp.eq.s32.totalorder %s23, 1
      %p193 = por %p191, %p192
      %p194 = scmp.ne.s32.totalorder %s183, %s184
      %p195 = scmp.eq.s32.totalorder %s23, 0
      %p196 = por %p194, %p195
      %p197 = scmp.ne.s32.totalorder %s183, %s184
      %p198 = scmp.eq.s32.totalorder %s24, 1
      %p199 = por %p197, %p198
      %p201 = scmp.ne.s32.totalorder %s184, %s200
      %p202 = scmp.eq.s32.totalorder %s24, 0
      %p203 = por %p201, %p202
      %p204 = scmp.le.s32.totalorder 1, %s18
      %p205 = scmp.lt.s32.totalorder %s18, 3
      %p206 = pnand %p204, %p205
      %p207 = pneg %p206
      // Predicated region
      $region9: #{tpu_custom_call.1} parent=5 // pred_check
        _
      $region10: #{tpu_custom_call.1} parent=5 // pred_check_branch
        %209 = sbr.rel (%p206) target = $region12
      $region11: #{tpu_custom_call.1} parent=5 // pred_region
        %s210 = ssub.s32 %s18, 1
        // Predicated region
        $region13: #{tpu_custom_call.1} parent=11 // pred_check
          %p211 = pneg %p65
        $region14: #{tpu_custom_call.1} parent=11 // pred_check_branch
          %213 = sbr.rel (%p211) target = $region16
        $region15: #{tpu_custom_call.1} parent=11 // pred_region
          _
        $region16: #{tpu_custom_call.1} parent=11 // pred_fallthru
          _
        // Predicated region
        $region17: #{tpu_custom_call.1} parent=11 // pred_check
          %p214 = pneg %p86
        $region18: #{tpu_custom_call.1} parent=11 // pred_check_branch
          %216 = sbr.rel (%p214) target = $region20
        $region19: #{tpu_custom_call.1} parent=11 // pred_region
          _
        $region20: #{tpu_custom_call.1} parent=11 // pred_fallthru
          _
        // Predicated region
        $region21: #{tpu_custom_call.1} parent=11 // pred_check
          %p217 = pneg %p107
        $region22: #{tpu_custom_call.1} parent=11 // pred_check_branch
          %219 = sbr.rel (%p217) target = $region24
        $region23: #{tpu_custom_call.1} parent=11 // pred_region
          %221 = vsyncadd [#allocation3], 0
          %s222 = sshll.u32 %s3, 4
          %s223 = int_to_ptr.hbm [resolvable:$true] %s222
          %s224 = sshll.u32 [#allocation2], 4
          %s225 = int_to_ptr.vmem [resolvable:$true] %s224
          %230 = dma.hbm_to_vmem [thread:$0]  %s223, 18432, %s225, [#allocation3], 128, 128, 8
        $region24: #{tpu_custom_call.1} parent=11 // pred_fallthru
          _
        // Predicated region
        $region25: #{tpu_custom_call.1} parent=11 // pred_check
          %p231 = pneg %p128
        $region26: #{tpu_custom_call.1} parent=11 // pred_check_branch
          %233 = sbr.rel (%p231) target = $region28
        $region27: #{tpu_custom_call.1} parent=11 // pred_region
          _
        $region28: #{tpu_custom_call.1} parent=11 // pred_fallthru
          _
        // Predicated region
        $region29: #{tpu_custom_call.1} parent=11 // pred_check
          %p234 = pneg %p149
        $region30: #{tpu_custom_call.1} parent=11 // pred_check_branch
          %236 = sbr.rel (%p234) target = $region32
        $region31: #{tpu_custom_call.1} parent=11 // pred_region
          %238 = vsyncadd [#allocation6], 0
          %s239 = sshll.u32 %s5, 4
          %s240 = int_to_ptr.hbm [resolvable:$true] %s239
          %s241 = sshll.u32 [#allocation5], 4
          %s242 = int_to_ptr.vmem [resolvable:$true] %s241
          %247 = dma.hbm_to_vmem [thread:$0]  %s240, 32768, %s242, [#allocation6], 128, 128, 8
        $region32: #{tpu_custom_call.1} parent=11 // pred_fallthru
          _
        // Predicated region
        $region33: #{tpu_custom_call.1} parent=11 // pred_check
          %p248 = pneg %p170
        $region34: #{tpu_custom_call.1} parent=11 // pred_check_branch
          %250 = sbr.rel (%p248) target = $region36
        $region35: #{tpu_custom_call.1} parent=11 // pred_region
          _
        $region36: #{tpu_custom_call.1} parent=11 // pred_fallthru
          _
      $region12: #{tpu_custom_call.1} parent=5 // pred_fallthru
        _
      %p251 = scmp.lt.s32.totalorder %s18, 2
      // Predicated region
      $region37: #{tpu_custom_call.1} parent=5 // pred_check
        %p252 = pneg %p251
      $region38: #{tpu_custom_call.1} parent=5 // pred_check_branch
        %254 = sbr.rel (%p252) target = $region40
      $region39: #{tpu_custom_call.1} parent=5 // pred_region
        // Predicated region
        $region41: #{tpu_custom_call.1} parent=39 // pred_check
          %p255 = pneg %p38
        $region42: #{tpu_custom_call.1} parent=39 // pred_check_branch
          %257 = sbr.rel (%p255) target = $region44
        $region43: #{tpu_custom_call.1} parent=39 // pred_region
          %p258 = scmp.lt.s32.totalorder %s18, 1
          %s259 = scalar_select %p258, %s18, 1
          %s260 = smul.addr %s259, 32
          %s261 = smul.addr %s260, 8
          %s262 = scalar_lea.vmem %s0, %s261
        $region44: #{tpu_custom_call.1} parent=39 // pred_fallthru
          _
      $region40: #{tpu_custom_call.1} parent=5 // pred_fallthru
        _
      %p263 = scmp.le.s32.totalorder 1, %s18
      %p264 = scmp.lt.s32.totalorder %s18, 3
      %p265 = pnand %p263, %p264
      %p266 = pneg %p265
      // Predicated region
      $region45: #{tpu_custom_call.1} parent=5 // pred_check
        _
      $region46: #{tpu_custom_call.1} parent=5 // pred_check_branch
        %268 = sbr.rel (%p265) target = $region48
      $region47: #{tpu_custom_call.1} parent=5 // pred_region
        %s269 = ssub.s32 %s18, 1
        // Predicated region
        $region49: #{tpu_custom_call.1} parent=47 // pred_check
          %p270 = pneg %p107
        $region50: #{tpu_custom_call.1} parent=47 // pred_check_branch
          %272 = sbr.rel (%p270) target = $region52
        $region51: #{tpu_custom_call.1} parent=47 // pred_region
          %274 = dma.done [#allocation3], 18432
        $region52: #{tpu_custom_call.1} parent=47 // pred_fallthru
          _
        // Predicated region
        $region53: #{tpu_custom_call.1} parent=47 // pred_check
          %p275 = pneg %p149
        $region54: #{tpu_custom_call.1} parent=47 // pred_check_branch
          %277 = sbr.rel (%p275) target = $region56
        $region55: #{tpu_custom_call.1} parent=47 // pred_region
          %279 = dma.done [#allocation6], 32768
        $region56: #{tpu_custom_call.1} parent=47 // pred_fallthru
          _
        %p280 = scmp.lt.s32.totalorder %s23, 1
        %s281 = scalar_select %p280, %s23, 1
        %s282 = smul.addr %s281, 32
        %s283 = smul.addr %s282, 8
        %s284 = scalar_lea.vmem %s0, %s283
        %p285 = pneg %p44
        %p286 = pneg %p41
        %p287 = pneg %p65
        %p288 = pneg %p62
        %p289 = pneg %p86
        %p290 = pneg %p83
        %p291 = pneg %p107
        %p292 = pneg %p104
        %p293 = pneg %p128
        %p294 = pneg %p125
        %p295 = pneg %p149
        %p296 = pneg %p146
        %p297 = pneg %p170
        %p298 = pneg %p167
        %p299 = pneg %p196
        %p300 = pneg %p193
        %s301 = sand.u32 %s183, 1
        %s302 = scalar_lea.sflag [#allocation4], %s301
        %s303 = sand.u32 %s183, 1
        %s304 = scalar_lea.vmem [#allocation7], %s303
        %p305 = scmp.lt.s32.totalorder %s23, 1
        %s306 = scalar_select %p305, %s23, 1
        %s307 = smul.addr %s306, 32
        %s308 = smul.addr %s307, 8
        %s309 = scalar_lea.vmem %s0, %s308
        %v310 = vld [vmem:[%s309] sm:$0xff]
        %v311 = vld [vmem:[%s309 + $0x8] sm:$0xff]
        %v312 = vld [vmem:[%s309 + $0x10] sm:$0xff]
        %v313 = vld [vmem:[%s309 + $0x18] sm:$0xff]
        %v314 = vld [vmem:[%s309 + $0x20] sm:$0xff]
        %v315 = vld [vmem:[%s309 + $0x28] sm:$0xff]
        %v316 = vld [vmem:[%s309 + $0x30] sm:$0xff]
        %v317 = vld [vmem:[%s309 + $0x38] sm:$0xff]
        %v318 = vld [vmem:[%s309 + $0x40] sm:$0xff]
        %v319 = vld [vmem:[%s309 + $0x48] sm:$0xff]
        %v320 = vld [vmem:[%s309 + $0x50] sm:$0xff]
        %v321 = vld [vmem:[%s309 + $0x58] sm:$0xff]
        %v322 = vld [vmem:[%s309 + $0x60] sm:$0xff]
        %v323 = vld [vmem:[%s309 + $0x68] sm:$0xff]
        %v324 = vld [vmem:[%s309 + $0x70] sm:$0xff]
        %v325 = vld [vmem:[%s309 + $0x78] sm:$0xff]
        %v326 = vld [vmem:[%s309 + $0x80] sm:$0xff]
        %v327 = vld [vmem:[%s309 + $0x88] sm:$0xff]
        %v328 = vld [vmem:[%s309 + $0x90] sm:$0xff]
        %v329 = vld [vmem:[%s309 + $0x98] sm:$0xff]
        %v330 = vld [vmem:[%s309 + $0xa0] sm:$0xff]
        %v331 = vld [vmem:[%s309 + $0xa8] sm:$0xff]
        %v332 = vld [vmem:[%s309 + $0xb0] sm:$0xff]
        %v333 = vld [vmem:[%s309 + $0xb8] sm:$0xff]
        %v334 = vld [vmem:[%s309 + $0xc0] sm:$0xff]
        %v335 = vld [vmem:[%s309 + $0xc8] sm:$0xff]
        %v336 = vld [vmem:[%s309 + $0xd0] sm:$0xff]
        %v337 = vld [vmem:[%s309 + $0xd8] sm:$0xff]
        %v338 = vld [vmem:[%s309 + $0xe0] sm:$0xff]
        %v339 = vld [vmem:[%s309 + $0xe8] sm:$0xff]
        %v340 = vld [vmem:[%s309 + $0xf0] sm:$0xff]
        %v341 = vld [vmem:[%s309 + $0xf8] sm:$0xff]
        %v342 = vld [vmem:[%s1] sm:$0x7]
        %v343 = vld [vmem:[%s1 + $0x4] sm:$0x7]
        %v344 = vld [vmem:[%s1 + $0x8] sm:$0x7]
        %v345 = vld [vmem:[%s1 + $0xc] sm:$0x7]
        %v346 = vld [vmem:[%s1 + $0x10] sm:$0x7]
        %v347 = vld [vmem:[%s1 + $0x14] sm:$0x7]
        %v348 = vld [vmem:[%s1 + $0x18] sm:$0x7]
        %v349 = vld [vmem:[%s1 + $0x1c] sm:$0x7]
        %v350 = vld [vmem:[%s1 + $0x20] sm:$0x7]
        %v351 = vld [vmem:[%s2] sm:$0x1]
        %vm383 = vcmask 1040384
        %v384 = vrot.slane 0.0, 7
        %v385 = vsel %vm383, %v384, %v384
        %v386 = vrot.slane %v310, 7
        %v387 = vsel %vm383, %v384, %v386
        %v388 = vrot.slane %v311, 7
        %v389 = vsel %vm383, %v386, %v388
        %v390 = vrot.slane %v312, 7
        %v391 = vsel %vm383, %v384, %v390
        %v392 = vrot.slane %v313, 7
        %v393 = vsel %vm383, %v390, %v392
        %v394 = vrot.slane %v314, 7
        %v395 = vsel %vm383, %v384, %v394
        %v396 = vrot.slane %v315, 7
        %v397 = vsel %vm383, %v394, %v396
        %v398 = vrot.slane %v316, 7
        %v399 = vsel %vm383, %v384, %v398
        %v400 = vrot.slane %v317, 7
        %v401 = vsel %vm383, %v398, %v400
        %v402 = vrot.slane %v318, 7
        %v403 = vsel %vm383, %v384, %v402
        %v404 = vrot.slane %v319, 7
        %v405 = vsel %vm383, %v402, %v404
        %v406 = vrot.slane %v320, 7
        %v407 = vsel %vm383, %v384, %v406
        %v408 = vrot.slane %v321, 7
        %v409 = vsel %vm383, %v406, %v408
        %v410 = vrot.slane %v322, 7
        %v411 = vsel %vm383, %v384, %v410
        %v412 = vrot.slane %v323, 7
        %v413 = vsel %vm383, %v410, %v412
        %v414 = vrot.slane %v324, 7
        %v415 = vsel %vm383, %v384, %v414
        %v416 = vrot.slane %v325, 7
        %v417 = vsel %vm383, %v414, %v416
        %v418 = vrot.slane %v326, 7
        %v419 = vsel %vm383, %v384, %v418
        %v420 = vrot.slane %v327, 7
        %v421 = vsel %vm383, %v418, %v420
        %v422 = vrot.slane %v328, 7
        %v423 = vsel %vm383, %v384, %v422
        %v424 = vrot.slane %v329, 7
        %v425 = vsel %vm383, %v422, %v424
        %v426 = vrot.slane %v330, 7
        %v427 = vsel %vm383, %v384, %v426
        %v428 = vrot.slane %v331, 7
        %v429 = vsel %vm383, %v426, %v428
        %v430 = vrot.slane %v332, 7
        %v431 = vsel %vm383, %v384, %v430
        %v432 = vrot.slane %v333, 7
        %v433 = vsel %vm383, %v430, %v432
        %v434 = vrot.slane %v334, 7
        %v435 = vsel %vm383, %v384, %v434
        %v436 = vrot.slane %v335, 7
        %v437 = vsel %vm383, %v434, %v436
        %v438 = vrot.slane %v336, 7
        %v439 = vsel %vm383, %v384, %v438
        %v440 = vrot.slane %v337, 7
        %v441 = vsel %vm383, %v438, %v440
        %v442 = vrot.slane %v338, 7
        %v443 = vsel %vm383, %v384, %v442
        %v444 = vrot.slane %v339, 7
        %v445 = vsel %vm383, %v442, %v444
        %vm446 = vcmask 23552
        %v447 = vsel %vm446, 0.0, 0
        %v449 = vsel %vm446, %v310, 0
        %v451 = vsel %vm446, %v311, 0
        %v453 = vsel %vm446, %v312, 0
        %v455 = vsel %vm446, %v313, 0
        %v457 = vsel %vm446, %v314, 0
        %v459 = vsel %vm446, %v315, 0
        %v461 = vsel %vm446, %v316, 0
        %v463 = vsel %vm446, %v317, 0
        %v465 = vsel %vm446, %v318, 0
        %v467 = vsel %vm446, %v319, 0
        %v469 = vsel %vm446, %v320, 0
        %v471 = vsel %vm446, %v321, 0
        %v473 = vsel %vm446, %v322, 0
        %v475 = vsel %vm446, %v323, 0
        %v477 = vsel %vm446, %v324, 0
        %v479 = vsel %vm446, %v325, 0
        %v481 = vsel %vm446, %v326, 0
        %v483 = vsel %vm446, %v327, 0
        %v485 = vsel %vm446, %v328, 0
        %v487 = vsel %vm446, %v329, 0
        %v489 = vsel %vm446, %v330, 0
        %v491 = vsel %vm446, %v331, 0
        %v493 = vsel %vm446, %v332, 0
        %v495 = vsel %vm446, %v333, 0
        %v497 = vsel %vm446, %v334, 0
        %v499 = vsel %vm446, %v335, 0
        %v501 = vsel %vm446, %v336, 0
        %v503 = vsel %vm446, %v337, 0
        %v505 = vsel %vm446, %v338, 0
        %v507 = vsel %vm446, %v339, 0
        %vm509 = vcmask 1042432
        %v511 = vsel %vm509, %v343, 0
        %513 = vmatpush.msra.mxu0 0.0
        %514 = vmatpush.msra.mxu0 0.0
        %515 = vmatpush.msra.mxu0 0.0
        %516 = vmatpush.msra.mxu0 0.0
        %517 = vmatpush.msra.mxu0 0.0
        %518 = vmatpush.msra.mxu0 0.0
        %519 = vmatpush.msra.mxu0 0.0
        %520 = vmatpush.msra.mxu0 0.0
        %521 = vmatpush.msra.mxu0 0.0
        %522 = vmatpush.msra.mxu0 0.0
        %523 = vmatpush.msra.mxu0 0.0
        %524 = vmatpush.msra.mxu0 0.0
        %525 = vmatpush.msra.mxu0 0.0
        %526 = vmatpush.msra.mxu0 0.0
        %527 = vmatpush.msra.mxu0 0.0
        %528 = vmatpush.msra.mxu0 %v511
        %529 = vmatmul.f32.gmra.mxu0 %v447
        %v530 = vpop.f32.mrf.mxu0
        %v531 = vadd.f32 0.0, %v530
        %532 = vmatmul.f32.gmra.mxu0 %v447
        %v533 = vpop.f32.mrf.mxu0
        %v534 = vadd.f32 0.0, %v533
        %535 = vmatmul.f32.gmra.mxu0 %v449
        %v536 = vpop.f32.mrf.mxu0
        %v537 = vadd.f32 0.0, %v536
        %538 = vmatmul.f32.gmra.mxu0 %v451
        %v539 = vpop.f32.mrf.mxu0
        %v540 = vadd.f32 0.0, %v539
        %541 = vmatmul.f32.gmra.mxu0 %v453
        %v542 = vpop.f32.mrf.mxu0
        %v543 = vadd.f32 0.0, %v542
        %544 = vmatmul.f32.gmra.mxu0 %v455
        %v545 = vpop.f32.mrf.mxu0
        %v546 = vadd.f32 0.0, %v545
        %547 = vmatmul.f32.gmra.mxu0 %v457
        %v548 = vpop.f32.mrf.mxu0
        %v549 = vadd.f32 0.0, %v548
        %550 = vmatmul.f32.gmra.mxu0 %v459
        %v551 = vpop.f32.mrf.mxu0
        %v552 = vadd.f32 0.0, %v551
        %553 = vmatmul.f32.gmra.mxu0 %v461
        %v554 = vpop.f32.mrf.mxu0
        %v555 = vadd.f32 0.0, %v554
        %556 = vmatmul.f32.gmra.mxu0 %v463
        %v557 = vpop.f32.mrf.mxu0
        %v558 = vadd.f32 0.0, %v557
        %559 = vmatmul.f32.gmra.mxu0 %v465
        %v560 = vpop.f32.mrf.mxu0
        %v561 = vadd.f32 0.0, %v560
        %562 = vmatmul.f32.gmra.mxu0 %v467
        %v563 = vpop.f32.mrf.mxu0
        %v564 = vadd.f32 0.0, %v563
        %565 = vmatmul.f32.gmra.mxu0 %v469
        %v566 = vpop.f32.mrf.mxu0
        %v567 = vadd.f32 0.0, %v566
        %568 = vmatmul.f32.gmra.mxu0 %v471
        %v569 = vpop.f32.mrf.mxu0
        %v570 = vadd.f32 0.0, %v569
        %571 = vmatmul.f32.gmra.mxu0 %v473
        %v572 = vpop.f32.mrf.mxu0
        %v573 = vadd.f32 0.0, %v572
        %574 = vmatmul.f32.gmra.mxu0 %v475
        %v575 = vpop.f32.mrf.mxu0
        %v576 = vadd.f32 0.0, %v575
        %577 = vmatmul.f32.gmra.mxu0 %v477
        %v578 = vpop.f32.mrf.mxu0
        %v579 = vadd.f32 0.0, %v578
        %580 = vmatmul.f32.gmra.mxu0 %v479
        %v581 = vpop.f32.mrf.mxu0
        %v582 = vadd.f32 0.0, %v581
        %583 = vmatmul.f32.gmra.mxu0 %v481
        %v584 = vpop.f32.mrf.mxu0
        %v585 = vadd.f32 0.0, %v584
        %586 = vmatmul.f32.gmra.mxu0 %v483
        %v587 = vpop.f32.mrf.mxu0
        %v588 = vadd.f32 0.0, %v587
        %589 = vmatmul.f32.gmra.mxu0 %v485
        %v590 = vpop.f32.mrf.mxu0
        %v591 = vadd.f32 0.0, %v590
        %592 = vmatmul.f32.gmra.mxu0 %v487
        %v593 = vpop.f32.mrf.mxu0
        %v594 = vadd.f32 0.0, %v593
        %595 = vmatmul.f32.gmra.mxu0 %v489
        %v596 = vpop.f32.mrf.mxu0
        %v597 = vadd.f32 0.0, %v596
        %598 = vmatmul.f32.gmra.mxu0 %v491
        %v599 = vpop.f32.mrf.mxu0
        %v600 = vadd.f32 0.0, %v599
        %601 = vmatmul.f32.gmra.mxu0 %v493
        %v602 = vpop.f32.mrf.mxu0
        %v603 = vadd.f32 0.0, %v602
        %604 = vmatmul.f32.gmra.mxu0 %v495
        %v605 = vpop.f32.mrf.mxu0
        %v606 = vadd.f32 0.0, %v605
        %607 = vmatmul.f32.gmra.mxu0 %v497
        %v608 = vpop.f32.mrf.mxu0
        %v609 = vadd.f32 0.0, %v608
        %610 = vmatmul.f32.gmra.mxu0 %v499
        %v611 = vpop.f32.mrf.mxu0
        %v612 = vadd.f32 0.0, %v611
        %613 = vmatmul.f32.gmra.mxu0 %v501
        %v614 = vpop.f32.mrf.mxu0
        %v615 = vadd.f32 0.0, %v614
        %616 = vmatmul.f32.gmra.mxu0 %v503
        %v617 = vpop.f32.mrf.mxu0
        %v618 = vadd.f32 0.0, %v617
        %619 = vmatmul.f32.gmra.mxu0 %v505
        %v620 = vpop.f32.mrf.mxu0
        %v621 = vadd.f32 0.0, %v620
        %622 = vmatmul.f32.gmra.mxu0 %v507
        %v623 = vpop.f32.mrf.mxu0
        %v624 = vadd.f32 0.0, %v623
        %625 = vdwg.mxu0
        %v626 = vsel %vm446, %v385, 0
        %v628 = vsel %vm446, %v387, 0
        %v630 = vsel %vm446, %v389, 0
        %v632 = vsel %vm446, %v391, 0
        %v634 = vsel %vm446, %v393, 0
        %v636 = vsel %vm446, %v395, 0
        %v638 = vsel %vm446, %v397, 0
        %v640 = vsel %vm446, %v399, 0
        %v642 = vsel %vm446, %v401, 0
        %v644 = vsel %vm446, %v403, 0
        %v646 = vsel %vm446, %v405, 0
        %v648 = vsel %vm446, %v407, 0
        %v650 = vsel %vm446, %v409, 0
        %v652 = vsel %vm446, %v411, 0
        %v654 = vsel %vm446, %v413, 0
        %v656 = vsel %vm446, %v415, 0
        %v658 = vsel %vm446, %v417, 0
        %v660 = vsel %vm446, %v419, 0
        %v662 = vsel %vm446, %v421, 0
        %v664 = vsel %vm446, %v423, 0
        %v666 = vsel %vm446, %v425, 0
        %v668 = vsel %vm446, %v427, 0
        %v670 = vsel %vm446, %v429, 0
        %v672 = vsel %vm446, %v431, 0
        %v674 = vsel %vm446, %v433, 0
        %v676 = vsel %vm446, %v435, 0
        %v678 = vsel %vm446, %v437, 0
        %v680 = vsel %vm446, %v439, 0
        %v682 = vsel %vm446, %v441, 0
        %v684 = vsel %vm446, %v443, 0
        %v686 = vsel %vm446, %v445, 0
        %v689 = vsel %vm509, %v342, 0
        %691 = vmatpush.msra.mxu0 0.0
        %692 = vmatpush.msra.mxu0 0.0
        %693 = vmatpush.msra.mxu0 0.0
        %694 = vmatpush.msra.mxu0 0.0
        %695 = vmatpush.msra.mxu0 0.0
        %696 = vmatpush.msra.mxu0 0.0
        %697 = vmatpush.msra.mxu0 0.0
        %698 = vmatpush.msra.mxu0 0.0
        %699 = vmatpush.msra.mxu0 0.0
        %700 = vmatpush.msra.mxu0 0.0
        %701 = vmatpush.msra.mxu0 0.0
        %702 = vmatpush.msra.mxu0 0.0
        %703 = vmatpush.msra.mxu0 0.0
        %704 = vmatpush.msra.mxu0 0.0
        %705 = vmatpush.msra.mxu0 0.0
        %706 = vmatpush.msra.mxu0 %v689
        %707 = vmatmul.f32.gmra.mxu0 %v626
        %v708 = vpop.f32.mrf.mxu0
        %v709 = vadd.f32 %v531, %v708
        %710 = vmatmul.f32.gmra.mxu0 %v626
        %v711 = vpop.f32.mrf.mxu0
        %v712 = vadd.f32 %v534, %v711
        %713 = vmatmul.f32.gmra.mxu0 %v628
        %v714 = vpop.f32.mrf.mxu0
        %v715 = vadd.f32 %v537, %v714
        %716 = vmatmul.f32.gmra.mxu0 %v630
        %v717 = vpop.f32.mrf.mxu0
        %v718 = vadd.f32 %v540, %v717
        %719 = vmatmul.f32.gmra.mxu0 %v632
        %v720 = vpop.f32.mrf.mxu0
        %v721 = vadd.f32 %v543, %v720
        %722 = vmatmul.f32.gmra.mxu0 %v634
        %v723 = vpop.f32.mrf.mxu0
        %v724 = vadd.f32 %v546, %v723
        %725 = vmatmul.f32.gmra.mxu0 %v636
        %v726 = vpop.f32.mrf.mxu0
        %v727 = vadd.f32 %v549, %v726
        %728 = vmatmul.f32.gmra.mxu0 %v638
        %v729 = vpop.f32.mrf.mxu0
        %v730 = vadd.f32 %v552, %v729
        %731 = vmatmul.f32.gmra.mxu0 %v640
        %v732 = vpop.f32.mrf.mxu0
        %v733 = vadd.f32 %v555, %v732
        %734 = vmatmul.f32.gmra.mxu0 %v642
        %v735 = vpop.f32.mrf.mxu0
        %v736 = vadd.f32 %v558, %v735
        %737 = vmatmul.f32.gmra.mxu0 %v644
        %v738 = vpop.f32.mrf.mxu0
        %v739 = vadd.f32 %v561, %v738
        %740 = vmatmul.f32.gmra.mxu0 %v646
        %v741 = vpop.f32.mrf.mxu0
        %v742 = vadd.f32 %v564, %v741
        %743 = vmatmul.f32.gmra.mxu0 %v648
        %v744 = vpop.f32.mrf.mxu0
        %v745 = vadd.f32 %v567, %v744
        %746 = vmatmul.f32.gmra.mxu0 %v650
        %v747 = vpop.f32.mrf.mxu0
        %v748 = vadd.f32 %v570, %v747
        %749 = vmatmul.f32.gmra.mxu0 %v652
        %v750 = vpop.f32.mrf.mxu0
        %v751 = vadd.f32 %v573, %v750
        %752 = vmatmul.f32.gmra.mxu0 %v654
        %v753 = vpop.f32.mrf.mxu0
        %v754 = vadd.f32 %v576, %v753
        %755 = vmatmul.f32.gmra.mxu0 %v656
        %v756 = vpop.f32.mrf.mxu0
        %v757 = vadd.f32 %v579, %v756
        %758 = vmatmul.f32.gmra.mxu0 %v658
        %v759 = vpop.f32.mrf.mxu0
        %v760 = vadd.f32 %v582, %v759
        %761 = vmatmul.f32.gmra.mxu0 %v660
        %v762 = vpop.f32.mrf.mxu0
        %v763 = vadd.f32 %v585, %v762
        %764 = vmatmul.f32.gmra.mxu0 %v662
        %v765 = vpop.f32.mrf.mxu0
        %v766 = vadd.f32 %v588, %v765
        %767 = vmatmul.f32.gmra.mxu0 %v664
        %v768 = vpop.f32.mrf.mxu0
        %v769 = vadd.f32 %v591, %v768
        %770 = vmatmul.f32.gmra.mxu0 %v666
        %v771 = vpop.f32.mrf.mxu0
        %v772 = vadd.f32 %v594, %v771
        %773 = vmatmul.f32.gmra.mxu0 %v668
        %v774 = vpop.f32.mrf.mxu0
        %v775 = vadd.f32 %v597, %v774
        %776 = vmatmul.f32.gmra.mxu0 %v670
        %v777 = vpop.f32.mrf.mxu0
        %v778 = vadd.f32 %v600, %v777
        %779 = vmatmul.f32.gmra.mxu0 %v672
        %v780 = vpop.f32.mrf.mxu0
        %v781 = vadd.f32 %v603, %v780
        %782 = vmatmul.f32.gmra.mxu0 %v674
        %v783 = vpop.f32.mrf.mxu0
        %v784 = vadd.f32 %v606, %v783
        %785 = vmatmul.f32.gmra.mxu0 %v676
        %v786 = vpop.f32.mrf.mxu0
        %v787 = vadd.f32 %v609, %v786
        %788 = vmatmul.f32.gmra.mxu0 %v678
        %v789 = vpop.f32.mrf.mxu0
        %v790 = vadd.f32 %v612, %v789
        %791 = vmatmul.f32.gmra.mxu0 %v680
        %v792 = vpop.f32.mrf.mxu0
        %v793 = vadd.f32 %v615, %v792
        %794 = vmatmul.f32.gmra.mxu0 %v682
        %v795 = vpop.f32.mrf.mxu0
        %v796 = vadd.f32 %v618, %v795
        %797 = vmatmul.f32.gmra.mxu0 %v684
        %v798 = vpop.f32.mrf.mxu0
        %v799 = vadd.f32 %v621, %v798
        %800 = vmatmul.f32.gmra.mxu0 %v686
        %v801 = vpop.f32.mrf.mxu0
        %v802 = vadd.f32 %v624, %v801
        %803 = vdwg.mxu0
        %vm804 = vcmask 1046528
        %v805 = vrot.slane 0.0, 1
        %v806 = vsel %vm804, %v805, %v805
        %v807 = vrot.slane %v310, 1
        %v808 = vrot.slane %v311, 1
        %v809 = vsel %vm804, %v807, %v808
        %v810 = vsel %vm804, %v808, %v805
        %v811 = vrot.slane %v312, 1
        %v812 = vrot.slane %v313, 1
        %v813 = vsel %vm804, %v811, %v812
        %v814 = vsel %vm804, %v812, %v805
        %v815 = vrot.slane %v314, 1
        %v816 = vrot.slane %v315, 1
        %v817 = vsel %vm804, %v815, %v816
        %v818 = vsel %vm804, %v816, %v805
        %v819 = vrot.slane %v316, 1
        %v820 = vrot.slane %v317, 1
        %v821 = vsel %vm804, %v819, %v820
        %v822 = vsel %vm804, %v820, %v805
        %v823 = vrot.slane %v318, 1
        %v824 = vrot.slane %v319, 1
        %v825 = vsel %vm804, %v823, %v824
        %v826 = vsel %vm804, %v824, %v805
        %v827 = vrot.slane %v320, 1
        %v828 = vrot.slane %v321, 1
        %v829 = vsel %vm804, %v827, %v828
        %v830 = vsel %vm804, %v828, %v805
        %v831 = vrot.slane %v322, 1
        %v832 = vrot.slane %v323, 1
        %v833 = vsel %vm804, %v831, %v832
        %v834 = vsel %vm804, %v832, %v805
        %v835 = vrot.slane %v324, 1
        %v836 = vrot.slane %v325, 1
        %v837 = vsel %vm804, %v835, %v836
        %v838 = vsel %vm804, %v836, %v805
        %v839 = vrot.slane %v326, 1
        %v840 = vrot.slane %v327, 1
        %v841 = vsel %vm804, %v839, %v840
        %v842 = vsel %vm804, %v840, %v805
        %v843 = vrot.slane %v328, 1
        %v844 = vrot.slane %v329, 1
        %v845 = vsel %vm804, %v843, %v844
        %v846 = vsel %vm804, %v844, %v805
        %v847 = vrot.slane %v330, 1
        %v848 = vrot.slane %v331, 1
        %v849 = vsel %vm804, %v847, %v848
        %v850 = vsel %vm804, %v848, %v805
        %v851 = vrot.slane %v332, 1
        %v852 = vrot.slane %v333, 1
        %v853 = vsel %vm804, %v851, %v852
        %v854 = vsel %vm804, %v852, %v805
        %v855 = vrot.slane %v334, 1
        %v856 = vrot.slane %v335, 1
        %v857 = vsel %vm804, %v855, %v856
        %v858 = vsel %vm804, %v856, %v805
        %v859 = vrot.slane %v336, 1
        %v860 = vrot.slane %v337, 1
        %v861 = vsel %vm804, %v859, %v860
        %v862 = vsel %vm804, %v860, %v805
        %v863 = vrot.slane %v338, 1
        %v864 = vrot.slane %v339, 1
        %v865 = vsel %vm804, %v863, %v864
        %v866 = vsel %vm804, %v864, %v805
        %v867 = vsel %vm446, %v806, 0
        %v869 = vsel %vm446, %v809, 0
        %v871 = vsel %vm446, %v810, 0
        %v873 = vsel %vm446, %v813, 0
        %v875 = vsel %vm446, %v814, 0
        %v877 = vsel %vm446, %v817, 0
        %v879 = vsel %vm446, %v818, 0
        %v881 = vsel %vm446, %v821, 0
        %v883 = vsel %vm446, %v822, 0
        %v885 = vsel %vm446, %v825, 0
        %v887 = vsel %vm446, %v826, 0
        %v889 = vsel %vm446, %v829, 0
        %v891 = vsel %vm446, %v830, 0
        %v893 = vsel %vm446, %v833, 0
        %v895 = vsel %vm446, %v834, 0
        %v897 = vsel %vm446, %v837, 0
        %v899 = vsel %vm446, %v838, 0
        %v901 = vsel %vm446, %v841, 0
        %v903 = vsel %vm446, %v842, 0
        %v905 = vsel %vm446, %v845, 0
        %v907 = vsel %vm446, %v846, 0
        %v909 = vsel %vm446, %v849, 0
        %v911 = vsel %vm446, %v850, 0
        %v913 = vsel %vm446, %v853, 0
        %v915 = vsel %vm446, %v854, 0
        %v917 = vsel %vm446, %v857, 0
        %v919 = vsel %vm446, %v858, 0
        %v921 = vsel %vm446, %v861, 0
        %v923 = vsel %vm446, %v862, 0
        %v925 = vsel %vm446, %v865, 0
        %v927 = vsel %vm446, %v866, 0
        %v930 = vsel %vm509, %v344, 0
        %932 = vmatpush.msra.mxu0 0.0
        %933 = vmatpush.msra.mxu0 0.0
        %934 = vmatpush.msra.mxu0 0.0
        %935 = vmatpush.msra.mxu0 0.0
        %936 = vmatpush.msra.mxu0 0.0
        %937 = vmatpush.msra.mxu0 0.0
        %938 = vmatpush.msra.mxu0 0.0
        %939 = vmatpush.msra.mxu0 0.0
        %940 = vmatpush.msra.mxu0 0.0
        %941 = vmatpush.msra.mxu0 0.0
        %942 = vmatpush.msra.mxu0 0.0
        %943 = vmatpush.msra.mxu0 0.0
        %944 = vmatpush.msra.mxu0 0.0
        %945 = vmatpush.msra.mxu0 0.0
        %946 = vmatpush.msra.mxu0 0.0
        %947 = vmatpush.msra.mxu0 %v930
        %948 = vmatmul.f32.gmra.mxu0 %v867
        %v949 = vpop.f32.mrf.mxu0
        %v950 = vadd.f32 0.0, %v949
        %951 = vmatmul.f32.gmra.mxu0 %v867
        %v952 = vpop.f32.mrf.mxu0
        %v953 = vadd.f32 0.0, %v952
        %954 = vmatmul.f32.gmra.mxu0 %v869
        %v955 = vpop.f32.mrf.mxu0
        %v956 = vadd.f32 0.0, %v955
        %957 = vmatmul.f32.gmra.mxu0 %v871
        %v958 = vpop.f32.mrf.mxu0
        %v959 = vadd.f32 0.0, %v958
        %960 = vmatmul.f32.gmra.mxu0 %v873
        %v961 = vpop.f32.mrf.mxu0
        %v962 = vadd.f32 0.0, %v961
        %963 = vmatmul.f32.gmra.mxu0 %v875
        %v964 = vpop.f32.mrf.mxu0
        %v965 = vadd.f32 0.0, %v964
        %966 = vmatmul.f32.gmra.mxu0 %v877
        %v967 = vpop.f32.mrf.mxu0
        %v968 = vadd.f32 0.0, %v967
        %969 = vmatmul.f32.gmra.mxu0 %v879
        %v970 = vpop.f32.mrf.mxu0
        %v971 = vadd.f32 0.0, %v970
        %972 = vmatmul.f32.gmra.mxu0 %v881
        %v973 = vpop.f32.mrf.mxu0
        %v974 = vadd.f32 0.0, %v973
        %975 = vmatmul.f32.gmra.mxu0 %v883
        %v976 = vpop.f32.mrf.mxu0
        %v977 = vadd.f32 0.0, %v976
        %978 = vmatmul.f32.gmra.mxu0 %v885
        %v979 = vpop.f32.mrf.mxu0
        %v980 = vadd.f32 0.0, %v979
        %981 = vmatmul.f32.gmra.mxu0 %v887
        %v982 = vpop.f32.mrf.mxu0
        %v983 = vadd.f32 0.0, %v982
        %984 = vmatmul.f32.gmra.mxu0 %v889
        %v985 = vpop.f32.mrf.mxu0
        %v986 = vadd.f32 0.0, %v985
        %987 = vmatmul.f32.gmra.mxu0 %v891
        %v988 = vpop.f32.mrf.mxu0
        %v989 = vadd.f32 0.0, %v988
        %990 = vmatmul.f32.gmra.mxu0 %v893
        %v991 = vpop.f32.mrf.mxu0
        %v992 = vadd.f32 0.0, %v991
        %993 = vmatmul.f32.gmra.mxu0 %v895
        %v994 = vpop.f32.mrf.mxu0
        %v995 = vadd.f32 0.0, %v994
        %996 = vmatmul.f32.gmra.mxu0 %v897
        %v997 = vpop.f32.mrf.mxu0
        %v998 = vadd.f32 0.0, %v997
        %999 = vmatmul.f32.gmra.mxu0 %v899
        %v1000 = vpop.f32.mrf.mxu0
        %v1001 = vadd.f32 0.0, %v1000
        %1002 = vmatmul.f32.gmra.mxu0 %v901
        %v1003 = vpop.f32.mrf.mxu0
        %v1004 = vadd.f32 0.0, %v1003
        %1005 = vmatmul.f32.gmra.mxu0 %v903
        %v1006 = vpop.f32.mrf.mxu0
        %v1007 = vadd.f32 0.0, %v1006
        %1008 = vmatmul.f32.gmra.mxu0 %v905
        %v1009 = vpop.f32.mrf.mxu0
        %v1010 = vadd.f32 0.0, %v1009
        %1011 = vmatmul.f32.gmra.mxu0 %v907
        %v1012 = vpop.f32.mrf.mxu0
        %v1013 = vadd.f32 0.0, %v1012
        %1014 = vmatmul.f32.gmra.mxu0 %v909
        %v1015 = vpop.f32.mrf.mxu0
        %v1016 = vadd.f32 0.0, %v1015
        %1017 = vmatmul.f32.gmra.mxu0 %v911
        %v1018 = vpop.f32.mrf.mxu0
        %v1019 = vadd.f32 0.0, %v1018
        %1020 = vmatmul.f32.gmra.mxu0 %v913
        %v1021 = vpop.f32.mrf.mxu0
        %v1022 = vadd.f32 0.0, %v1021
        %1023 = vmatmul.f32.gmra.mxu0 %v915
        %v1024 = vpop.f32.mrf.mxu0
        %v1025 = vadd.f32 0.0, %v1024
        %1026 = vmatmul.f32.gmra.mxu0 %v917
        %v1027 = vpop.f32.mrf.mxu0
        %v1028 = vadd.f32 0.0, %v1027
        %1029 = vmatmul.f32.gmra.mxu0 %v919
        %v1030 = vpop.f32.mrf.mxu0
        %v1031 = vadd.f32 0.0, %v1030
        %1032 = vmatmul.f32.gmra.mxu0 %v921
        %v1033 = vpop.f32.mrf.mxu0
        %v1034 = vadd.f32 0.0, %v1033
        %1035 = vmatmul.f32.gmra.mxu0 %v923
        %v1036 = vpop.f32.mrf.mxu0
        %v1037 = vadd.f32 0.0, %v1036
        %1038 = vmatmul.f32.gmra.mxu0 %v925
        %v1039 = vpop.f32.mrf.mxu0
        %v1040 = vadd.f32 0.0, %v1039
        %1041 = vmatmul.f32.gmra.mxu0 %v927
        %v1042 = vpop.f32.mrf.mxu0
        %v1043 = vadd.f32 0.0, %v1042
        %1044 = vdwg.mxu0
        %v1045 = vadd.f32 %v709, %v950
        %v1046 = vadd.f32 %v712, %v953
        %v1047 = vadd.f32 %v715, %v956
        %v1048 = vadd.f32 %v718, %v959
        %v1049 = vadd.f32 %v721, %v962
        %v1050 = vadd.f32 %v724, %v965
        %v1051 = vadd.f32 %v727, %v968
        %v1052 = vadd.f32 %v730, %v971
        %v1053 = vadd.f32 %v733, %v974
        %v1054 = vadd.f32 %v736, %v977
        %v1055 = vadd.f32 %v739, %v980
        %v1056 = vadd.f32 %v742, %v983
        %v1057 = vadd.f32 %v745, %v986
        %v1058 = vadd.f32 %v748, %v989
        %v1059 = vadd.f32 %v751, %v992
        %v1060 = vadd.f32 %v754, %v995
        %v1061 = vadd.f32 %v757, %v998
        %v1062 = vadd.f32 %v760, %v1001
        %v1063 = vadd.f32 %v763, %v1004
        %v1064 = vadd.f32 %v766, %v1007
        %v1065 = vadd.f32 %v769, %v1010
        %v1066 = vadd.f32 %v772, %v1013
        %v1067 = vadd.f32 %v775, %v1016
        %v1068 = vadd.f32 %v778, %v1019
        %v1069 = vadd.f32 %v781, %v1022
        %v1070 = vadd.f32 %v784, %v1025
        %v1071 = vadd.f32 %v787, %v1028
        %v1072 = vadd.f32 %v790, %v1031
        %v1073 = vadd.f32 %v793, %v1034
        %v1074 = vadd.f32 %v796, %v1037
        %v1075 = vadd.f32 %v799, %v1040
        %v1076 = vadd.f32 %v802, %v1043
        %v1079 = vrot.slane %v340, 7
        %v1080 = vsel %vm383, %v384, %v1079
        %v1081 = vrot.slane %v341, 7
        %v1082 = vsel %vm383, %v1079, %v1081
        %v1083 = vsel %vm446, %v1080, 0
        %v1085 = vsel %vm446, %v1082, 0
        %v1088 = vsel %vm509, %v345, 0
        %1090 = vmatpush.msra.mxu0 0.0
        %1091 = vmatpush.msra.mxu0 0.0
        %1092 = vmatpush.msra.mxu0 0.0
        %1093 = vmatpush.msra.mxu0 0.0
        %1094 = vmatpush.msra.mxu0 0.0
        %1095 = vmatpush.msra.mxu0 0.0
        %1096 = vmatpush.msra.mxu0 0.0
        %1097 = vmatpush.msra.mxu0 0.0
        %1098 = vmatpush.msra.mxu0 0.0
        %1099 = vmatpush.msra.mxu0 0.0
        %1100 = vmatpush.msra.mxu0 0.0
        %1101 = vmatpush.msra.mxu0 0.0
        %1102 = vmatpush.msra.mxu0 0.0
        %1103 = vmatpush.msra.mxu0 0.0
        %1104 = vmatpush.msra.mxu0 0.0
        %1105 = vmatpush.msra.mxu0 %v1088
        %1106 = vmatmul.f32.gmra.mxu0 %v628
        %v1107 = vpop.f32.mrf.mxu0
        %v1108 = vadd.f32 0.0, %v1107
        %1109 = vmatmul.f32.gmra.mxu0 %v630
        %v1110 = vpop.f32.mrf.mxu0
        %v1111 = vadd.f32 0.0, %v1110
        %1112 = vmatmul.f32.gmra.mxu0 %v632
        %v1113 = vpop.f32.mrf.mxu0
        %v1114 = vadd.f32 0.0, %v1113
        %1115 = vmatmul.f32.gmra.mxu0 %v634
        %v1116 = vpop.f32.mrf.mxu0
        %v1117 = vadd.f32 0.0, %v1116
        %1118 = vmatmul.f32.gmra.mxu0 %v636
        %v1119 = vpop.f32.mrf.mxu0
        %v1120 = vadd.f32 0.0, %v1119
        %1121 = vmatmul.f32.gmra.mxu0 %v638
        %v1122 = vpop.f32.mrf.mxu0
        %v1123 = vadd.f32 0.0, %v1122
        %1124 = vmatmul.f32.gmra.mxu0 %v640
        %v1125 = vpop.f32.mrf.mxu0
        %v1126 = vadd.f32 0.0, %v1125
        %1127 = vmatmul.f32.gmra.mxu0 %v642
        %v1128 = vpop.f32.mrf.mxu0
        %v1129 = vadd.f32 0.0, %v1128
        %1130 = vmatmul.f32.gmra.mxu0 %v644
        %v1131 = vpop.f32.mrf.mxu0
        %v1132 = vadd.f32 0.0, %v1131
        %1133 = vmatmul.f32.gmra.mxu0 %v646
        %v1134 = vpop.f32.mrf.mxu0
        %v1135 = vadd.f32 0.0, %v1134
        %1136 = vmatmul.f32.gmra.mxu0 %v648
        %v1137 = vpop.f32.mrf.mxu0
        %v1138 = vadd.f32 0.0, %v1137
        %1139 = vmatmul.f32.gmra.mxu0 %v650
        %v1140 = vpop.f32.mrf.mxu0
        %v1141 = vadd.f32 0.0, %v1140
        %1142 = vmatmul.f32.gmra.mxu0 %v652
        %v1143 = vpop.f32.mrf.mxu0
        %v1144 = vadd.f32 0.0, %v1143
        %1145 = vmatmul.f32.gmra.mxu0 %v654
        %v1146 = vpop.f32.mrf.mxu0
        %v1147 = vadd.f32 0.0, %v1146
        %1148 = vmatmul.f32.gmra.mxu0 %v656
        %v1149 = vpop.f32.mrf.mxu0
        %v1150 = vadd.f32 0.0, %v1149
        %1151 = vmatmul.f32.gmra.mxu0 %v658
        %v1152 = vpop.f32.mrf.mxu0
        %v1153 = vadd.f32 0.0, %v1152
        %1154 = vmatmul.f32.gmra.mxu0 %v660
        %v1155 = vpop.f32.mrf.mxu0
        %v1156 = vadd.f32 0.0, %v1155
        %1157 = vmatmul.f32.gmra.mxu0 %v662
        %v1158 = vpop.f32.mrf.mxu0
        %v1159 = vadd.f32 0.0, %v1158
        %1160 = vmatmul.f32.gmra.mxu0 %v664
        %v1161 = vpop.f32.mrf.mxu0
        %v1162 = vadd.f32 0.0, %v1161
        %1163 = vmatmul.f32.gmra.mxu0 %v666
        %v1164 = vpop.f32.mrf.mxu0
        %v1165 = vadd.f32 0.0, %v1164
        %1166 = vmatmul.f32.gmra.mxu0 %v668
        %v1167 = vpop.f32.mrf.mxu0
        %v1168 = vadd.f32 0.0, %v1167
        %1169 = vmatmul.f32.gmra.mxu0 %v670
        %v1170 = vpop.f32.mrf.mxu0
        %v1171 = vadd.f32 0.0, %v1170
        %1172 = vmatmul.f32.gmra.mxu0 %v672
        %v1173 = vpop.f32.mrf.mxu0
        %v1174 = vadd.f32 0.0, %v1173
        %1175 = vmatmul.f32.gmra.mxu0 %v674
        %v1176 = vpop.f32.mrf.mxu0
        %v1177 = vadd.f32 0.0, %v1176
        %1178 = vmatmul.f32.gmra.mxu0 %v676
        %v1179 = vpop.f32.mrf.mxu0
        %v1180 = vadd.f32 0.0, %v1179
        %1181 = vmatmul.f32.gmra.mxu0 %v678
        %v1182 = vpop.f32.mrf.mxu0
        %v1183 = vadd.f32 0.0, %v1182
        %1184 = vmatmul.f32.gmra.mxu0 %v680
        %v1185 = vpop.f32.mrf.mxu0
        %v1186 = vadd.f32 0.0, %v1185
        %1187 = vmatmul.f32.gmra.mxu0 %v682
        %v1188 = vpop.f32.mrf.mxu0
        %v1189 = vadd.f32 0.0, %v1188
        %1190 = vmatmul.f32.gmra.mxu0 %v684
        %v1191 = vpop.f32.mrf.mxu0
        %v1192 = vadd.f32 0.0, %v1191
        %1193 = vmatmul.f32.gmra.mxu0 %v686
        %v1194 = vpop.f32.mrf.mxu0
        %v1195 = vadd.f32 0.0, %v1194
        %1196 = vmatmul.f32.gmra.mxu0 %v1083
        %v1197 = vpop.f32.mrf.mxu0
        %v1198 = vadd.f32 0.0, %v1197
        %1199 = vmatmul.f32.gmra.mxu0 %v1085
        %v1200 = vpop.f32.mrf.mxu0
        %v1201 = vadd.f32 0.0, %v1200
        %1202 = vdwg.mxu0
        %v1203 = vadd.f32 %v1045, %v1108
        %v1204 = vadd.f32 %v1046, %v1111
        %v1205 = vadd.f32 %v1047, %v1114
        %v1206 = vadd.f32 %v1048, %v1117
        %v1207 = vadd.f32 %v1049, %v1120
        %v1208 = vadd.f32 %v1050, %v1123
        %v1209 = vadd.f32 %v1051, %v1126
        %v1210 = vadd.f32 %v1052, %v1129
        %v1211 = vadd.f32 %v1053, %v1132
        %v1212 = vadd.f32 %v1054, %v1135
        %v1213 = vadd.f32 %v1055, %v1138
        %v1214 = vadd.f32 %v1056, %v1141
        %v1215 = vadd.f32 %v1057, %v1144
        %v1216 = vadd.f32 %v1058, %v1147
        %v1217 = vadd.f32 %v1059, %v1150
        %v1218 = vadd.f32 %v1060, %v1153
        %v1219 = vadd.f32 %v1061, %v1156
        %v1220 = vadd.f32 %v1062, %v1159
        %v1221 = vadd.f32 %v1063, %v1162
        %v1222 = vadd.f32 %v1064, %v1165
        %v1223 = vadd.f32 %v1065, %v1168
        %v1224 = vadd.f32 %v1066, %v1171
        %v1225 = vadd.f32 %v1067, %v1174
        %v1226 = vadd.f32 %v1068, %v1177
        %v1227 = vadd.f32 %v1069, %v1180
        %v1228 = vadd.f32 %v1070, %v1183
        %v1229 = vadd.f32 %v1071, %v1186
        %v1230 = vadd.f32 %v1072, %v1189
        %v1231 = vadd.f32 %v1073, %v1192
        %v1232 = vadd.f32 %v1074, %v1195
        %v1233 = vadd.f32 %v1075, %v1198
        %v1234 = vadd.f32 %v1076, %v1201
        %v1235 = vsel %vm446, %v340, 0
        %v1237 = vsel %vm446, %v341, 0
        %v1240 = vsel %vm509, %v346, 0
        %1242 = vmatpush.msra.mxu0 0.0
        %1243 = vmatpush.msra.mxu0 0.0
        %1244 = vmatpush.msra.mxu0 0.0
        %1245 = vmatpush.msra.mxu0 0.0
        %1246 = vmatpush.msra.mxu0 0.0
        %1247 = vmatpush.msra.mxu0 0.0
        %1248 = vmatpush.msra.mxu0 0.0
        %1249 = vmatpush.msra.mxu0 0.0
        %1250 = vmatpush.msra.mxu0 0.0
        %1251 = vmatpush.msra.mxu0 0.0
        %1252 = vmatpush.msra.mxu0 0.0
        %1253 = vmatpush.msra.mxu0 0.0
        %1254 = vmatpush.msra.mxu0 0.0
        %1255 = vmatpush.msra.mxu0 0.0
        %1256 = vmatpush.msra.mxu0 0.0
        %1257 = vmatpush.msra.mxu0 %v1240
        %1258 = vmatmul.f32.gmra.mxu0 %v449
        %v1259 = vpop.f32.mrf.mxu0
        %v1260 = vadd.f32 0.0, %v1259
        %1261 = vmatmul.f32.gmra.mxu0 %v451
        %v1262 = vpop.f32.mrf.mxu0
        %v1263 = vadd.f32 0.0, %v1262
        %1264 = vmatmul.f32.gmra.mxu0 %v453
        %v1265 = vpop.f32.mrf.mxu0
        %v1266 = vadd.f32 0.0, %v1265
        %1267 = vmatmul.f32.gmra.mxu0 %v455
        %v1268 = vpop.f32.mrf.mxu0
        %v1269 = vadd.f32 0.0, %v1268
        %1270 = vmatmul.f32.gmra.mxu0 %v457
        %v1271 = vpop.f32.mrf.mxu0
        %v1272 = vadd.f32 0.0, %v1271
        %1273 = vmatmul.f32.gmra.mxu0 %v459
        %v1274 = vpop.f32.mrf.mxu0
        %v1275 = vadd.f32 0.0, %v1274
        %1276 = vmatmul.f32.gmra.mxu0 %v461
        %v1277 = vpop.f32.mrf.mxu0
        %v1278 = vadd.f32 0.0, %v1277
        %1279 = vmatmul.f32.gmra.mxu0 %v463
        %v1280 = vpop.f32.mrf.mxu0
        %v1281 = vadd.f32 0.0, %v1280
        %1282 = vmatmul.f32.gmra.mxu0 %v465
        %v1283 = vpop.f32.mrf.mxu0
        %v1284 = vadd.f32 0.0, %v1283
        %1285 = vmatmul.f32.gmra.mxu0 %v467
        %v1286 = vpop.f32.mrf.mxu0
        %v1287 = vadd.f32 0.0, %v1286
        %1288 = vmatmul.f32.gmra.mxu0 %v469
        %v1289 = vpop.f32.mrf.mxu0
        %v1290 = vadd.f32 0.0, %v1289
        %1291 = vmatmul.f32.gmra.mxu0 %v471
        %v1292 = vpop.f32.mrf.mxu0
        %v1293 = vadd.f32 0.0, %v1292
        %1294 = vmatmul.f32.gmra.mxu0 %v473
        %v1295 = vpop.f32.mrf.mxu0
        %v1296 = vadd.f32 0.0, %v1295
        %1297 = vmatmul.f32.gmra.mxu0 %v475
        %v1298 = vpop.f32.mrf.mxu0
        %v1299 = vadd.f32 0.0, %v1298
        %1300 = vmatmul.f32.gmra.mxu0 %v477
        %v1301 = vpop.f32.mrf.mxu0
        %v1302 = vadd.f32 0.0, %v1301
        %1303 = vmatmul.f32.gmra.mxu0 %v479
        %v1304 = vpop.f32.mrf.mxu0
        %v1305 = vadd.f32 0.0, %v1304
        %1306 = vmatmul.f32.gmra.mxu0 %v481
        %v1307 = vpop.f32.mrf.mxu0
        %v1308 = vadd.f32 0.0, %v1307
        %1309 = vmatmul.f32.gmra.mxu0 %v483
        %v1310 = vpop.f32.mrf.mxu0
        %v1311 = vadd.f32 0.0, %v1310
        %1312 = vmatmul.f32.gmra.mxu0 %v485
        %v1313 = vpop.f32.mrf.mxu0
        %v1314 = vadd.f32 0.0, %v1313
        %1315 = vmatmul.f32.gmra.mxu0 %v487
        %v1316 = vpop.f32.mrf.mxu0
        %v1317 = vadd.f32 0.0, %v1316
        %1318 = vmatmul.f32.gmra.mxu0 %v489
        %v1319 = vpop.f32.mrf.mxu0
        %v1320 = vadd.f32 0.0, %v1319
        %1321 = vmatmul.f32.gmra.mxu0 %v491
        %v1322 = vpop.f32.mrf.mxu0
        %v1323 = vadd.f32 0.0, %v1322
        %1324 = vmatmul.f32.gmra.mxu0 %v493
        %v1325 = vpop.f32.mrf.mxu0
        %v1326 = vadd.f32 0.0, %v1325
        %1327 = vmatmul.f32.gmra.mxu0 %v495
        %v1328 = vpop.f32.mrf.mxu0
        %v1329 = vadd.f32 0.0, %v1328
        %1330 = vmatmul.f32.gmra.mxu0 %v497
        %v1331 = vpop.f32.mrf.mxu0
        %v1332 = vadd.f32 0.0, %v1331
        %1333 = vmatmul.f32.gmra.mxu0 %v499
        %v1334 = vpop.f32.mrf.mxu0
        %v1335 = vadd.f32 0.0, %v1334
        %1336 = vmatmul.f32.gmra.mxu0 %v501
        %v1337 = vpop.f32.mrf.mxu0
        %v1338 = vadd.f32 0.0, %v1337
        %1339 = vmatmul.f32.gmra.mxu0 %v503
        %v1340 = vpop.f32.mrf.mxu0
        %v1341 = vadd.f32 0.0, %v1340
        %1342 = vmatmul.f32.gmra.mxu0 %v505
        %v1343 = vpop.f32.mrf.mxu0
        %v1344 = vadd.f32 0.0, %v1343
        %1345 = vmatmul.f32.gmra.mxu0 %v507
        %v1346 = vpop.f32.mrf.mxu0
        %v1347 = vadd.f32 0.0, %v1346
        %1348 = vmatmul.f32.gmra.mxu0 %v1235
        %v1349 = vpop.f32.mrf.mxu0
        %v1350 = vadd.f32 0.0, %v1349
        %1351 = vmatmul.f32.gmra.mxu0 %v1237
        %v1352 = vpop.f32.mrf.mxu0
        %v1353 = vadd.f32 0.0, %v1352
        %1354 = vdwg.mxu0
        %v1355 = vadd.f32 %v1203, %v1260
        %v1356 = vadd.f32 %v1204, %v1263
        %v1357 = vadd.f32 %v1205, %v1266
        %v1358 = vadd.f32 %v1206, %v1269
        %v1359 = vadd.f32 %v1207, %v1272
        %v1360 = vadd.f32 %v1208, %v1275
        %v1361 = vadd.f32 %v1209, %v1278
        %v1362 = vadd.f32 %v1210, %v1281
        %v1363 = vadd.f32 %v1211, %v1284
        %v1364 = vadd.f32 %v1212, %v1287
        %v1365 = vadd.f32 %v1213, %v1290
        %v1366 = vadd.f32 %v1214, %v1293
        %v1367 = vadd.f32 %v1215, %v1296
        %v1368 = vadd.f32 %v1216, %v1299
        %v1369 = vadd.f32 %v1217, %v1302
        %v1370 = vadd.f32 %v1218, %v1305
        %v1371 = vadd.f32 %v1219, %v1308
        %v1372 = vadd.f32 %v1220, %v1311
        %v1373 = vadd.f32 %v1221, %v1314
        %v1374 = vadd.f32 %v1222, %v1317
        %v1375 = vadd.f32 %v1223, %v1320
        %v1376 = vadd.f32 %v1224, %v1323
        %v1377 = vadd.f32 %v1225, %v1326
        %v1378 = vadd.f32 %v1226, %v1329
        %v1379 = vadd.f32 %v1227, %v1332
        %v1380 = vadd.f32 %v1228, %v1335
        %v1381 = vadd.f32 %v1229, %v1338
        %v1382 = vadd.f32 %v1230, %v1341
        %v1383 = vadd.f32 %v1231, %v1344
        %v1384 = vadd.f32 %v1232, %v1347
        %v1385 = vadd.f32 %v1233, %v1350
        %v1386 = vadd.f32 %v1234, %v1353
        %v1387 = vrot.slane %v340, 1
        %v1388 = vrot.slane %v341, 1
        %v1389 = vsel %vm804, %v1387, %v1388
        %v1390 = vsel %vm804, %v1388, %v805
        %v1391 = vsel %vm446, %v1389, 0
        %v1393 = vsel %vm446, %v1390, 0
        %v1396 = vsel %vm509, %v347, 0
        %1398 = vmatpush.msra.mxu0 0.0
        %1399 = vmatpush.msra.mxu0 0.0
        %1400 = vmatpush.msra.mxu0 0.0
        %1401 = vmatpush.msra.mxu0 0.0
        %1402 = vmatpush.msra.mxu0 0.0
        %1403 = vmatpush.msra.mxu0 0.0
        %1404 = vmatpush.msra.mxu0 0.0
        %1405 = vmatpush.msra.mxu0 0.0
        %1406 = vmatpush.msra.mxu0 0.0
        %1407 = vmatpush.msra.mxu0 0.0
        %1408 = vmatpush.msra.mxu0 0.0
        %1409 = vmatpush.msra.mxu0 0.0
        %1410 = vmatpush.msra.mxu0 0.0
        %1411 = vmatpush.msra.mxu0 0.0
        %1412 = vmatpush.msra.mxu0 0.0
        %1413 = vmatpush.msra.mxu0 %v1396
        %1414 = vmatmul.f32.gmra.mxu0 %v869
        %v1415 = vpop.f32.mrf.mxu0
        %v1416 = vadd.f32 0.0, %v1415
        %1417 = vmatmul.f32.gmra.mxu0 %v871
        %v1418 = vpop.f32.mrf.mxu0
        %v1419 = vadd.f32 0.0, %v1418
        %1420 = vmatmul.f32.gmra.mxu0 %v873
        %v1421 = vpop.f32.mrf.mxu0
        %v1422 = vadd.f32 0.0, %v1421
        %1423 = vmatmul.f32.gmra.mxu0 %v875
        %v1424 = vpop.f32.mrf.mxu0
        %v1425 = vadd.f32 0.0, %v1424
        %1426 = vmatmul.f32.gmra.mxu0 %v877
        %v1427 = vpop.f32.mrf.mxu0
        %v1428 = vadd.f32 0.0, %v1427
        %1429 = vmatmul.f32.gmra.mxu0 %v879
        %v1430 = vpop.f32.mrf.mxu0
        %v1431 = vadd.f32 0.0, %v1430
        %1432 = vmatmul.f32.gmra.mxu0 %v881
        %v1433 = vpop.f32.mrf.mxu0
        %v1434 = vadd.f32 0.0, %v1433
        %1435 = vmatmul.f32.gmra.mxu0 %v883
        %v1436 = vpop.f32.mrf.mxu0
        %v1437 = vadd.f32 0.0, %v1436
        %1438 = vmatmul.f32.gmra.mxu0 %v885
        %v1439 = vpop.f32.mrf.mxu0
        %v1440 = vadd.f32 0.0, %v1439
        %1441 = vmatmul.f32.gmra.mxu0 %v887
        %v1442 = vpop.f32.mrf.mxu0
        %v1443 = vadd.f32 0.0, %v1442
        %1444 = vmatmul.f32.gmra.mxu0 %v889
        %v1445 = vpop.f32.mrf.mxu0
        %v1446 = vadd.f32 0.0, %v1445
        %1447 = vmatmul.f32.gmra.mxu0 %v891
        %v1448 = vpop.f32.mrf.mxu0
        %v1449 = vadd.f32 0.0, %v1448
        %1450 = vmatmul.f32.gmra.mxu0 %v893
        %v1451 = vpop.f32.mrf.mxu0
        %v1452 = vadd.f32 0.0, %v1451
        %1453 = vmatmul.f32.gmra.mxu0 %v895
        %v1454 = vpop.f32.mrf.mxu0
        %v1455 = vadd.f32 0.0, %v1454
        %1456 = vmatmul.f32.gmra.mxu0 %v897
        %v1457 = vpop.f32.mrf.mxu0
        %v1458 = vadd.f32 0.0, %v1457
        %1459 = vmatmul.f32.gmra.mxu0 %v899
        %v1460 = vpop.f32.mrf.mxu0
        %v1461 = vadd.f32 0.0, %v1460
        %1462 = vmatmul.f32.gmra.mxu0 %v901
        %v1463 = vpop.f32.mrf.mxu0
        %v1464 = vadd.f32 0.0, %v1463
        %1465 = vmatmul.f32.gmra.mxu0 %v903
        %v1466 = vpop.f32.mrf.mxu0
        %v1467 = vadd.f32 0.0, %v1466
        %1468 = vmatmul.f32.gmra.mxu0 %v905
        %v1469 = vpop.f32.mrf.mxu0
        %v1470 = vadd.f32 0.0, %v1469
        %1471 = vmatmul.f32.gmra.mxu0 %v907
        %v1472 = vpop.f32.mrf.mxu0
        %v1473 = vadd.f32 0.0, %v1472
        %1474 = vmatmul.f32.gmra.mxu0 %v909
        %v1475 = vpop.f32.mrf.mxu0
        %v1476 = vadd.f32 0.0, %v1475
        %1477 = vmatmul.f32.gmra.mxu0 %v911
        %v1478 = vpop.f32.mrf.mxu0
        %v1479 = vadd.f32 0.0, %v1478
        %1480 = vmatmul.f32.gmra.mxu0 %v913
        %v1481 = vpop.f32.mrf.mxu0
        %v1482 = vadd.f32 0.0, %v1481
        %1483 = vmatmul.f32.gmra.mxu0 %v915
        %v1484 = vpop.f32.mrf.mxu0
        %v1485 = vadd.f32 0.0, %v1484
        %1486 = vmatmul.f32.gmra.mxu0 %v917
        %v1487 = vpop.f32.mrf.mxu0
        %v1488 = vadd.f32 0.0, %v1487
        %1489 = vmatmul.f32.gmra.mxu0 %v919
        %v1490 = vpop.f32.mrf.mxu0
        %v1491 = vadd.f32 0.0, %v1490
        %1492 = vmatmul.f32.gmra.mxu0 %v921
        %v1493 = vpop.f32.mrf.mxu0
        %v1494 = vadd.f32 0.0, %v1493
        %1495 = vmatmul.f32.gmra.mxu0 %v923
        %v1496 = vpop.f32.mrf.mxu0
        %v1497 = vadd.f32 0.0, %v1496
        %1498 = vmatmul.f32.gmra.mxu0 %v925
        %v1499 = vpop.f32.mrf.mxu0
        %v1500 = vadd.f32 0.0, %v1499
        %1501 = vmatmul.f32.gmra.mxu0 %v927
        %v1502 = vpop.f32.mrf.mxu0
        %v1503 = vadd.f32 0.0, %v1502
        %1504 = vmatmul.f32.gmra.mxu0 %v1391
        %v1505 = vpop.f32.mrf.mxu0
        %v1506 = vadd.f32 0.0, %v1505
        %1507 = vmatmul.f32.gmra.mxu0 %v1393
        %v1508 = vpop.f32.mrf.mxu0
        %v1509 = vadd.f32 0.0, %v1508
        %1510 = vdwg.mxu0
        %v1511 = vadd.f32 %v1355, %v1416
        %v1512 = vadd.f32 %v1356, %v1419
        %v1513 = vadd.f32 %v1357, %v1422
        %v1514 = vadd.f32 %v1358, %v1425
        %v1515 = vadd.f32 %v1359, %v1428
        %v1516 = vadd.f32 %v1360, %v1431
        %v1517 = vadd.f32 %v1361, %v1434
        %v1518 = vadd.f32 %v1362, %v1437
        %v1519 = vadd.f32 %v1363, %v1440
        %v1520 = vadd.f32 %v1364, %v1443
        %v1521 = vadd.f32 %v1365, %v1446
        %v1522 = vadd.f32 %v1366, %v1449
        %v1523 = vadd.f32 %v1367, %v1452
        %v1524 = vadd.f32 %v1368, %v1455
        %v1525 = vadd.f32 %v1369, %v1458
        %v1526 = vadd.f32 %v1370, %v1461
        %v1527 = vadd.f32 %v1371, %v1464
        %v1528 = vadd.f32 %v1372, %v1467
        %v1529 = vadd.f32 %v1373, %v1470
        %v1530 = vadd.f32 %v1374, %v1473
        %v1531 = vadd.f32 %v1375, %v1476
        %v1532 = vadd.f32 %v1376, %v1479
        %v1533 = vadd.f32 %v1377, %v1482
        %v1534 = vadd.f32 %v1378, %v1485
        %v1535 = vadd.f32 %v1379, %v1488
        %v1536 = vadd.f32 %v1380, %v1491
        %v1537 = vadd.f32 %v1381, %v1494
        %v1538 = vadd.f32 %v1382, %v1497
        %v1539 = vadd.f32 %v1383, %v1500
        %v1540 = vadd.f32 %v1384, %v1503
        %v1541 = vadd.f32 %v1385, %v1506
        %v1542 = vadd.f32 %v1386, %v1509
        %v1544 = vsel %vm509, %v348, 0
        %1546 = vmatpush.msra.mxu0 0.0
        %1547 = vmatpush.msra.mxu0 0.0
        %1548 = vmatpush.msra.mxu0 0.0
        %1549 = vmatpush.msra.mxu0 0.0
        %1550 = vmatpush.msra.mxu0 0.0
        %1551 = vmatpush.msra.mxu0 0.0
        %1552 = vmatpush.msra.mxu0 0.0
        %1553 = vmatpush.msra.mxu0 0.0
        %1554 = vmatpush.msra.mxu0 0.0
        %1555 = vmatpush.msra.mxu0 0.0
        %1556 = vmatpush.msra.mxu0 0.0
        %1557 = vmatpush.msra.mxu0 0.0
        %1558 = vmatpush.msra.mxu0 0.0
        %1559 = vmatpush.msra.mxu0 0.0
        %1560 = vmatpush.msra.mxu0 0.0
        %1561 = vmatpush.msra.mxu0 %v1544
        %1562 = vmatmul.f32.gmra.mxu0 %v632
        %v1563 = vpop.f32.mrf.mxu0
        %v1564 = vadd.f32 0.0, %v1563
        %1565 = vmatmul.f32.gmra.mxu0 %v634
        %v1566 = vpop.f32.mrf.mxu0
        %v1567 = vadd.f32 0.0, %v1566
        %1568 = vmatmul.f32.gmra.mxu0 %v636
        %v1569 = vpop.f32.mrf.mxu0
        %v1570 = vadd.f32 0.0, %v1569
        %1571 = vmatmul.f32.gmra.mxu0 %v638
        %v1572 = vpop.f32.mrf.mxu0
        %v1573 = vadd.f32 0.0, %v1572
        %1574 = vmatmul.f32.gmra.mxu0 %v640
        %v1575 = vpop.f32.mrf.mxu0
        %v1576 = vadd.f32 0.0, %v1575
        %1577 = vmatmul.f32.gmra.mxu0 %v642
        %v1578 = vpop.f32.mrf.mxu0
        %v1579 = vadd.f32 0.0, %v1578
        %1580 = vmatmul.f32.gmra.mxu0 %v644
        %v1581 = vpop.f32.mrf.mxu0
        %v1582 = vadd.f32 0.0, %v1581
        %1583 = vmatmul.f32.gmra.mxu0 %v646
        %v1584 = vpop.f32.mrf.mxu0
        %v1585 = vadd.f32 0.0, %v1584
        %1586 = vmatmul.f32.gmra.mxu0 %v648
        %v1587 = vpop.f32.mrf.mxu0
        %v1588 = vadd.f32 0.0, %v1587
        %1589 = vmatmul.f32.gmra.mxu0 %v650
        %v1590 = vpop.f32.mrf.mxu0
        %v1591 = vadd.f32 0.0, %v1590
        %1592 = vmatmul.f32.gmra.mxu0 %v652
        %v1593 = vpop.f32.mrf.mxu0
        %v1594 = vadd.f32 0.0, %v1593
        %1595 = vmatmul.f32.gmra.mxu0 %v654
        %v1596 = vpop.f32.mrf.mxu0
        %v1597 = vadd.f32 0.0, %v1596
        %1598 = vmatmul.f32.gmra.mxu0 %v656
        %v1599 = vpop.f32.mrf.mxu0
        %v1600 = vadd.f32 0.0, %v1599
        %1601 = vmatmul.f32.gmra.mxu0 %v658
        %v1602 = vpop.f32.mrf.mxu0
        %v1603 = vadd.f32 0.0, %v1602
        %1604 = vmatmul.f32.gmra.mxu0 %v660
        %v1605 = vpop.f32.mrf.mxu0
        %v1606 = vadd.f32 0.0, %v1605
        %1607 = vmatmul.f32.gmra.mxu0 %v662
        %v1608 = vpop.f32.mrf.mxu0
        %v1609 = vadd.f32 0.0, %v1608
        %1610 = vmatmul.f32.gmra.mxu0 %v664
        %v1611 = vpop.f32.mrf.mxu0
        %v1612 = vadd.f32 0.0, %v1611
        %1613 = vmatmul.f32.gmra.mxu0 %v666
        %v1614 = vpop.f32.mrf.mxu0
        %v1615 = vadd.f32 0.0, %v1614
        %1616 = vmatmul.f32.gmra.mxu0 %v668
        %v1617 = vpop.f32.mrf.mxu0
        %v1618 = vadd.f32 0.0, %v1617
        %1619 = vmatmul.f32.gmra.mxu0 %v670
        %v1620 = vpop.f32.mrf.mxu0
        %v1621 = vadd.f32 0.0, %v1620
        %1622 = vmatmul.f32.gmra.mxu0 %v672
        %v1623 = vpop.f32.mrf.mxu0
        %v1624 = vadd.f32 0.0, %v1623
        %1625 = vmatmul.f32.gmra.mxu0 %v674
        %v1626 = vpop.f32.mrf.mxu0
        %v1627 = vadd.f32 0.0, %v1626
        %1628 = vmatmul.f32.gmra.mxu0 %v676
        %v1629 = vpop.f32.mrf.mxu0
        %v1630 = vadd.f32 0.0, %v1629
        %1631 = vmatmul.f32.gmra.mxu0 %v678
        %v1632 = vpop.f32.mrf.mxu0
        %v1633 = vadd.f32 0.0, %v1632
        %1634 = vmatmul.f32.gmra.mxu0 %v680
        %v1635 = vpop.f32.mrf.mxu0
        %v1636 = vadd.f32 0.0, %v1635
        %1637 = vmatmul.f32.gmra.mxu0 %v682
        %v1638 = vpop.f32.mrf.mxu0
        %v1639 = vadd.f32 0.0, %v1638
        %1640 = vmatmul.f32.gmra.mxu0 %v684
        %v1641 = vpop.f32.mrf.mxu0
        %v1642 = vadd.f32 0.0, %v1641
        %1643 = vmatmul.f32.gmra.mxu0 %v686
        %v1644 = vpop.f32.mrf.mxu0
        %v1645 = vadd.f32 0.0, %v1644
        %1646 = vmatmul.f32.gmra.mxu0 %v1083
        %v1647 = vpop.f32.mrf.mxu0
        %v1648 = vadd.f32 0.0, %v1647
        %1649 = vmatmul.f32.gmra.mxu0 %v1085
        %v1650 = vpop.f32.mrf.mxu0
        %v1651 = vadd.f32 0.0, %v1650
        %1652 = vmatmul.f32.gmra.mxu0 %v626
        %v1653 = vpop.f32.mrf.mxu0
        %v1654 = vadd.f32 0.0, %v1653
        %1655 = vmatmul.f32.gmra.mxu0 %v626
        %v1656 = vpop.f32.mrf.mxu0
        %v1657 = vadd.f32 0.0, %v1656
        %1658 = vdwg.mxu0
        %v1659 = vadd.f32 %v1511, %v1564
        %v1660 = vadd.f32 %v1512, %v1567
        %v1661 = vadd.f32 %v1513, %v1570
        %v1662 = vadd.f32 %v1514, %v1573
        %v1663 = vadd.f32 %v1515, %v1576
        %v1664 = vadd.f32 %v1516, %v1579
        %v1665 = vadd.f32 %v1517, %v1582
        %v1666 = vadd.f32 %v1518, %v1585
        %v1667 = vadd.f32 %v1519, %v1588
        %v1668 = vadd.f32 %v1520, %v1591
        %v1669 = vadd.f32 %v1521, %v1594
        %v1670 = vadd.f32 %v1522, %v1597
        %v1671 = vadd.f32 %v1523, %v1600
        %v1672 = vadd.f32 %v1524, %v1603
        %v1673 = vadd.f32 %v1525, %v1606
        %v1674 = vadd.f32 %v1526, %v1609
        %v1675 = vadd.f32 %v1527, %v1612
        %v1676 = vadd.f32 %v1528, %v1615
        %v1677 = vadd.f32 %v1529, %v1618
        %v1678 = vadd.f32 %v1530, %v1621
        %v1679 = vadd.f32 %v1531, %v1624
        %v1680 = vadd.f32 %v1532, %v1627
        %v1681 = vadd.f32 %v1533, %v1630
        %v1682 = vadd.f32 %v1534, %v1633
        %v1683 = vadd.f32 %v1535, %v1636
        %v1684 = vadd.f32 %v1536, %v1639
        %v1685 = vadd.f32 %v1537, %v1642
        %v1686 = vadd.f32 %v1538, %v1645
        %v1687 = vadd.f32 %v1539, %v1648
        %v1688 = vadd.f32 %v1540, %v1651
        %v1689 = vadd.f32 %v1541, %v1654
        %v1690 = vadd.f32 %v1542, %v1657
        %v1692 = vsel %vm509, %v349, 0
        %1694 = vmatpush.msra.mxu0 0.0
        %1695 = vmatpush.msra.mxu0 0.0
        %1696 = vmatpush.msra.mxu0 0.0
        %1697 = vmatpush.msra.mxu0 0.0
        %1698 = vmatpush.msra.mxu0 0.0
        %1699 = vmatpush.msra.mxu0 0.0
        %1700 = vmatpush.msra.mxu0 0.0
        %1701 = vmatpush.msra.mxu0 0.0
        %1702 = vmatpush.msra.mxu0 0.0
        %1703 = vmatpush.msra.mxu0 0.0
        %1704 = vmatpush.msra.mxu0 0.0
        %1705 = vmatpush.msra.mxu0 0.0
        %1706 = vmatpush.msra.mxu0 0.0
        %1707 = vmatpush.msra.mxu0 0.0
        %1708 = vmatpush.msra.mxu0 0.0
        %1709 = vmatpush.msra.mxu0 %v1692
        %1710 = vmatmul.f32.gmra.mxu0 %v453
        %v1711 = vpop.f32.mrf.mxu0
        %v1712 = vadd.f32 0.0, %v1711
        %1713 = vmatmul.f32.gmra.mxu0 %v455
        %v1714 = vpop.f32.mrf.mxu0
        %v1715 = vadd.f32 0.0, %v1714
        %1716 = vmatmul.f32.gmra.mxu0 %v457
        %v1717 = vpop.f32.mrf.mxu0
        %v1718 = vadd.f32 0.0, %v1717
        %1719 = vmatmul.f32.gmra.mxu0 %v459
        %v1720 = vpop.f32.mrf.mxu0
        %v1721 = vadd.f32 0.0, %v1720
        %1722 = vmatmul.f32.gmra.mxu0 %v461
        %v1723 = vpop.f32.mrf.mxu0
        %v1724 = vadd.f32 0.0, %v1723
        %1725 = vmatmul.f32.gmra.mxu0 %v463
        %v1726 = vpop.f32.mrf.mxu0
        %v1727 = vadd.f32 0.0, %v1726
        %1728 = vmatmul.f32.gmra.mxu0 %v465
        %v1729 = vpop.f32.mrf.mxu0
        %v1730 = vadd.f32 0.0, %v1729
        %1731 = vmatmul.f32.gmra.mxu0 %v467
        %v1732 = vpop.f32.mrf.mxu0
        %v1733 = vadd.f32 0.0, %v1732
        %1734 = vmatmul.f32.gmra.mxu0 %v469
        %v1735 = vpop.f32.mrf.mxu0
        %v1736 = vadd.f32 0.0, %v1735
        %1737 = vmatmul.f32.gmra.mxu0 %v471
        %v1738 = vpop.f32.mrf.mxu0
        %v1739 = vadd.f32 0.0, %v1738
        %1740 = vmatmul.f32.gmra.mxu0 %v473
        %v1741 = vpop.f32.mrf.mxu0
        %v1742 = vadd.f32 0.0, %v1741
        %1743 = vmatmul.f32.gmra.mxu0 %v475
        %v1744 = vpop.f32.mrf.mxu0
        %v1745 = vadd.f32 0.0, %v1744
        %1746 = vmatmul.f32.gmra.mxu0 %v477
        %v1747 = vpop.f32.mrf.mxu0
        %v1748 = vadd.f32 0.0, %v1747
        %1749 = vmatmul.f32.gmra.mxu0 %v479
        %v1750 = vpop.f32.mrf.mxu0
        %v1751 = vadd.f32 0.0, %v1750
        %1752 = vmatmul.f32.gmra.mxu0 %v481
        %v1753 = vpop.f32.mrf.mxu0
        %v1754 = vadd.f32 0.0, %v1753
        %1755 = vmatmul.f32.gmra.mxu0 %v483
        %v1756 = vpop.f32.mrf.mxu0
        %v1757 = vadd.f32 0.0, %v1756
        %1758 = vmatmul.f32.gmra.mxu0 %v485
        %v1759 = vpop.f32.mrf.mxu0
        %v1760 = vadd.f32 0.0, %v1759
        %1761 = vmatmul.f32.gmra.mxu0 %v487
        %v1762 = vpop.f32.mrf.mxu0
        %v1763 = vadd.f32 0.0, %v1762
        %1764 = vmatmul.f32.gmra.mxu0 %v489
        %v1765 = vpop.f32.mrf.mxu0
        %v1766 = vadd.f32 0.0, %v1765
        %1767 = vmatmul.f32.gmra.mxu0 %v491
        %v1768 = vpop.f32.mrf.mxu0
        %v1769 = vadd.f32 0.0, %v1768
        %1770 = vmatmul.f32.gmra.mxu0 %v493
        %v1771 = vpop.f32.mrf.mxu0
        %v1772 = vadd.f32 0.0, %v1771
        %1773 = vmatmul.f32.gmra.mxu0 %v495
        %v1774 = vpop.f32.mrf.mxu0
        %v1775 = vadd.f32 0.0, %v1774
        %1776 = vmatmul.f32.gmra.mxu0 %v497
        %v1777 = vpop.f32.mrf.mxu0
        %v1778 = vadd.f32 0.0, %v1777
        %1779 = vmatmul.f32.gmra.mxu0 %v499
        %v1780 = vpop.f32.mrf.mxu0
        %v1781 = vadd.f32 0.0, %v1780
        %1782 = vmatmul.f32.gmra.mxu0 %v501
        %v1783 = vpop.f32.mrf.mxu0
        %v1784 = vadd.f32 0.0, %v1783
        %1785 = vmatmul.f32.gmra.mxu0 %v503
        %v1786 = vpop.f32.mrf.mxu0
        %v1787 = vadd.f32 0.0, %v1786
        %1788 = vmatmul.f32.gmra.mxu0 %v505
        %v1789 = vpop.f32.mrf.mxu0
        %v1790 = vadd.f32 0.0, %v1789
        %1791 = vmatmul.f32.gmra.mxu0 %v507
        %v1792 = vpop.f32.mrf.mxu0
        %v1793 = vadd.f32 0.0, %v1792
        %1794 = vmatmul.f32.gmra.mxu0 %v1235
        %v1795 = vpop.f32.mrf.mxu0
        %v1796 = vadd.f32 0.0, %v1795
        %1797 = vmatmul.f32.gmra.mxu0 %v1237
        %v1798 = vpop.f32.mrf.mxu0
        %v1799 = vadd.f32 0.0, %v1798
        %1800 = vmatmul.f32.gmra.mxu0 %v447
        %v1801 = vpop.f32.mrf.mxu0
        %v1802 = vadd.f32 0.0, %v1801
        %1803 = vmatmul.f32.gmra.mxu0 %v447
        %v1804 = vpop.f32.mrf.mxu0
        %v1805 = vadd.f32 0.0, %v1804
        %1806 = vdwg.mxu0
        %v1807 = vadd.f32 %v1659, %v1712
        %v1808 = vadd.f32 %v1660, %v1715
        %v1809 = vadd.f32 %v1661, %v1718
        %v1810 = vadd.f32 %v1662, %v1721
        %v1811 = vadd.f32 %v1663, %v1724
        %v1812 = vadd.f32 %v1664, %v1727
        %v1813 = vadd.f32 %v1665, %v1730
        %v1814 = vadd.f32 %v1666, %v1733
        %v1815 = vadd.f32 %v1667, %v1736
        %v1816 = vadd.f32 %v1668, %v1739
        %v1817 = vadd.f32 %v1669, %v1742
        %v1818 = vadd.f32 %v1670, %v1745
        %v1819 = vadd.f32 %v1671, %v1748
        %v1820 = vadd.f32 %v1672, %v1751
        %v1821 = vadd.f32 %v1673, %v1754
        %v1822 = vadd.f32 %v1674, %v1757
        %v1823 = vadd.f32 %v1675, %v1760
        %v1824 = vadd.f32 %v1676, %v1763
        %v1825 = vadd.f32 %v1677, %v1766
        %v1826 = vadd.f32 %v1678, %v1769
        %v1827 = vadd.f32 %v1679, %v1772
        %v1828 = vadd.f32 %v1680, %v1775
        %v1829 = vadd.f32 %v1681, %v1778
        %v1830 = vadd.f32 %v1682, %v1781
        %v1831 = vadd.f32 %v1683, %v1784
        %v1832 = vadd.f32 %v1684, %v1787
        %v1833 = vadd.f32 %v1685, %v1790
        %v1834 = vadd.f32 %v1686, %v1793
        %v1835 = vadd.f32 %v1687, %v1796
        %v1836 = vadd.f32 %v1688, %v1799
        %v1837 = vadd.f32 %v1689, %v1802
        %v1838 = vadd.f32 %v1690, %v1805
        %v1840 = vsel %vm509, %v350, 0
        %1842 = vmatpush.msra.mxu0 0.0
        %1843 = vmatpush.msra.mxu0 0.0
        %1844 = vmatpush.msra.mxu0 0.0
        %1845 = vmatpush.msra.mxu0 0.0
        %1846 = vmatpush.msra.mxu0 0.0
        %1847 = vmatpush.msra.mxu0 0.0
        %1848 = vmatpush.msra.mxu0 0.0
        %1849 = vmatpush.msra.mxu0 0.0
        %1850 = vmatpush.msra.mxu0 0.0
        %1851 = vmatpush.msra.mxu0 0.0
        %1852 = vmatpush.msra.mxu0 0.0
        %1853 = vmatpush.msra.mxu0 0.0
        %1854 = vmatpush.msra.mxu0 0.0
        %1855 = vmatpush.msra.mxu0 0.0
        %1856 = vmatpush.msra.mxu0 0.0
        %1857 = vmatpush.msra.mxu0 %v1840
        %1858 = vmatmul.f32.gmra.mxu0 %v873
        %v1859 = vpop.f32.mrf.mxu0
        %v1860 = vadd.f32 0.0, %v1859
        %1861 = vmatmul.f32.gmra.mxu0 %v875
        %v1862 = vpop.f32.mrf.mxu0
        %v1863 = vadd.f32 0.0, %v1862
        %1864 = vmatmul.f32.gmra.mxu0 %v877
        %v1865 = vpop.f32.mrf.mxu0
        %v1866 = vadd.f32 0.0, %v1865
        %1867 = vmatmul.f32.gmra.mxu0 %v879
        %v1868 = vpop.f32.mrf.mxu0
        %v1869 = vadd.f32 0.0, %v1868
        %1870 = vmatmul.f32.gmra.mxu0 %v881
        %v1871 = vpop.f32.mrf.mxu0
        %v1872 = vadd.f32 0.0, %v1871
        %1873 = vmatmul.f32.gmra.mxu0 %v883
        %v1874 = vpop.f32.mrf.mxu0
        %v1875 = vadd.f32 0.0, %v1874
        %1876 = vmatmul.f32.gmra.mxu0 %v885
        %v1877 = vpop.f32.mrf.mxu0
        %v1878 = vadd.f32 0.0, %v1877
        %1879 = vmatmul.f32.gmra.mxu0 %v887
        %v1880 = vpop.f32.mrf.mxu0
        %v1881 = vadd.f32 0.0, %v1880
        %1882 = vmatmul.f32.gmra.mxu0 %v889
        %v1883 = vpop.f32.mrf.mxu0
        %v1884 = vadd.f32 0.0, %v1883
        %1885 = vmatmul.f32.gmra.mxu0 %v891
        %v1886 = vpop.f32.mrf.mxu0
        %v1887 = vadd.f32 0.0, %v1886
        %1888 = vmatmul.f32.gmra.mxu0 %v893
        %v1889 = vpop.f32.mrf.mxu0
        %v1890 = vadd.f32 0.0, %v1889
        %1891 = vmatmul.f32.gmra.mxu0 %v895
        %v1892 = vpop.f32.mrf.mxu0
        %v1893 = vadd.f32 0.0, %v1892
        %1894 = vmatmul.f32.gmra.mxu0 %v897
        %v1895 = vpop.f32.mrf.mxu0
        %v1896 = vadd.f32 0.0, %v1895
        %1897 = vmatmul.f32.gmra.mxu0 %v899
        %v1898 = vpop.f32.mrf.mxu0
        %v1899 = vadd.f32 0.0, %v1898
        %1900 = vmatmul.f32.gmra.mxu0 %v901
        %v1901 = vpop.f32.mrf.mxu0
        %v1902 = vadd.f32 0.0, %v1901
        %1903 = vmatmul.f32.gmra.mxu0 %v903
        %v1904 = vpop.f32.mrf.mxu0
        %v1905 = vadd.f32 0.0, %v1904
        %1906 = vmatmul.f32.gmra.mxu0 %v905
        %v1907 = vpop.f32.mrf.mxu0
        %v1908 = vadd.f32 0.0, %v1907
        %1909 = vmatmul.f32.gmra.mxu0 %v907
        %v1910 = vpop.f32.mrf.mxu0
        %v1911 = vadd.f32 0.0, %v1910
        %1912 = vmatmul.f32.gmra.mxu0 %v909
        %v1913 = vpop.f32.mrf.mxu0
        %v1914 = vadd.f32 0.0, %v1913
        %1915 = vmatmul.f32.gmra.mxu0 %v911
        %v1916 = vpop.f32.mrf.mxu0
        %v1917 = vadd.f32 0.0, %v1916
        %1918 = vmatmul.f32.gmra.mxu0 %v913
        %v1919 = vpop.f32.mrf.mxu0
        %v1920 = vadd.f32 0.0, %v1919
        %1921 = vmatmul.f32.gmra.mxu0 %v915
        %v1922 = vpop.f32.mrf.mxu0
        %v1923 = vadd.f32 0.0, %v1922
        %1924 = vmatmul.f32.gmra.mxu0 %v917
        %v1925 = vpop.f32.mrf.mxu0
        %v1926 = vadd.f32 0.0, %v1925
        %1927 = vmatmul.f32.gmra.mxu0 %v919
        %v1928 = vpop.f32.mrf.mxu0
        %v1929 = vadd.f32 0.0, %v1928
        %1930 = vmatmul.f32.gmra.mxu0 %v921
        %v1931 = vpop.f32.mrf.mxu0
        %v1932 = vadd.f32 0.0, %v1931
        %1933 = vmatmul.f32.gmra.mxu0 %v923
        %v1934 = vpop.f32.mrf.mxu0
        %v1935 = vadd.f32 0.0, %v1934
        %1936 = vmatmul.f32.gmra.mxu0 %v925
        %v1937 = vpop.f32.mrf.mxu0
        %v1938 = vadd.f32 0.0, %v1937
        %1939 = vmatmul.f32.gmra.mxu0 %v927
        %v1940 = vpop.f32.mrf.mxu0
        %v1941 = vadd.f32 0.0, %v1940
        %1942 = vmatmul.f32.gmra.mxu0 %v1391
        %v1943 = vpop.f32.mrf.mxu0
        %v1944 = vadd.f32 0.0, %v1943
        %1945 = vmatmul.f32.gmra.mxu0 %v1393
        %v1946 = vpop.f32.mrf.mxu0
        %v1947 = vadd.f32 0.0, %v1946
        %1948 = vmatmul.f32.gmra.mxu0 %v867
        %v1949 = vpop.f32.mrf.mxu0
        %v1950 = vadd.f32 0.0, %v1949
        %1951 = vmatmul.f32.gmra.mxu0 %v867
        %v1952 = vpop.f32.mrf.mxu0
        %v1953 = vadd.f32 0.0, %v1952
        %1954 = vdwg.mxu0
        %v1955 = vadd.f32 %v1807, %v1860
        %v1956 = vadd.f32 %v1808, %v1863
        %v1957 = vadd.f32 %v1809, %v1866
        %v1958 = vadd.f32 %v1810, %v1869
        %v1959 = vadd.f32 %v1811, %v1872
        %v1960 = vadd.f32 %v1812, %v1875
        %v1961 = vadd.f32 %v1813, %v1878
        %v1962 = vadd.f32 %v1814, %v1881
        %v1963 = vadd.f32 %v1815, %v1884
        %v1964 = vadd.f32 %v1816, %v1887
        %v1965 = vadd.f32 %v1817, %v1890
        %v1966 = vadd.f32 %v1818, %v1893
        %v1967 = vadd.f32 %v1819, %v1896
        %v1968 = vadd.f32 %v1820, %v1899
        %v1969 = vadd.f32 %v1821, %v1902
        %v1970 = vadd.f32 %v1822, %v1905
        %v1971 = vadd.f32 %v1823, %v1908
        %v1972 = vadd.f32 %v1824, %v1911
        %v1973 = vadd.f32 %v1825, %v1914
        %v1974 = vadd.f32 %v1826, %v1917
        %v1975 = vadd.f32 %v1827, %v1920
        %v1976 = vadd.f32 %v1828, %v1923
        %v1977 = vadd.f32 %v1829, %v1926
        %v1978 = vadd.f32 %v1830, %v1929
        %v1979 = vadd.f32 %v1831, %v1932
        %v1980 = vadd.f32 %v1832, %v1935
        %v1981 = vadd.f32 %v1833, %v1938
        %v1982 = vadd.f32 %v1834, %v1941
        %v1983 = vadd.f32 %v1835, %v1944
        %v1984 = vadd.f32 %v1836, %v1947
        %v1985 = vadd.f32 %v1837, %v1950
        %v1986 = vadd.f32 %v1838, %v1953
        %v1988 = vperm.slane %v351, 0
        %v1990 = vadd.f32 %v1955, %v1988
        %v1991 = vadd.f32 %v1956, %v1988
        %v1992 = vadd.f32 %v1957, %v1988
        %v1993 = vadd.f32 %v1958, %v1988
        %v1994 = vadd.f32 %v1959, %v1988
        %v1995 = vadd.f32 %v1960, %v1988
        %v1996 = vadd.f32 %v1961, %v1988
        %v1997 = vadd.f32 %v1962, %v1988
        %v1998 = vadd.f32 %v1963, %v1988
        %v1999 = vadd.f32 %v1964, %v1988
        %v2000 = vadd.f32 %v1965, %v1988
        %v2001 = vadd.f32 %v1966, %v1988
        %v2002 = vadd.f32 %v1967, %v1988
        %v2003 = vadd.f32 %v1968, %v1988
        %v2004 = vadd.f32 %v1969, %v1988
        %v2005 = vadd.f32 %v1970, %v1988
        %v2006 = vadd.f32 %v1971, %v1988
        %v2007 = vadd.f32 %v1972, %v1988
        %v2008 = vadd.f32 %v1973, %v1988
        %v2009 = vadd.f32 %v1974, %v1988
        %v2010 = vadd.f32 %v1975, %v1988
        %v2011 = vadd.f32 %v1976, %v1988
        %v2012 = vadd.f32 %v1977, %v1988
        %v2013 = vadd.f32 %v1978, %v1988
        %v2014 = vadd.f32 %v1979, %v1988
        %v2015 = vadd.f32 %v1980, %v1988
        %v2016 = vadd.f32 %v1981, %v1988
        %v2017 = vadd.f32 %v1982, %v1988
        %v2018 = vadd.f32 %v1983, %v1988
        %v2019 = vadd.f32 %v1984, %v1988
        %v2020 = vadd.f32 %v1985, %v1988
        %v2021 = vadd.f32 %v1986, %v1988
        %vm2022 = vcmp.ge.f32.partialorder %v1990, 0.0
        %vm2023 = vcmp.ge.f32.partialorder %v1991, 0.0
        %vm2024 = vcmp.ge.f32.partialorder %v1992, 0.0
        %vm2025 = vcmp.ge.f32.partialorder %v1993, 0.0
        %vm2026 = vcmp.ge.f32.partialorder %v1994, 0.0
        %vm2027 = vcmp.ge.f32.partialorder %v1995, 0.0
        %vm2028 = vcmp.ge.f32.partialorder %v1996, 0.0
        %vm2029 = vcmp.ge.f32.partialorder %v1997, 0.0
        %vm2030 = vcmp.ge.f32.partialorder %v1998, 0.0
        %vm2031 = vcmp.ge.f32.partialorder %v1999, 0.0
        %vm2032 = vcmp.ge.f32.partialorder %v2000, 0.0
        %vm2033 = vcmp.ge.f32.partialorder %v2001, 0.0
        %vm2034 = vcmp.ge.f32.partialorder %v2002, 0.0
        %vm2035 = vcmp.ge.f32.partialorder %v2003, 0.0
        %vm2036 = vcmp.ge.f32.partialorder %v2004, 0.0
        %vm2037 = vcmp.ge.f32.partialorder %v2005, 0.0
        %vm2038 = vcmp.ge.f32.partialorder %v2006, 0.0
        %vm2039 = vcmp.ge.f32.partialorder %v2007, 0.0
        %vm2040 = vcmp.ge.f32.partialorder %v2008, 0.0
        %vm2041 = vcmp.ge.f32.partialorder %v2009, 0.0
        %vm2042 = vcmp.ge.f32.partialorder %v2010, 0.0
        %vm2043 = vcmp.ge.f32.partialorder %v2011, 0.0
        %vm2044 = vcmp.ge.f32.partialorder %v2012, 0.0
        %vm2045 = vcmp.ge.f32.partialorder %v2013, 0.0
        %vm2046 = vcmp.ge.f32.partialorder %v2014, 0.0
        %vm2047 = vcmp.ge.f32.partialorder %v2015, 0.0
        %vm2048 = vcmp.ge.f32.partialorder %v2016, 0.0
        %vm2049 = vcmp.ge.f32.partialorder %v2017, 0.0
        %vm2050 = vcmp.ge.f32.partialorder %v2018, 0.0
        %vm2051 = vcmp.ge.f32.partialorder %v2019, 0.0
        %vm2052 = vcmp.ge.f32.partialorder %v2020, 0.0
        %vm2053 = vcmp.ge.f32.partialorder %v2021, 0.0
        %v2054 = vmul.f32 %v1990, 0.01
        %v2055 = vmul.f32 %v1991, 0.01
        %v2056 = vmul.f32 %v1992, 0.01
        %v2057 = vmul.f32 %v1993, 0.01
        %v2058 = vmul.f32 %v1994, 0.01
        %v2059 = vmul.f32 %v1995, 0.01
        %v2060 = vmul.f32 %v1996, 0.01
        %v2061 = vmul.f32 %v1997, 0.01
        %v2062 = vmul.f32 %v1998, 0.01
        %v2063 = vmul.f32 %v1999, 0.01
        %v2064 = vmul.f32 %v2000, 0.01
        %v2065 = vmul.f32 %v2001, 0.01
        %v2066 = vmul.f32 %v2002, 0.01
        %v2067 = vmul.f32 %v2003, 0.01
        %v2068 = vmul.f32 %v2004, 0.01
        %v2069 = vmul.f32 %v2005, 0.01
        %v2070 = vmul.f32 %v2006, 0.01
        %v2071 = vmul.f32 %v2007, 0.01
        %v2072 = vmul.f32 %v2008, 0.01
        %v2073 = vmul.f32 %v2009, 0.01
        %v2074 = vmul.f32 %v2010, 0.01
        %v2075 = vmul.f32 %v2011, 0.01
        %v2076 = vmul.f32 %v2012, 0.01
        %v2077 = vmul.f32 %v2013, 0.01
        %v2078 = vmul.f32 %v2014, 0.01
        %v2079 = vmul.f32 %v2015, 0.01
        %v2080 = vmul.f32 %v2016, 0.01
        %v2081 = vmul.f32 %v2017, 0.01
        %v2082 = vmul.f32 %v2018, 0.01
        %v2083 = vmul.f32 %v2019, 0.01
        %v2084 = vmul.f32 %v2020, 0.01
        %v2085 = vmul.f32 %v2021, 0.01
        %v2086 = vsel %vm2022, %v1990, %v2054
        %v2087 = vsel %vm2023, %v1991, %v2055
        %v2088 = vsel %vm2024, %v1992, %v2056
        %v2089 = vsel %vm2025, %v1993, %v2057
        %v2090 = vsel %vm2026, %v1994, %v2058
        %v2091 = vsel %vm2027, %v1995, %v2059
        %v2092 = vsel %vm2028, %v1996, %v2060
        %v2093 = vsel %vm2029, %v1997, %v2061
        %v2094 = vsel %vm2030, %v1998, %v2062
        %v2095 = vsel %vm2031, %v1999, %v2063
        %v2096 = vsel %vm2032, %v2000, %v2064
        %v2097 = vsel %vm2033, %v2001, %v2065
        %v2098 = vsel %vm2034, %v2002, %v2066
        %v2099 = vsel %vm2035, %v2003, %v2067
        %v2100 = vsel %vm2036, %v2004, %v2068
        %v2101 = vsel %vm2037, %v2005, %v2069
        %v2102 = vsel %vm2038, %v2006, %v2070
        %v2103 = vsel %vm2039, %v2007, %v2071
        %v2104 = vsel %vm2040, %v2008, %v2072
        %v2105 = vsel %vm2041, %v2009, %v2073
        %v2106 = vsel %vm2042, %v2010, %v2074
        %v2107 = vsel %vm2043, %v2011, %v2075
        %v2108 = vsel %vm2044, %v2012, %v2076
        %v2109 = vsel %vm2045, %v2013, %v2077
        %v2110 = vsel %vm2046, %v2014, %v2078
        %v2111 = vsel %vm2047, %v2015, %v2079
        %v2112 = vsel %vm2048, %v2016, %v2080
        %v2113 = vsel %vm2049, %v2017, %v2081
        %v2114 = vsel %vm2050, %v2018, %v2082
        %v2115 = vsel %vm2051, %v2019, %v2083
        %v2116 = vsel %vm2052, %v2020, %v2084
        %v2117 = vsel %vm2053, %v2021, %v2085
        %v2150 = vrot.slane %v2086, 2
        %v2151 = vrot.slane %v2086, 4
        %v2152 = vrot.slane %v2086, 6
        %v2153 = vrot.slane %v2087, 2
        %v2154 = vrot.slane %v2087, 4
        %v2155 = vrot.slane %v2087, 6
        %v2156 = vrot.slane %v2088, 2
        %v2157 = vrot.slane %v2088, 4
        %v2158 = vrot.slane %v2088, 6
        %v2159 = vrot.slane %v2089, 2
        %v2160 = vrot.slane %v2089, 4
        %v2161 = vrot.slane %v2089, 6
        %v2162 = vrot.slane %v2090, 2
        %v2163 = vrot.slane %v2090, 4
        %v2164 = vrot.slane %v2090, 6
        %v2165 = vrot.slane %v2091, 2
        %v2166 = vrot.slane %v2091, 4
        %v2167 = vrot.slane %v2091, 6
        %v2168 = vrot.slane %v2092, 2
        %v2169 = vrot.slane %v2092, 4
        %v2170 = vrot.slane %v2092, 6
        %v2171 = vrot.slane %v2093, 2
        %v2172 = vrot.slane %v2093, 4
        %v2173 = vrot.slane %v2093, 6
        %v2174 = vrot.slane %v2094, 2
        %v2175 = vrot.slane %v2094, 4
        %v2176 = vrot.slane %v2094, 6
        %v2177 = vrot.slane %v2095, 2
        %v2178 = vrot.slane %v2095, 4
        %v2179 = vrot.slane %v2095, 6
        %v2180 = vrot.slane %v2096, 2
        %v2181 = vrot.slane %v2096, 4
        %v2182 = vrot.slane %v2096, 6
        %v2183 = vrot.slane %v2097, 2
        %v2184 = vrot.slane %v2097, 4
        %v2185 = vrot.slane %v2097, 6
        %v2186 = vrot.slane %v2098, 2
        %v2187 = vrot.slane %v2098, 4
        %v2188 = vrot.slane %v2098, 6
        %v2189 = vrot.slane %v2099, 2
        %v2190 = vrot.slane %v2099, 4
        %v2191 = vrot.slane %v2099, 6
        %v2192 = vrot.slane %v2100, 2
        %v2193 = vrot.slane %v2100, 4
        %v2194 = vrot.slane %v2100, 6
        %v2195 = vrot.slane %v2101, 2
        %v2196 = vrot.slane %v2101, 4
        %v2197 = vrot.slane %v2101, 6
        %v2198 = vrot.slane %v2102, 2
        %v2199 = vrot.slane %v2102, 4
        %v2200 = vrot.slane %v2102, 6
        %v2201 = vrot.slane %v2103, 2
        %v2202 = vrot.slane %v2103, 4
        %v2203 = vrot.slane %v2103, 6
        %v2204 = vrot.slane %v2104, 2
        %v2205 = vrot.slane %v2104, 4
        %v2206 = vrot.slane %v2104, 6
        %v2207 = vrot.slane %v2105, 2
        %v2208 = vrot.slane %v2105, 4
        %v2209 = vrot.slane %v2105, 6
        %v2210 = vrot.slane %v2106, 2
        %v2211 = vrot.slane %v2106, 4
        %v2212 = vrot.slane %v2106, 6
        %v2213 = vrot.slane %v2107, 2
        %v2214 = vrot.slane %v2107, 4
        %v2215 = vrot.slane %v2107, 6
        %v2216 = vrot.slane %v2108, 2
        %v2217 = vrot.slane %v2108, 4
        %v2218 = vrot.slane %v2108, 6
        %v2219 = vrot.slane %v2109, 2
        %v2220 = vrot.slane %v2109, 4
        %v2221 = vrot.slane %v2109, 6
        %v2222 = vrot.slane %v2110, 2
        %v2223 = vrot.slane %v2110, 4
        %v2224 = vrot.slane %v2110, 6
        %v2225 = vrot.slane %v2111, 2
        %v2226 = vrot.slane %v2111, 4
        %v2227 = vrot.slane %v2111, 6
        %v2228 = vrot.slane %v2112, 2
        %v2229 = vrot.slane %v2112, 4
        %v2230 = vrot.slane %v2112, 6
        %v2231 = vrot.slane %v2113, 2
        %v2232 = vrot.slane %v2113, 4
        %v2233 = vrot.slane %v2113, 6
        %v2234 = vrot.slane %v2114, 2
        %v2235 = vrot.slane %v2114, 4
        %v2236 = vrot.slane %v2114, 6
        %v2237 = vrot.slane %v2115, 2
        %v2238 = vrot.slane %v2115, 4
        %v2239 = vrot.slane %v2115, 6
        %v2240 = vrot.slane %v2116, 2
        %v2241 = vrot.slane %v2116, 4
        %v2242 = vrot.slane %v2116, 6
        %v2243 = vrot.slane %v2117, 2
        %v2244 = vrot.slane %v2117, 4
        %v2245 = vrot.slane %v2117, 6
        %v2342 = vrot.slane %v2086, 7
        %v2343 = vrot.slane %v2342, 2
        %v2344 = vrot.slane %v2150, 7
        %v2345 = vrot.slane %v2344, 2
        %v2346 = vrot.slane %v2151, 7
        %v2347 = vrot.slane %v2346, 2
        %v2348 = vrot.slane %v2152, 7
        %v2349 = vrot.slane %v2348, 2
        %v2350 = vrot.slane %v2087, 7
        %v2351 = vrot.slane %v2350, 2
        %v2352 = vrot.slane %v2153, 7
        %v2353 = vrot.slane %v2352, 2
        %v2354 = vrot.slane %v2154, 7
        %v2355 = vrot.slane %v2354, 2
        %v2356 = vrot.slane %v2155, 7
        %v2357 = vrot.slane %v2356, 2
        %v2358 = vrot.slane %v2088, 7
        %v2359 = vrot.slane %v2358, 2
        %v2360 = vrot.slane %v2156, 7
        %v2361 = vrot.slane %v2360, 2
        %v2362 = vrot.slane %v2157, 7
        %v2363 = vrot.slane %v2362, 2
        %v2364 = vrot.slane %v2158, 7
        %v2365 = vrot.slane %v2364, 2
        %v2366 = vrot.slane %v2089, 7
        %v2367 = vrot.slane %v2366, 2
        %v2368 = vrot.slane %v2159, 7
        %v2369 = vrot.slane %v2368, 2
        %v2370 = vrot.slane %v2160, 7
        %v2371 = vrot.slane %v2370, 2
        %v2372 = vrot.slane %v2161, 7
        %v2373 = vrot.slane %v2372, 2
        %v2374 = vrot.slane %v2090, 7
        %v2375 = vrot.slane %v2374, 2
        %v2376 = vrot.slane %v2162, 7
        %v2377 = vrot.slane %v2376, 2
        %v2378 = vrot.slane %v2163, 7
        %v2379 = vrot.slane %v2378, 2
        %v2380 = vrot.slane %v2164, 7
        %v2381 = vrot.slane %v2380, 2
        %v2382 = vrot.slane %v2091, 7
        %v2383 = vrot.slane %v2382, 2
        %v2384 = vrot.slane %v2165, 7
        %v2385 = vrot.slane %v2384, 2
        %v2386 = vrot.slane %v2166, 7
        %v2387 = vrot.slane %v2386, 2
        %v2388 = vrot.slane %v2167, 7
        %v2389 = vrot.slane %v2388, 2
        %v2390 = vrot.slane %v2092, 7
        %v2391 = vrot.slane %v2390, 2
        %v2392 = vrot.slane %v2168, 7
        %v2393 = vrot.slane %v2392, 2
        %v2394 = vrot.slane %v2169, 7
        %v2395 = vrot.slane %v2394, 2
        %v2396 = vrot.slane %v2170, 7
        %v2397 = vrot.slane %v2396, 2
        %v2398 = vrot.slane %v2093, 7
        %v2399 = vrot.slane %v2398, 2
        %v2400 = vrot.slane %v2171, 7
        %v2401 = vrot.slane %v2400, 2
        %v2402 = vrot.slane %v2172, 7
        %v2403 = vrot.slane %v2402, 2
        %v2404 = vrot.slane %v2173, 7
        %v2405 = vrot.slane %v2404, 2
        %v2406 = vrot.slane %v2094, 7
        %v2407 = vrot.slane %v2406, 2
        %v2408 = vrot.slane %v2174, 7
        %v2409 = vrot.slane %v2408, 2
        %v2410 = vrot.slane %v2175, 7
        %v2411 = vrot.slane %v2410, 2
        %v2412 = vrot.slane %v2176, 7
        %v2413 = vrot.slane %v2412, 2
        %v2414 = vrot.slane %v2095, 7
        %v2415 = vrot.slane %v2414, 2
        %v2416 = vrot.slane %v2177, 7
        %v2417 = vrot.slane %v2416, 2
        %v2418 = vrot.slane %v2178, 7
        %v2419 = vrot.slane %v2418, 2
        %v2420 = vrot.slane %v2179, 7
        %v2421 = vrot.slane %v2420, 2
        %v2422 = vrot.slane %v2096, 7
        %v2423 = vrot.slane %v2422, 2
        %v2424 = vrot.slane %v2180, 7
        %v2425 = vrot.slane %v2424, 2
        %v2426 = vrot.slane %v2181, 7
        %v2427 = vrot.slane %v2426, 2
        %v2428 = vrot.slane %v2182, 7
        %v2429 = vrot.slane %v2428, 2
        %v2430 = vrot.slane %v2097, 7
        %v2431 = vrot.slane %v2430, 2
        %v2432 = vrot.slane %v2183, 7
        %v2433 = vrot.slane %v2432, 2
        %v2434 = vrot.slane %v2184, 7
        %v2435 = vrot.slane %v2434, 2
        %v2436 = vrot.slane %v2185, 7
        %v2437 = vrot.slane %v2436, 2
        %v2438 = vrot.slane %v2098, 7
        %v2439 = vrot.slane %v2438, 2
        %v2440 = vrot.slane %v2186, 7
        %v2441 = vrot.slane %v2440, 2
        %v2442 = vrot.slane %v2187, 7
        %v2443 = vrot.slane %v2442, 2
        %v2444 = vrot.slane %v2188, 7
        %v2445 = vrot.slane %v2444, 2
        %v2446 = vrot.slane %v2099, 7
        %v2447 = vrot.slane %v2446, 2
        %v2448 = vrot.slane %v2189, 7
        %v2449 = vrot.slane %v2448, 2
        %v2450 = vrot.slane %v2190, 7
        %v2451 = vrot.slane %v2450, 2
        %v2452 = vrot.slane %v2191, 7
        %v2453 = vrot.slane %v2452, 2
        %v2454 = vrot.slane %v2100, 7
        %v2455 = vrot.slane %v2454, 2
        %v2456 = vrot.slane %v2192, 7
        %v2457 = vrot.slane %v2456, 2
        %v2458 = vrot.slane %v2193, 7
        %v2459 = vrot.slane %v2458, 2
        %v2460 = vrot.slane %v2194, 7
        %v2461 = vrot.slane %v2460, 2
        %v2462 = vrot.slane %v2101, 7
        %v2463 = vrot.slane %v2462, 2
        %v2464 = vrot.slane %v2195, 7
        %v2465 = vrot.slane %v2464, 2
        %v2466 = vrot.slane %v2196, 7
        %v2467 = vrot.slane %v2466, 2
        %v2468 = vrot.slane %v2197, 7
        %v2469 = vrot.slane %v2468, 2
        %v2470 = vrot.slane %v2102, 7
        %v2471 = vrot.slane %v2470, 2
        %v2472 = vrot.slane %v2198, 7
        %v2473 = vrot.slane %v2472, 2
        %v2474 = vrot.slane %v2199, 7
        %v2475 = vrot.slane %v2474, 2
        %v2476 = vrot.slane %v2200, 7
        %v2477 = vrot.slane %v2476, 2
        %v2478 = vrot.slane %v2103, 7
        %v2479 = vrot.slane %v2478, 2
        %v2480 = vrot.slane %v2201, 7
        %v2481 = vrot.slane %v2480, 2
        %v2482 = vrot.slane %v2202, 7
        %v2483 = vrot.slane %v2482, 2
        %v2484 = vrot.slane %v2203, 7
        %v2485 = vrot.slane %v2484, 2
        %v2486 = vrot.slane %v2104, 7
        %v2487 = vrot.slane %v2486, 2
        %v2488 = vrot.slane %v2204, 7
        %v2489 = vrot.slane %v2488, 2
        %v2490 = vrot.slane %v2205, 7
        %v2491 = vrot.slane %v2490, 2
        %v2492 = vrot.slane %v2206, 7
        %v2493 = vrot.slane %v2492, 2
        %v2494 = vrot.slane %v2105, 7
        %v2495 = vrot.slane %v2494, 2
        %v2496 = vrot.slane %v2207, 7
        %v2497 = vrot.slane %v2496, 2
        %v2498 = vrot.slane %v2208, 7
        %v2499 = vrot.slane %v2498, 2
        %v2500 = vrot.slane %v2209, 7
        %v2501 = vrot.slane %v2500, 2
        %v2502 = vrot.slane %v2106, 7
        %v2503 = vrot.slane %v2502, 2
        %v2504 = vrot.slane %v2210, 7
        %v2505 = vrot.slane %v2504, 2
        %v2506 = vrot.slane %v2211, 7
        %v2507 = vrot.slane %v2506, 2
        %v2508 = vrot.slane %v2212, 7
        %v2509 = vrot.slane %v2508, 2
        %v2510 = vrot.slane %v2107, 7
        %v2511 = vrot.slane %v2510, 2
        %v2512 = vrot.slane %v2213, 7
        %v2513 = vrot.slane %v2512, 2
        %v2514 = vrot.slane %v2214, 7
        %v2515 = vrot.slane %v2514, 2
        %v2516 = vrot.slane %v2215, 7
        %v2517 = vrot.slane %v2516, 2
        %v2518 = vrot.slane %v2108, 7
        %v2519 = vrot.slane %v2518, 2
        %v2520 = vrot.slane %v2216, 7
        %v2521 = vrot.slane %v2520, 2
        %v2522 = vrot.slane %v2217, 7
        %v2523 = vrot.slane %v2522, 2
        %v2524 = vrot.slane %v2218, 7
        %v2525 = vrot.slane %v2524, 2
        %v2526 = vrot.slane %v2109, 7
        %v2527 = vrot.slane %v2526, 2
        %v2528 = vrot.slane %v2219, 7
        %v2529 = vrot.slane %v2528, 2
        %v2530 = vrot.slane %v2220, 7
        %v2531 = vrot.slane %v2530, 2
        %v2532 = vrot.slane %v2221, 7
        %v2533 = vrot.slane %v2532, 2
        %v2534 = vrot.slane %v2110, 7
        %v2535 = vrot.slane %v2534, 2
        %v2536 = vrot.slane %v2222, 7
        %v2537 = vrot.slane %v2536, 2
        %v2538 = vrot.slane %v2223, 7
        %v2539 = vrot.slane %v2538, 2
        %v2540 = vrot.slane %v2224, 7
        %v2541 = vrot.slane %v2540, 2
        %v2542 = vrot.slane %v2111, 7
        %v2543 = vrot.slane %v2542, 2
        %v2544 = vrot.slane %v2225, 7
        %v2545 = vrot.slane %v2544, 2
        %v2546 = vrot.slane %v2226, 7
        %v2547 = vrot.slane %v2546, 2
        %v2548 = vrot.slane %v2227, 7
        %v2549 = vrot.slane %v2548, 2
        %v2550 = vrot.slane %v2112, 7
        %v2551 = vrot.slane %v2550, 2
        %v2552 = vrot.slane %v2228, 7
        %v2553 = vrot.slane %v2552, 2
        %v2554 = vrot.slane %v2229, 7
        %v2555 = vrot.slane %v2554, 2
        %v2556 = vrot.slane %v2230, 7
        %v2557 = vrot.slane %v2556, 2
        %v2558 = vrot.slane %v2113, 7
        %v2559 = vrot.slane %v2558, 2
        %v2560 = vrot.slane %v2231, 7
        %v2561 = vrot.slane %v2560, 2
        %v2562 = vrot.slane %v2232, 7
        %v2563 = vrot.slane %v2562, 2
        %v2564 = vrot.slane %v2233, 7
        %v2565 = vrot.slane %v2564, 2
        %v2566 = vrot.slane %v2114, 7
        %v2567 = vrot.slane %v2566, 2
        %v2568 = vrot.slane %v2234, 7
        %v2569 = vrot.slane %v2568, 2
        %v2570 = vrot.slane %v2235, 7
        %v2571 = vrot.slane %v2570, 2
        %v2572 = vrot.slane %v2236, 7
        %v2573 = vrot.slane %v2572, 2
        %v2574 = vrot.slane %v2115, 7
        %v2575 = vrot.slane %v2574, 2
        %v2576 = vrot.slane %v2237, 7
        %v2577 = vrot.slane %v2576, 2
        %v2578 = vrot.slane %v2238, 7
        %v2579 = vrot.slane %v2578, 2
        %v2580 = vrot.slane %v2239, 7
        %v2581 = vrot.slane %v2580, 2
        %v2582 = vrot.slane %v2116, 7
        %v2583 = vrot.slane %v2582, 2
        %v2584 = vrot.slane %v2240, 7
        %v2585 = vrot.slane %v2584, 2
        %v2586 = vrot.slane %v2241, 7
        %v2587 = vrot.slane %v2586, 2
        %v2588 = vrot.slane %v2242, 7
        %v2589 = vrot.slane %v2588, 2
        %v2590 = vrot.slane %v2117, 7
        %v2591 = vrot.slane %v2590, 2
        %v2592 = vrot.slane %v2243, 7
        %v2593 = vrot.slane %v2592, 2
        %v2594 = vrot.slane %v2244, 7
        %v2595 = vrot.slane %v2594, 2
        %v2596 = vrot.slane %v2245, 7
        %v2597 = vrot.slane %v2596, 2
        %v2726 = vmax.f32 %v2086, %v2343
        %v2727 = vmax.f32 %v2150, %v2345
        %v2728 = vmax.f32 %v2151, %v2347
        %v2729 = vmax.f32 %v2152, %v2349
        %v2730 = vmax.f32 %v2087, %v2351
        %v2731 = vmax.f32 %v2153, %v2353
        %v2732 = vmax.f32 %v2154, %v2355
        %v2733 = vmax.f32 %v2155, %v2357
        %v2734 = vmax.f32 %v2088, %v2359
        %v2735 = vmax.f32 %v2156, %v2361
        %v2736 = vmax.f32 %v2157, %v2363
        %v2737 = vmax.f32 %v2158, %v2365
        %v2738 = vmax.f32 %v2089, %v2367
        %v2739 = vmax.f32 %v2159, %v2369
        %v2740 = vmax.f32 %v2160, %v2371
        %v2741 = vmax.f32 %v2161, %v2373
        %v2742 = vmax.f32 %v2090, %v2375
        %v2743 = vmax.f32 %v2162, %v2377
        %v2744 = vmax.f32 %v2163, %v2379
        %v2745 = vmax.f32 %v2164, %v2381
        %v2746 = vmax.f32 %v2091, %v2383
        %v2747 = vmax.f32 %v2165, %v2385
        %v2748 = vmax.f32 %v2166, %v2387
        %v2749 = vmax.f32 %v2167, %v2389
        %v2750 = vmax.f32 %v2092, %v2391
        %v2751 = vmax.f32 %v2168, %v2393
        %v2752 = vmax.f32 %v2169, %v2395
        %v2753 = vmax.f32 %v2170, %v2397
        %v2754 = vmax.f32 %v2093, %v2399
        %v2755 = vmax.f32 %v2171, %v2401
        %v2756 = vmax.f32 %v2172, %v2403
        %v2757 = vmax.f32 %v2173, %v2405
        %v2758 = vmax.f32 %v2094, %v2407
        %v2759 = vmax.f32 %v2174, %v2409
        %v2760 = vmax.f32 %v2175, %v2411
        %v2761 = vmax.f32 %v2176, %v2413
        %v2762 = vmax.f32 %v2095, %v2415
        %v2763 = vmax.f32 %v2177, %v2417
        %v2764 = vmax.f32 %v2178, %v2419
        %v2765 = vmax.f32 %v2179, %v2421
        %v2766 = vmax.f32 %v2096, %v2423
        %v2767 = vmax.f32 %v2180, %v2425
        %v2768 = vmax.f32 %v2181, %v2427
        %v2769 = vmax.f32 %v2182, %v2429
        %v2770 = vmax.f32 %v2097, %v2431
        %v2771 = vmax.f32 %v2183, %v2433
        %v2772 = vmax.f32 %v2184, %v2435
        %v2773 = vmax.f32 %v2185, %v2437
        %v2774 = vmax.f32 %v2098, %v2439
        %v2775 = vmax.f32 %v2186, %v2441
        %v2776 = vmax.f32 %v2187, %v2443
        %v2777 = vmax.f32 %v2188, %v2445
        %v2778 = vmax.f32 %v2099, %v2447
        %v2779 = vmax.f32 %v2189, %v2449
        %v2780 = vmax.f32 %v2190, %v2451
        %v2781 = vmax.f32 %v2191, %v2453
        %v2782 = vmax.f32 %v2100, %v2455
        %v2783 = vmax.f32 %v2192, %v2457
        %v2784 = vmax.f32 %v2193, %v2459
        %v2785 = vmax.f32 %v2194, %v2461
        %v2786 = vmax.f32 %v2101, %v2463
        %v2787 = vmax.f32 %v2195, %v2465
        %v2788 = vmax.f32 %v2196, %v2467
        %v2789 = vmax.f32 %v2197, %v2469
        %v2790 = vmax.f32 %v2102, %v2471
        %v2791 = vmax.f32 %v2198, %v2473
        %v2792 = vmax.f32 %v2199, %v2475
        %v2793 = vmax.f32 %v2200, %v2477
        %v2794 = vmax.f32 %v2103, %v2479
        %v2795 = vmax.f32 %v2201, %v2481
        %v2796 = vmax.f32 %v2202, %v2483
        %v2797 = vmax.f32 %v2203, %v2485
        %v2798 = vmax.f32 %v2104, %v2487
        %v2799 = vmax.f32 %v2204, %v2489
        %v2800 = vmax.f32 %v2205, %v2491
        %v2801 = vmax.f32 %v2206, %v2493
        %v2802 = vmax.f32 %v2105, %v2495
        %v2803 = vmax.f32 %v2207, %v2497
        %v2804 = vmax.f32 %v2208, %v2499
        %v2805 = vmax.f32 %v2209, %v2501
        %v2806 = vmax.f32 %v2106, %v2503
        %v2807 = vmax.f32 %v2210, %v2505
        %v2808 = vmax.f32 %v2211, %v2507
        %v2809 = vmax.f32 %v2212, %v2509
        %v2810 = vmax.f32 %v2107, %v2511
        %v2811 = vmax.f32 %v2213, %v2513
        %v2812 = vmax.f32 %v2214, %v2515
        %v2813 = vmax.f32 %v2215, %v2517
        %v2814 = vmax.f32 %v2108, %v2519
        %v2815 = vmax.f32 %v2216, %v2521
        %v2816 = vmax.f32 %v2217, %v2523
        %v2817 = vmax.f32 %v2218, %v2525
        %v2818 = vmax.f32 %v2109, %v2527
        %v2819 = vmax.f32 %v2219, %v2529
        %v2820 = vmax.f32 %v2220, %v2531
        %v2821 = vmax.f32 %v2221, %v2533
        %v2822 = vmax.f32 %v2110, %v2535
        %v2823 = vmax.f32 %v2222, %v2537
        %v2824 = vmax.f32 %v2223, %v2539
        %v2825 = vmax.f32 %v2224, %v2541
        %v2826 = vmax.f32 %v2111, %v2543
        %v2827 = vmax.f32 %v2225, %v2545
        %v2828 = vmax.f32 %v2226, %v2547
        %v2829 = vmax.f32 %v2227, %v2549
        %v2830 = vmax.f32 %v2112, %v2551
        %v2831 = vmax.f32 %v2228, %v2553
        %v2832 = vmax.f32 %v2229, %v2555
        %v2833 = vmax.f32 %v2230, %v2557
        %v2834 = vmax.f32 %v2113, %v2559
        %v2835 = vmax.f32 %v2231, %v2561
        %v2836 = vmax.f32 %v2232, %v2563
        %v2837 = vmax.f32 %v2233, %v2565
        %v2838 = vmax.f32 %v2114, %v2567
        %v2839 = vmax.f32 %v2234, %v2569
        %v2840 = vmax.f32 %v2235, %v2571
        %v2841 = vmax.f32 %v2236, %v2573
        %v2842 = vmax.f32 %v2115, %v2575
        %v2843 = vmax.f32 %v2237, %v2577
        %v2844 = vmax.f32 %v2238, %v2579
        %v2845 = vmax.f32 %v2239, %v2581
        %v2846 = vmax.f32 %v2116, %v2583
        %v2847 = vmax.f32 %v2240, %v2585
        %v2848 = vmax.f32 %v2241, %v2587
        %v2849 = vmax.f32 %v2242, %v2589
        %v2850 = vmax.f32 %v2117, %v2591
        %v2851 = vmax.f32 %v2243, %v2593
        %v2852 = vmax.f32 %v2244, %v2595
        %v2853 = vmax.f32 %v2245, %v2597
        %v2854 = vmax.f32 %v2726, %v2734
        %v2855 = vmax.f32 %v2727, %v2735
        %v2856 = vmax.f32 %v2728, %v2736
        %v2857 = vmax.f32 %v2729, %v2737
        %v2858 = vmax.f32 %v2730, %v2738
        %v2859 = vmax.f32 %v2731, %v2739
        %v2860 = vmax.f32 %v2732, %v2740
        %v2861 = vmax.f32 %v2733, %v2741
        %v2862 = vmax.f32 %v2742, %v2750
        %v2863 = vmax.f32 %v2743, %v2751
        %v2864 = vmax.f32 %v2744, %v2752
        %v2865 = vmax.f32 %v2745, %v2753
        %v2866 = vmax.f32 %v2746, %v2754
        %v2867 = vmax.f32 %v2747, %v2755
        %v2868 = vmax.f32 %v2748, %v2756
        %v2869 = vmax.f32 %v2749, %v2757
        %v2870 = vmax.f32 %v2758, %v2766
        %v2871 = vmax.f32 %v2759, %v2767
        %v2872 = vmax.f32 %v2760, %v2768
        %v2873 = vmax.f32 %v2761, %v2769
        %v2874 = vmax.f32 %v2762, %v2770
        %v2875 = vmax.f32 %v2763, %v2771
        %v2876 = vmax.f32 %v2764, %v2772
        %v2877 = vmax.f32 %v2765, %v2773
        %v2878 = vmax.f32 %v2774, %v2782
        %v2879 = vmax.f32 %v2775, %v2783
        %v2880 = vmax.f32 %v2776, %v2784
        %v2881 = vmax.f32 %v2777, %v2785
        %v2882 = vmax.f32 %v2778, %v2786
        %v2883 = vmax.f32 %v2779, %v2787
        %v2884 = vmax.f32 %v2780, %v2788
        %v2885 = vmax.f32 %v2781, %v2789
        %v2886 = vmax.f32 %v2790, %v2798
        %v2887 = vmax.f32 %v2791, %v2799
        %v2888 = vmax.f32 %v2792, %v2800
        %v2889 = vmax.f32 %v2793, %v2801
        %v2890 = vmax.f32 %v2794, %v2802
        %v2891 = vmax.f32 %v2795, %v2803
        %v2892 = vmax.f32 %v2796, %v2804
        %v2893 = vmax.f32 %v2797, %v2805
        %v2894 = vmax.f32 %v2806, %v2814
        %v2895 = vmax.f32 %v2807, %v2815
        %v2896 = vmax.f32 %v2808, %v2816
        %v2897 = vmax.f32 %v2809, %v2817
        %v2898 = vmax.f32 %v2810, %v2818
        %v2899 = vmax.f32 %v2811, %v2819
        %v2900 = vmax.f32 %v2812, %v2820
        %v2901 = vmax.f32 %v2813, %v2821
        %v2902 = vmax.f32 %v2822, %v2830
        %v2903 = vmax.f32 %v2823, %v2831
        %v2904 = vmax.f32 %v2824, %v2832
        %v2905 = vmax.f32 %v2825, %v2833
        %v2906 = vmax.f32 %v2826, %v2834
        %v2907 = vmax.f32 %v2827, %v2835
        %v2908 = vmax.f32 %v2828, %v2836
        %v2909 = vmax.f32 %v2829, %v2837
        %v2910 = vmax.f32 %v2838, %v2846
        %v2911 = vmax.f32 %v2839, %v2847
        %v2912 = vmax.f32 %v2840, %v2848
        %v2913 = vmax.f32 %v2841, %v2849
        %v2914 = vmax.f32 %v2842, %v2850
        %v2915 = vmax.f32 %v2843, %v2851
        %v2916 = vmax.f32 %v2844, %v2852
        %v2917 = vmax.f32 %v2845, %v2853
        %v2918 = vld [vmem:[#allocation2] sm:$0xff]
        %v2919 = vld [vmem:[#allocation2 + $0x8] sm:$0xff]
        %v2920 = vld [vmem:[#allocation2 + $0x10] sm:$0xff]
        %v2921 = vld [vmem:[#allocation2 + $0x18] sm:$0xff]
        %v2922 = vld [vmem:[#allocation2 + $0x20] sm:$0xff]
        %v2923 = vld [vmem:[#allocation2 + $0x28] sm:$0xff]
        %v2924 = vld [vmem:[#allocation2 + $0x30] sm:$0xff]
        %v2925 = vld [vmem:[#allocation2 + $0x38] sm:$0xff]
        %v2926 = vld [vmem:[#allocation2 + $0x40] sm:$0xff]
        %v2927 = vld [vmem:[#allocation2 + $0x48] sm:$0xff]
        %v2928 = vld [vmem:[#allocation2 + $0x50] sm:$0xff]
        %v2929 = vld [vmem:[#allocation2 + $0x58] sm:$0xff]
        %v2930 = vld [vmem:[#allocation2 + $0x60] sm:$0xff]
        %v2931 = vld [vmem:[#allocation2 + $0x68] sm:$0xff]
        %v2932 = vld [vmem:[#allocation2 + $0x70] sm:$0xff]
        %v2933 = vld [vmem:[#allocation2 + $0x78] sm:$0xff]
        %v2934 = vld [vmem:[#allocation2 + $0x80] sm:$0xff]
        %v2935 = vld [vmem:[#allocation2 + $0x88] sm:$0xff]
        %v2936 = vld [vmem:[#allocation2 + $0x90] sm:$0xff]
        %v2937 = vld [vmem:[#allocation2 + $0x98] sm:$0xff]
        %v2938 = vld [vmem:[#allocation2 + $0xa0] sm:$0xff]
        %v2939 = vld [vmem:[#allocation2 + $0xa8] sm:$0xff]
        %v2940 = vld [vmem:[#allocation2 + $0xb0] sm:$0xff]
        %v2941 = vld [vmem:[#allocation2 + $0xb8] sm:$0xff]
        %v2942 = vld [vmem:[#allocation2 + $0xc0] sm:$0xff]
        %v2943 = vld [vmem:[#allocation2 + $0xc8] sm:$0xff]
        %v2944 = vld [vmem:[#allocation2 + $0xd0] sm:$0xff]
        %v2945 = vld [vmem:[#allocation2 + $0xd8] sm:$0xff]
        %v2946 = vld [vmem:[#allocation2 + $0xe0] sm:$0xff]
        %v2947 = vld [vmem:[#allocation2 + $0xe8] sm:$0xff]
        %v2948 = vld [vmem:[#allocation2 + $0xf0] sm:$0xff]
        %v2949 = vld [vmem:[#allocation2 + $0xf8] sm:$0xff]
        %v2950 = vld [vmem:[#allocation2 + $0x100] sm:$0xff]
        %v2951 = vld [vmem:[#allocation2 + $0x108] sm:$0xff]
        %v2952 = vld [vmem:[#allocation2 + $0x110] sm:$0xff]
        %v2953 = vld [vmem:[#allocation2 + $0x118] sm:$0xff]
        %v2954 = vld [vmem:[#allocation2 + $0x120] sm:$0xff]
        %v2955 = vld [vmem:[#allocation2 + $0x128] sm:$0xff]
        %v2956 = vld [vmem:[#allocation2 + $0x130] sm:$0xff]
        %v2957 = vld [vmem:[#allocation2 + $0x138] sm:$0xff]
        %v2958 = vld [vmem:[#allocation2 + $0x140] sm:$0xff]
        %v2959 = vld [vmem:[#allocation2 + $0x148] sm:$0xff]
        %v2960 = vld [vmem:[#allocation2 + $0x150] sm:$0xff]
        %v2961 = vld [vmem:[#allocation2 + $0x158] sm:$0xff]
        %v2962 = vld [vmem:[#allocation2 + $0x160] sm:$0xff]
        %v2963 = vld [vmem:[#allocation2 + $0x168] sm:$0xff]
        %v2964 = vld [vmem:[#allocation2 + $0x170] sm:$0xff]
        %v2965 = vld [vmem:[#allocation2 + $0x178] sm:$0xff]
        %v2966 = vld [vmem:[#allocation2 + $0x180] sm:$0xff]
        %v2967 = vld [vmem:[#allocation2 + $0x188] sm:$0xff]
        %v2968 = vld [vmem:[#allocation2 + $0x190] sm:$0xff]
        %v2969 = vld [vmem:[#allocation2 + $0x198] sm:$0xff]
        %v2970 = vld [vmem:[#allocation2 + $0x1a0] sm:$0xff]
        %v2971 = vld [vmem:[#allocation2 + $0x1a8] sm:$0xff]
        %v2972 = vld [vmem:[#allocation2 + $0x1b0] sm:$0xff]
        %v2973 = vld [vmem:[#allocation2 + $0x1b8] sm:$0xff]
        %v2974 = vld [vmem:[#allocation2 + $0x1c0] sm:$0xff]
        %v2975 = vld [vmem:[#allocation2 + $0x1c8] sm:$0xff]
        %v2976 = vld [vmem:[#allocation2 + $0x1d0] sm:$0xff]
        %v2977 = vld [vmem:[#allocation2 + $0x1d8] sm:$0xff]
        %v2978 = vld [vmem:[#allocation2 + $0x1e0] sm:$0xff]
        %v2979 = vld [vmem:[#allocation2 + $0x1e8] sm:$0xff]
        %v2980 = vld [vmem:[#allocation2 + $0x1f0] sm:$0xff]
        %v2981 = vld [vmem:[#allocation2 + $0x1f8] sm:$0xff]
        %v2982 = vld [vmem:[#allocation2 + $0x200] sm:$0xff]
        %v2983 = vld [vmem:[#allocation2 + $0x208] sm:$0xff]
        %v2984 = vld [vmem:[#allocation2 + $0x210] sm:$0xff]
        %v2985 = vld [vmem:[#allocation2 + $0x218] sm:$0xff]
        %v2986 = vld [vmem:[#allocation2 + $0x220] sm:$0xff]
        %v2987 = vld [vmem:[#allocation2 + $0x228] sm:$0xff]
        %v2988 = vld [vmem:[#allocation2 + $0x230] sm:$0xff]
        %v2989 = vld [vmem:[#allocation2 + $0x238] sm:$0xff]
        %v2990 = vld [vmem:[#allocation2 + $0x240] sm:$0xff]
        %v2991 = vld [vmem:[#allocation2 + $0x248] sm:$0xff]
        %v2992 = vld [vmem:[#allocation2 + $0x250] sm:$0xff]
        %v2993 = vld [vmem:[#allocation2 + $0x258] sm:$0xff]
        %v2994 = vld [vmem:[#allocation2 + $0x260] sm:$0xff]
        %v2995 = vld [vmem:[#allocation2 + $0x268] sm:$0xff]
        %v2996 = vld [vmem:[#allocation2 + $0x270] sm:$0xff]
        %v2997 = vld [vmem:[#allocation2 + $0x278] sm:$0xff]
        %v2998 = vld [vmem:[#allocation2 + $0x280] sm:$0xff]
        %v2999 = vld [vmem:[#allocation2 + $0x288] sm:$0xff]
        %v3000 = vld [vmem:[#allocation2 + $0x290] sm:$0xff]
        %v3001 = vld [vmem:[#allocation2 + $0x298] sm:$0xff]
        %v3002 = vld [vmem:[#allocation2 + $0x2a0] sm:$0xff]
        %v3003 = vld [vmem:[#allocation2 + $0x2a8] sm:$0xff]
        %v3004 = vld [vmem:[#allocation2 + $0x2b0] sm:$0xff]
        %v3005 = vld [vmem:[#allocation2 + $0x2b8] sm:$0xff]
        %v3006 = vld [vmem:[#allocation2 + $0x2c0] sm:$0xff]
        %v3007 = vld [vmem:[#allocation2 + $0x2c8] sm:$0xff]
        %v3008 = vld [vmem:[#allocation2 + $0x2d0] sm:$0xff]
        %v3009 = vld [vmem:[#allocation2 + $0x2d8] sm:$0xff]
        %v3010 = vld [vmem:[#allocation2 + $0x2e0] sm:$0xff]
        %v3011 = vld [vmem:[#allocation2 + $0x2e8] sm:$0xff]
        %v3012 = vld [vmem:[#allocation2 + $0x2f0] sm:$0xff]
        %v3013 = vld [vmem:[#allocation2 + $0x2f8] sm:$0xff]
        %v3014 = vld [vmem:[#allocation2 + $0x300] sm:$0xff]
        %v3015 = vld [vmem:[#allocation2 + $0x308] sm:$0xff]
        %v3016 = vld [vmem:[#allocation2 + $0x310] sm:$0xff]
        %v3017 = vld [vmem:[#allocation2 + $0x318] sm:$0xff]
        %v3018 = vld [vmem:[#allocation2 + $0x320] sm:$0xff]
        %v3019 = vld [vmem:[#allocation2 + $0x328] sm:$0xff]
        %v3020 = vld [vmem:[#allocation2 + $0x330] sm:$0xff]
        %v3021 = vld [vmem:[#allocation2 + $0x338] sm:$0xff]
        %v3022 = vld [vmem:[#allocation2 + $0x340] sm:$0xff]
        %v3023 = vld [vmem:[#allocation2 + $0x348] sm:$0xff]
        %v3024 = vld [vmem:[#allocation2 + $0x350] sm:$0xff]
        %v3025 = vld [vmem:[#allocation2 + $0x358] sm:$0xff]
        %v3026 = vld [vmem:[#allocation2 + $0x360] sm:$0xff]
        %v3027 = vld [vmem:[#allocation2 + $0x368] sm:$0xff]
        %v3028 = vld [vmem:[#allocation2 + $0x370] sm:$0xff]
        %v3029 = vld [vmem:[#allocation2 + $0x378] sm:$0xff]
        %v3030 = vld [vmem:[#allocation2 + $0x380] sm:$0xff]
        %v3031 = vld [vmem:[#allocation2 + $0x388] sm:$0xff]
        %v3032 = vld [vmem:[#allocation2 + $0x390] sm:$0xff]
        %v3033 = vld [vmem:[#allocation2 + $0x398] sm:$0xff]
        %v3034 = vld [vmem:[#allocation2 + $0x3a0] sm:$0xff]
        %v3035 = vld [vmem:[#allocation2 + $0x3a8] sm:$0xff]
        %v3036 = vld [vmem:[#allocation2 + $0x3b0] sm:$0xff]
        %v3037 = vld [vmem:[#allocation2 + $0x3b8] sm:$0xff]
        %v3038 = vld [vmem:[#allocation2 + $0x3c0] sm:$0xff]
        %v3039 = vld [vmem:[#allocation2 + $0x3c8] sm:$0xff]
        %v3040 = vld [vmem:[#allocation2 + $0x3d0] sm:$0xff]
        %v3041 = vld [vmem:[#allocation2 + $0x3d8] sm:$0xff]
        %v3042 = vld [vmem:[#allocation2 + $0x3e0] sm:$0xff]
        %v3043 = vld [vmem:[#allocation2 + $0x3e8] sm:$0xff]
        %v3044 = vld [vmem:[#allocation2 + $0x3f0] sm:$0xff]
        %v3045 = vld [vmem:[#allocation2 + $0x3f8] sm:$0xff]
        %v3046 = vld [vmem:[#allocation2 + $0x400] sm:$0xff]
        %v3047 = vld [vmem:[#allocation2 + $0x408] sm:$0xff]
        %v3048 = vld [vmem:[#allocation2 + $0x410] sm:$0xff]
        %v3049 = vld [vmem:[#allocation2 + $0x418] sm:$0xff]
        %v3050 = vld [vmem:[#allocation2 + $0x420] sm:$0xff]
        %v3051 = vld [vmem:[#allocation2 + $0x428] sm:$0xff]
        %v3052 = vld [vmem:[#allocation2 + $0x430] sm:$0xff]
        %v3053 = vld [vmem:[#allocation2 + $0x438] sm:$0xff]
        %v3054 = vld [vmem:[#allocation2 + $0x440] sm:$0xff]
        %v3055 = vld [vmem:[#allocation2 + $0x448] sm:$0xff]
        %v3056 = vld [vmem:[#allocation2 + $0x450] sm:$0xff]
        %v3057 = vld [vmem:[#allocation2 + $0x458] sm:$0xff]
        %v3058 = vld [vmem:[#allocation2 + $0x460] sm:$0xff]
        %v3059 = vld [vmem:[#allocation2 + $0x468] sm:$0xff]
        %v3060 = vld [vmem:[#allocation2 + $0x470] sm:$0xff]
        %v3061 = vld [vmem:[#allocation2 + $0x478] sm:$0xff]
        %v3062 = vld [vmem:[%s4] sm:$0x1]
        %v3127 = vperm.slane %v2854, 0
        %v3128 = vperm.slane %v2855, 0
        %v3129 = vperm.slane %v2856, 0
        %v3130 = vperm.slane %v2857, 0
        %v3131 = vperm.slane %v2858, 0
        %v3132 = vperm.slane %v2859, 0
        %v3133 = vperm.slane %v2860, 0
        %v3134 = vperm.slane %v2861, 0
        %v3135 = vperm.slane %v2862, 0
        %v3136 = vperm.slane %v2863, 0
        %v3137 = vperm.slane %v2864, 0
        %v3138 = vperm.slane %v2865, 0
        %v3139 = vperm.slane %v2866, 0
        %v3140 = vperm.slane %v2867, 0
        %v3141 = vperm.slane %v2868, 0
        %v3142 = vperm.slane %v2869, 0
        %v3143 = vperm.slane %v2870, 0
        %v3144 = vperm.slane %v2871, 0
        %v3145 = vperm.slane %v2872, 0
        %v3146 = vperm.slane %v2873, 0
        %v3147 = vperm.slane %v2874, 0
        %v3148 = vperm.slane %v2875, 0
        %v3149 = vperm.slane %v2876, 0
        %v3150 = vperm.slane %v2877, 0
        %v3151 = vperm.slane %v2878, 0
        %v3152 = vperm.slane %v2879, 0
        %v3153 = vperm.slane %v2880, 0
        %v3154 = vperm.slane %v2881, 0
        %v3155 = vperm.slane %v2882, 0
        %v3156 = vperm.slane %v2883, 0
        %v3157 = vperm.slane %v2884, 0
        %v3158 = vperm.slane %v2885, 0
        %v3159 = vperm.slane %v2886, 0
        %v3160 = vperm.slane %v2887, 0
        %v3161 = vperm.slane %v2888, 0
        %v3162 = vperm.slane %v2889, 0
        %v3163 = vperm.slane %v2890, 0
        %v3164 = vperm.slane %v2891, 0
        %v3165 = vperm.slane %v2892, 0
        %v3166 = vperm.slane %v2893, 0
        %v3167 = vperm.slane %v2894, 0
        %v3168 = vperm.slane %v2895, 0
        %v3169 = vperm.slane %v2896, 0
        %v3170 = vperm.slane %v2897, 0
        %v3171 = vperm.slane %v2898, 0
        %v3172 = vperm.slane %v2899, 0
        %v3173 = vperm.slane %v2900, 0
        %v3174 = vperm.slane %v2901, 0
        %v3175 = vperm.slane %v2902, 0
        %v3176 = vperm.slane %v2903, 0
        %v3177 = vperm.slane %v2904, 0
        %v3178 = vperm.slane %v2905, 0
        %v3179 = vperm.slane %v2906, 0
        %v3180 = vperm.slane %v2907, 0
        %v3181 = vperm.slane %v2908, 0
        %v3182 = vperm.slane %v2909, 0
        %v3183 = vperm.slane %v2910, 0
        %v3184 = vperm.slane %v2911, 0
        %v3185 = vperm.slane %v2912, 0
        %v3186 = vperm.slane %v2913, 0
        %v3187 = vperm.slane %v2914, 0
        %v3188 = vperm.slane %v2915, 0
        %v3189 = vperm.slane %v2916, 0
        %v3190 = vperm.slane %v2917, 0
        %vm3191 = vcmask 1041409
        %v3192 = vsel %vm3191, %v3128, %v3127
        %vm3193 = vcmask 1042434
        %v3194 = vsel %vm3193, %v3129, %v3192
        %vm3195 = vcmask 1043459
        %v3196 = vsel %vm3195, %v3130, %v3194
        %vm3197 = vcmask 1044484
        %v3198 = vsel %vm3197, %v3131, %v3196
        %vm3199 = vcmask 1045509
        %v3200 = vsel %vm3199, %v3132, %v3198
        %vm3201 = vcmask 1046534
        %v3202 = vsel %vm3201, %v3133, %v3200
        %vm3203 = vcmask 1047559
        %v3204 = vsel %vm3203, %v3134, %v3202
        %v3205 = vsel %vm3191, %v3136, %v3135
        %v3206 = vsel %vm3193, %v3137, %v3205
        %v3207 = vsel %vm3195, %v3138, %v3206
        %v3208 = vsel %vm3197, %v3139, %v3207
        %v3209 = vsel %vm3199, %v3140, %v3208
        %v3210 = vsel %vm3201, %v3141, %v3209
        %v3211 = vsel %vm3203, %v3142, %v3210
        %v3212 = vsel %vm3191, %v3144, %v3143
        %v3213 = vsel %vm3193, %v3145, %v3212
        %v3214 = vsel %vm3195, %v3146, %v3213
        %v3215 = vsel %vm3197, %v3147, %v3214
        %v3216 = vsel %vm3199, %v3148, %v3215
        %v3217 = vsel %vm3201, %v3149, %v3216
        %v3218 = vsel %vm3203, %v3150, %v3217
        %v3219 = vsel %vm3191, %v3152, %v3151
        %v3220 = vsel %vm3193, %v3153, %v3219
        %v3221 = vsel %vm3195, %v3154, %v3220
        %v3222 = vsel %vm3197, %v3155, %v3221
        %v3223 = vsel %vm3199, %v3156, %v3222
        %v3224 = vsel %vm3201, %v3157, %v3223
        %v3225 = vsel %vm3203, %v3158, %v3224
        %v3226 = vsel %vm3191, %v3160, %v3159
        %v3227 = vsel %vm3193, %v3161, %v3226
        %v3228 = vsel %vm3195, %v3162, %v3227
        %v3229 = vsel %vm3197, %v3163, %v3228
        %v3230 = vsel %vm3199, %v3164, %v3229
        %v3231 = vsel %vm3201, %v3165, %v3230
        %v3232 = vsel %vm3203, %v3166, %v3231
        %v3233 = vsel %vm3191, %v3168, %v3167
        %v3234 = vsel %vm3193, %v3169, %v3233
        %v3235 = vsel %vm3195, %v3170, %v3234
        %v3236 = vsel %vm3197, %v3171, %v3235
        %v3237 = vsel %vm3199, %v3172, %v3236
        %v3238 = vsel %vm3201, %v3173, %v3237
        %v3239 = vsel %vm3203, %v3174, %v3238
        %v3240 = vsel %vm3191, %v3176, %v3175
        %v3241 = vsel %vm3193, %v3177, %v3240
        %v3242 = vsel %vm3195, %v3178, %v3241
        %v3243 = vsel %vm3197, %v3179, %v3242
        %v3244 = vsel %vm3199, %v3180, %v3243
        %v3245 = vsel %vm3201, %v3181, %v3244
        %v3246 = vsel %vm3203, %v3182, %v3245
        %v3247 = vsel %vm3191, %v3184, %v3183
        %v3248 = vsel %vm3193, %v3185, %v3247
        %v3249 = vsel %vm3195, %v3186, %v3248
        %v3250 = vsel %vm3197, %v3187, %v3249
        %v3251 = vsel %vm3199, %v3188, %v3250
        %v3252 = vsel %vm3201, %v3189, %v3251
        %v3253 = vsel %vm3203, %v3190, %v3252
        %v3254 = vrot.slane %v3204, 1
        %v3255 = vrot.slane %v3211, 1
        %v3256 = vrot.slane %v3218, 1
        %v3257 = vrot.slane %v3225, 1
        %v3258 = vrot.slane %v3232, 1
        %v3259 = vrot.slane %v3239, 1
        %v3260 = vrot.slane %v3246, 1
        %vm3261 = vcmask 1045504
        %v3262 = vrot.slane 0.0, 2
        %v3263 = vsel %vm3261, %v3262, %v3262
        %v3264 = vrot.slane %v3204, 2
        %v3265 = vsel %vm3261, %v3264, %v3262
        %v3266 = vrot.slane %v3211, 2
        %v3267 = vsel %vm3261, %v3266, %v3262
        %v3268 = vrot.slane %v3218, 2
        %v3269 = vsel %vm3261, %v3268, %v3262
        %v3270 = vrot.slane %v3225, 2
        %v3271 = vsel %vm3261, %v3270, %v3262
        %v3272 = vrot.slane %v3232, 2
        %v3273 = vsel %vm3261, %v3272, %v3262
        %v3274 = vrot.slane %v3239, 2
        %v3275 = vsel %vm3261, %v3274, %v3262
        %v3276 = vrot.slane %v3246, 2
        %v3277 = vsel %vm3261, %v3276, %v3262
        %v3278 = vrot.slane %v3253, 1
        %v3279 = vrot.slane %v3253, 2
        %v3280 = vsel %vm3261, %v3279, %v3262
        %v3281 = vrot.slane %v805, 7
        %v3282 = vsel %vm383, %v3281, %v3281
        %v3283 = vrot.slane %v3262, 7
        %v3284 = vrot.slane %v3263, 7
        %v3285 = vsel %vm383, %v3283, %v3284
        %v3286 = vrot.slane %v3204, 7
        %v3287 = vsel %vm383, %v384, %v3286
        %v3288 = vrot.slane %v3254, 7
        %v3289 = vsel %vm383, %v3288, %v3288
        %v3290 = vrot.slane %v3264, 7
        %v3291 = vrot.slane %v3265, 7
        %v3292 = vsel %vm383, %v3290, %v3291
        %v3293 = vrot.slane %v3211, 7
        %v3294 = vsel %vm383, %v384, %v3293
        %v3295 = vrot.slane %v3255, 7
        %v3296 = vsel %vm383, %v3295, %v3295
        %v3297 = vrot.slane %v3266, 7
        %v3298 = vrot.slane %v3267, 7
        %v3299 = vsel %vm383, %v3297, %v3298
        %v3300 = vrot.slane %v3218, 7
        %v3301 = vsel %vm383, %v384, %v3300
        %v3302 = vrot.slane %v3256, 7
        %v3303 = vsel %vm383, %v3302, %v3302
        %v3304 = vrot.slane %v3268, 7
        %v3305 = vrot.slane %v3269, 7
        %v3306 = vsel %vm383, %v3304, %v3305
        %v3307 = vrot.slane %v3225, 7
        %v3308 = vsel %vm383, %v384, %v3307
        %v3309 = vrot.slane %v3257, 7
        %v3310 = vsel %vm383, %v3309, %v3309
        %v3311 = vrot.slane %v3270, 7
        %v3312 = vrot.slane %v3271, 7
        %v3313 = vsel %vm383, %v3311, %v3312
        %v3314 = vrot.slane %v3232, 7
        %v3315 = vsel %vm383, %v384, %v3314
        %v3316 = vrot.slane %v3258, 7
        %v3317 = vsel %vm383, %v3316, %v3316
        %v3318 = vrot.slane %v3272, 7
        %v3319 = vrot.slane %v3273, 7
        %v3320 = vsel %vm383, %v3318, %v3319
        %v3321 = vrot.slane %v3239, 7
        %v3322 = vsel %vm383, %v384, %v3321
        %v3323 = vrot.slane %v3259, 7
        %v3324 = vsel %vm383, %v3323, %v3323
        %v3325 = vrot.slane %v3274, 7
        %v3326 = vrot.slane %v3275, 7
        %v3327 = vsel %vm383, %v3325, %v3326
        %v3328 = vrot.slane %v3246, 7
        %v3329 = vsel %vm383, %v384, %v3328
        %v3330 = vrot.slane %v3260, 7
        %v3331 = vsel %vm383, %v3330, %v3330
        %v3332 = vrot.slane %v3276, 7
        %v3333 = vrot.slane %v3277, 7
        %v3334 = vsel %vm383, %v3332, %v3333
        %v3335 = vrot.slane %v3253, 7
        %v3336 = vsel %vm383, %v384, %v3335
        %v3337 = vrot.slane %v3278, 7
        %v3338 = vsel %vm383, %v3337, %v3337
        %v3339 = vrot.slane %v3279, 7
        %v3340 = vrot.slane %v3280, 7
        %v3341 = vsel %vm383, %v3339, %v3340
        %v3370 = vperm.slane %v3062, 0
        %3372 = vmatpush.msra.mxu0 %v2933
        %3373 = vmatpush.msra.mxu0 %v2932
        %3374 = vmatpush.msra.mxu0 %v2931
        %3375 = vmatpush.msra.mxu0 %v2930
        %3376 = vmatpush.msra.mxu0 %v2929
        %3377 = vmatpush.msra.mxu0 %v2928
        %3378 = vmatpush.msra.mxu0 %v2927
        %3379 = vmatpush.msra.mxu0 %v2926
        %3380 = vmatpush.msra.mxu0 %v2925
        %3381 = vmatpush.msra.mxu0 %v2924
        %3382 = vmatpush.msra.mxu0 %v2923
        %3383 = vmatpush.msra.mxu0 %v2922
        %3384 = vmatpush.msra.mxu0 %v2921
        %3385 = vmatpush.msra.mxu0 %v2920
        %3386 = vmatpush.msra.mxu0 %v2919
        %3387 = vmatpush.msra.mxu0 %v2918
        %3388 = vmatmul.f32.gmra.mxu0 %v385
        %v3389 = vpop.f32.mrf.mxu0
        %v3390 = vadd.f32 %v3370, %v3389
        %3391 = vmatmul.f32.gmra.mxu0 %v3287
        %v3392 = vpop.f32.mrf.mxu0
        %v3393 = vadd.f32 %v3370, %v3392
        %3394 = vmatmul.f32.gmra.mxu0 %v3294
        %v3395 = vpop.f32.mrf.mxu0
        %v3396 = vadd.f32 %v3370, %v3395
        %3397 = vmatmul.f32.gmra.mxu0 %v3301
        %v3398 = vpop.f32.mrf.mxu0
        %v3399 = vadd.f32 %v3370, %v3398
        %3400 = vmatmul.f32.gmra.mxu0 %v3308
        %v3401 = vpop.f32.mrf.mxu0
        %v3402 = vadd.f32 %v3370, %v3401
        %3403 = vmatmul.f32.gmra.mxu0 %v3315
        %v3404 = vpop.f32.mrf.mxu0
        %v3405 = vadd.f32 %v3370, %v3404
        %3406 = vmatmul.f32.gmra.mxu0 %v3322
        %v3407 = vpop.f32.mrf.mxu0
        %v3408 = vadd.f32 %v3370, %v3407
        %3409 = vmatmul.f32.gmra.mxu0 %v3329
        %v3410 = vpop.f32.mrf.mxu0
        %v3411 = vadd.f32 %v3370, %v3410
        %3412 = vdwg.mxu0
        %3413 = vmatpush.msra.mxu0 %v2949
        %3414 = vmatpush.msra.mxu0 %v2948
        %3415 = vmatpush.msra.mxu0 %v2947
        %3416 = vmatpush.msra.mxu0 %v2946
        %3417 = vmatpush.msra.mxu0 %v2945
        %3418 = vmatpush.msra.mxu0 %v2944
        %3419 = vmatpush.msra.mxu0 %v2943
        %3420 = vmatpush.msra.mxu0 %v2942
        %3421 = vmatpush.msra.mxu0 %v2941
        %3422 = vmatpush.msra.mxu0 %v2940
        %3423 = vmatpush.msra.mxu0 %v2939
        %3424 = vmatpush.msra.mxu0 %v2938
        %3425 = vmatpush.msra.mxu0 %v2937
        %3426 = vmatpush.msra.mxu0 %v2936
        %3427 = vmatpush.msra.mxu0 %v2935
        %3428 = vmatpush.msra.mxu0 %v2934
        %3429 = vmatmul.f32.gmra.mxu0 %v3282
        %v3430 = vpop.f32.mrf.mxu0
        %v3431 = vadd.f32 %v3390, %v3430
        %3432 = vmatmul.f32.gmra.mxu0 %v3289
        %v3433 = vpop.f32.mrf.mxu0
        %v3434 = vadd.f32 %v3393, %v3433
        %3435 = vmatmul.f32.gmra.mxu0 %v3296
        %v3436 = vpop.f32.mrf.mxu0
        %v3437 = vadd.f32 %v3396, %v3436
        %3438 = vmatmul.f32.gmra.mxu0 %v3303
        %v3439 = vpop.f32.mrf.mxu0
        %v3440 = vadd.f32 %v3399, %v3439
        %3441 = vmatmul.f32.gmra.mxu0 %v3310
        %v3442 = vpop.f32.mrf.mxu0
        %v3443 = vadd.f32 %v3402, %v3442
        %3444 = vmatmul.f32.gmra.mxu0 %v3317
        %v3445 = vpop.f32.mrf.mxu0
        %v3446 = vadd.f32 %v3405, %v3445
        %3447 = vmatmul.f32.gmra.mxu0 %v3324
        %v3448 = vpop.f32.mrf.mxu0
        %v3449 = vadd.f32 %v3408, %v3448
        %3450 = vmatmul.f32.gmra.mxu0 %v3331
        %v3451 = vpop.f32.mrf.mxu0
        %v3452 = vadd.f32 %v3411, %v3451
        %3453 = vdwg.mxu0
        %3454 = vmatpush.msra.mxu0 %v2965
        %3455 = vmatpush.msra.mxu0 %v2964
        %3456 = vmatpush.msra.mxu0 %v2963
        %3457 = vmatpush.msra.mxu0 %v2962
        %3458 = vmatpush.msra.mxu0 %v2961
        %3459 = vmatpush.msra.mxu0 %v2960
        %3460 = vmatpush.msra.mxu0 %v2959
        %3461 = vmatpush.msra.mxu0 %v2958
        %3462 = vmatpush.msra.mxu0 %v2957
        %3463 = vmatpush.msra.mxu0 %v2956
        %3464 = vmatpush.msra.mxu0 %v2955
        %3465 = vmatpush.msra.mxu0 %v2954
        %3466 = vmatpush.msra.mxu0 %v2953
        %3467 = vmatpush.msra.mxu0 %v2952
        %3468 = vmatpush.msra.mxu0 %v2951
        %3469 = vmatpush.msra.mxu0 %v2950
        %3470 = vmatmul.f32.gmra.mxu0 %v3285
        %v3471 = vpop.f32.mrf.mxu0
        %v3472 = vadd.f32 %v3431, %v3471
        %3473 = vmatmul.f32.gmra.mxu0 %v3292
        %v3474 = vpop.f32.mrf.mxu0
        %v3475 = vadd.f32 %v3434, %v3474
        %3476 = vmatmul.f32.gmra.mxu0 %v3299
        %v3477 = vpop.f32.mrf.mxu0
        %v3478 = vadd.f32 %v3437, %v3477
        %3479 = vmatmul.f32.gmra.mxu0 %v3306
        %v3480 = vpop.f32.mrf.mxu0
        %v3481 = vadd.f32 %v3440, %v3480
        %3482 = vmatmul.f32.gmra.mxu0 %v3313
        %v3483 = vpop.f32.mrf.mxu0
        %v3484 = vadd.f32 %v3443, %v3483
        %3485 = vmatmul.f32.gmra.mxu0 %v3320
        %v3486 = vpop.f32.mrf.mxu0
        %v3487 = vadd.f32 %v3446, %v3486
        %3488 = vmatmul.f32.gmra.mxu0 %v3327
        %v3489 = vpop.f32.mrf.mxu0
        %v3490 = vadd.f32 %v3449, %v3489
        %3491 = vmatmul.f32.gmra.mxu0 %v3334
        %v3492 = vpop.f32.mrf.mxu0
        %v3493 = vadd.f32 %v3452, %v3492
        %3494 = vdwg.mxu0
        %3495 = vmatpush.msra.mxu0 %v2981
        %3496 = vmatpush.msra.mxu0 %v2980
        %3497 = vmatpush.msra.mxu0 %v2979
        %3498 = vmatpush.msra.mxu0 %v2978
        %3499 = vmatpush.msra.mxu0 %v2977
        %3500 = vmatpush.msra.mxu0 %v2976
        %3501 = vmatpush.msra.mxu0 %v2975
        %3502 = vmatpush.msra.mxu0 %v2974
        %3503 = vmatpush.msra.mxu0 %v2973
        %3504 = vmatpush.msra.mxu0 %v2972
        %3505 = vmatpush.msra.mxu0 %v2971
        %3506 = vmatpush.msra.mxu0 %v2970
        %3507 = vmatpush.msra.mxu0 %v2969
        %3508 = vmatpush.msra.mxu0 %v2968
        %3509 = vmatpush.msra.mxu0 %v2967
        %3510 = vmatpush.msra.mxu0 %v2966
        %3511 = vmatmul.f32.gmra.mxu0 %v3287
        %v3512 = vpop.f32.mrf.mxu0
        %v3513 = vadd.f32 %v3472, %v3512
        %3514 = vmatmul.f32.gmra.mxu0 %v3294
        %v3515 = vpop.f32.mrf.mxu0
        %v3516 = vadd.f32 %v3475, %v3515
        %3517 = vmatmul.f32.gmra.mxu0 %v3301
        %v3518 = vpop.f32.mrf.mxu0
        %v3519 = vadd.f32 %v3478, %v3518
        %3520 = vmatmul.f32.gmra.mxu0 %v3308
        %v3521 = vpop.f32.mrf.mxu0
        %v3522 = vadd.f32 %v3481, %v3521
        %3523 = vmatmul.f32.gmra.mxu0 %v3315
        %v3524 = vpop.f32.mrf.mxu0
        %v3525 = vadd.f32 %v3484, %v3524
        %3526 = vmatmul.f32.gmra.mxu0 %v3322
        %v3527 = vpop.f32.mrf.mxu0
        %v3528 = vadd.f32 %v3487, %v3527
        %3529 = vmatmul.f32.gmra.mxu0 %v3329
        %v3530 = vpop.f32.mrf.mxu0
        %v3531 = vadd.f32 %v3490, %v3530
        %3532 = vmatmul.f32.gmra.mxu0 %v3336
        %v3533 = vpop.f32.mrf.mxu0
        %v3534 = vadd.f32 %v3493, %v3533
        %3535 = vdwg.mxu0
        %3536 = vmatpush.msra.mxu0 %v2997
        %3537 = vmatpush.msra.mxu0 %v2996
        %3538 = vmatpush.msra.mxu0 %v2995
        %3539 = vmatpush.msra.mxu0 %v2994
        %3540 = vmatpush.msra.mxu0 %v2993
        %3541 = vmatpush.msra.mxu0 %v2992
        %3542 = vmatpush.msra.mxu0 %v2991
        %3543 = vmatpush.msra.mxu0 %v2990
        %3544 = vmatpush.msra.mxu0 %v2989
        %3545 = vmatpush.msra.mxu0 %v2988
        %3546 = vmatpush.msra.mxu0 %v2987
        %3547 = vmatpush.msra.mxu0 %v2986
        %3548 = vmatpush.msra.mxu0 %v2985
        %3549 = vmatpush.msra.mxu0 %v2984
        %3550 = vmatpush.msra.mxu0 %v2983
        %3551 = vmatpush.msra.mxu0 %v2982
        %3552 = vmatmul.f32.gmra.mxu0 %v3289
        %v3553 = vpop.f32.mrf.mxu0
        %v3554 = vadd.f32 %v3513, %v3553
        %3555 = vmatmul.f32.gmra.mxu0 %v3296
        %v3556 = vpop.f32.mrf.mxu0
        %v3557 = vadd.f32 %v3516, %v3556
        %3558 = vmatmul.f32.gmra.mxu0 %v3303
        %v3559 = vpop.f32.mrf.mxu0
        %v3560 = vadd.f32 %v3519, %v3559
        %3561 = vmatmul.f32.gmra.mxu0 %v3310
        %v3562 = vpop.f32.mrf.mxu0
        %v3563 = vadd.f32 %v3522, %v3562
        %3564 = vmatmul.f32.gmra.mxu0 %v3317
        %v3565 = vpop.f32.mrf.mxu0
        %v3566 = vadd.f32 %v3525, %v3565
        %3567 = vmatmul.f32.gmra.mxu0 %v3324
        %v3568 = vpop.f32.mrf.mxu0
        %v3569 = vadd.f32 %v3528, %v3568
        %3570 = vmatmul.f32.gmra.mxu0 %v3331
        %v3571 = vpop.f32.mrf.mxu0
        %v3572 = vadd.f32 %v3531, %v3571
        %3573 = vmatmul.f32.gmra.mxu0 %v3338
        %v3574 = vpop.f32.mrf.mxu0
        %v3575 = vadd.f32 %v3534, %v3574
        %3576 = vdwg.mxu0
        %3577 = vmatpush.msra.mxu0 %v3013
        %3578 = vmatpush.msra.mxu0 %v3012
        %3579 = vmatpush.msra.mxu0 %v3011
        %3580 = vmatpush.msra.mxu0 %v3010
        %3581 = vmatpush.msra.mxu0 %v3009
        %3582 = vmatpush.msra.mxu0 %v3008
        %3583 = vmatpush.msra.mxu0 %v3007
        %3584 = vmatpush.msra.mxu0 %v3006
        %3585 = vmatpush.msra.mxu0 %v3005
        %3586 = vmatpush.msra.mxu0 %v3004
        %3587 = vmatpush.msra.mxu0 %v3003
        %3588 = vmatpush.msra.mxu0 %v3002
        %3589 = vmatpush.msra.mxu0 %v3001
        %3590 = vmatpush.msra.mxu0 %v3000
        %3591 = vmatpush.msra.mxu0 %v2999
        %3592 = vmatpush.msra.mxu0 %v2998
        %3593 = vmatmul.f32.gmra.mxu0 %v3292
        %v3594 = vpop.f32.mrf.mxu0
        %v3595 = vadd.f32 %v3554, %v3594
        %3596 = vmatmul.f32.gmra.mxu0 %v3299
        %v3597 = vpop.f32.mrf.mxu0
        %v3598 = vadd.f32 %v3557, %v3597
        %3599 = vmatmul.f32.gmra.mxu0 %v3306
        %v3600 = vpop.f32.mrf.mxu0
        %v3601 = vadd.f32 %v3560, %v3600
        %3602 = vmatmul.f32.gmra.mxu0 %v3313
        %v3603 = vpop.f32.mrf.mxu0
        %v3604 = vadd.f32 %v3563, %v3603
        %3605 = vmatmul.f32.gmra.mxu0 %v3320
        %v3606 = vpop.f32.mrf.mxu0
        %v3607 = vadd.f32 %v3566, %v3606
        %3608 = vmatmul.f32.gmra.mxu0 %v3327
        %v3609 = vpop.f32.mrf.mxu0
        %v3610 = vadd.f32 %v3569, %v3609
        %3611 = vmatmul.f32.gmra.mxu0 %v3334
        %v3612 = vpop.f32.mrf.mxu0
        %v3613 = vadd.f32 %v3572, %v3612
        %3614 = vmatmul.f32.gmra.mxu0 %v3341
        %v3615 = vpop.f32.mrf.mxu0
        %v3616 = vadd.f32 %v3575, %v3615
        %3617 = vdwg.mxu0
        %3618 = vmatpush.msra.mxu0 %v3029
        %3619 = vmatpush.msra.mxu0 %v3028
        %3620 = vmatpush.msra.mxu0 %v3027
        %3621 = vmatpush.msra.mxu0 %v3026
        %3622 = vmatpush.msra.mxu0 %v3025
        %3623 = vmatpush.msra.mxu0 %v3024
        %3624 = vmatpush.msra.mxu0 %v3023
        %3625 = vmatpush.msra.mxu0 %v3022
        %3626 = vmatpush.msra.mxu0 %v3021
        %3627 = vmatpush.msra.mxu0 %v3020
        %3628 = vmatpush.msra.mxu0 %v3019
        %3629 = vmatpush.msra.mxu0 %v3018
        %3630 = vmatpush.msra.mxu0 %v3017
        %3631 = vmatpush.msra.mxu0 %v3016
        %3632 = vmatpush.msra.mxu0 %v3015
        %3633 = vmatpush.msra.mxu0 %v3014
        %3634 = vmatmul.f32.gmra.mxu0 %v3294
        %v3635 = vpop.f32.mrf.mxu0
        %v3636 = vadd.f32 %v3595, %v3635
        %3637 = vmatmul.f32.gmra.mxu0 %v3301
        %v3638 = vpop.f32.mrf.mxu0
        %v3639 = vadd.f32 %v3598, %v3638
        %3640 = vmatmul.f32.gmra.mxu0 %v3308
        %v3641 = vpop.f32.mrf.mxu0
        %v3642 = vadd.f32 %v3601, %v3641
        %3643 = vmatmul.f32.gmra.mxu0 %v3315
        %v3644 = vpop.f32.mrf.mxu0
        %v3645 = vadd.f32 %v3604, %v3644
        %3646 = vmatmul.f32.gmra.mxu0 %v3322
        %v3647 = vpop.f32.mrf.mxu0
        %v3648 = vadd.f32 %v3607, %v3647
        %3649 = vmatmul.f32.gmra.mxu0 %v3329
        %v3650 = vpop.f32.mrf.mxu0
        %v3651 = vadd.f32 %v3610, %v3650
        %3652 = vmatmul.f32.gmra.mxu0 %v3336
        %v3653 = vpop.f32.mrf.mxu0
        %v3654 = vadd.f32 %v3613, %v3653
        %3655 = vmatmul.f32.gmra.mxu0 %v385
        %v3656 = vpop.f32.mrf.mxu0
        %v3657 = vadd.f32 %v3616, %v3656
        %3658 = vdwg.mxu0
        %3659 = vmatpush.msra.mxu0 %v3045
        %3660 = vmatpush.msra.mxu0 %v3044
        %3661 = vmatpush.msra.mxu0 %v3043
        %3662 = vmatpush.msra.mxu0 %v3042
        %3663 = vmatpush.msra.mxu0 %v3041
        %3664 = vmatpush.msra.mxu0 %v3040
        %3665 = vmatpush.msra.mxu0 %v3039
        %3666 = vmatpush.msra.mxu0 %v3038
        %3667 = vmatpush.msra.mxu0 %v3037
        %3668 = vmatpush.msra.mxu0 %v3036
        %3669 = vmatpush.msra.mxu0 %v3035
        %3670 = vmatpush.msra.mxu0 %v3034
        %3671 = vmatpush.msra.mxu0 %v3033
        %3672 = vmatpush.msra.mxu0 %v3032
        %3673 = vmatpush.msra.mxu0 %v3031
        %3674 = vmatpush.msra.mxu0 %v3030
        %3675 = vmatmul.f32.gmra.mxu0 %v3296
        %v3676 = vpop.f32.mrf.mxu0
        %v3677 = vadd.f32 %v3636, %v3676
        %3678 = vmatmul.f32.gmra.mxu0 %v3303
        %v3679 = vpop.f32.mrf.mxu0
        %v3680 = vadd.f32 %v3639, %v3679
        %3681 = vmatmul.f32.gmra.mxu0 %v3310
        %v3682 = vpop.f32.mrf.mxu0
        %v3683 = vadd.f32 %v3642, %v3682
        %3684 = vmatmul.f32.gmra.mxu0 %v3317
        %v3685 = vpop.f32.mrf.mxu0
        %v3686 = vadd.f32 %v3645, %v3685
        %3687 = vmatmul.f32.gmra.mxu0 %v3324
        %v3688 = vpop.f32.mrf.mxu0
        %v3689 = vadd.f32 %v3648, %v3688
        %3690 = vmatmul.f32.gmra.mxu0 %v3331
        %v3691 = vpop.f32.mrf.mxu0
        %v3692 = vadd.f32 %v3651, %v3691
        %3693 = vmatmul.f32.gmra.mxu0 %v3338
        %v3694 = vpop.f32.mrf.mxu0
        %v3695 = vadd.f32 %v3654, %v3694
        %3696 = vmatmul.f32.gmra.mxu0 %v3282
        %v3697 = vpop.f32.mrf.mxu0
        %v3698 = vadd.f32 %v3657, %v3697
        %3699 = vdwg.mxu0
        %3700 = vmatpush.msra.mxu0 %v3061
        %3701 = vmatpush.msra.mxu0 %v3060
        %3702 = vmatpush.msra.mxu0 %v3059
        %3703 = vmatpush.msra.mxu0 %v3058
        %3704 = vmatpush.msra.mxu0 %v3057
        %3705 = vmatpush.msra.mxu0 %v3056
        %3706 = vmatpush.msra.mxu0 %v3055
        %3707 = vmatpush.msra.mxu0 %v3054
        %3708 = vmatpush.msra.mxu0 %v3053
        %3709 = vmatpush.msra.mxu0 %v3052
        %3710 = vmatpush.msra.mxu0 %v3051
        %3711 = vmatpush.msra.mxu0 %v3050
        %3712 = vmatpush.msra.mxu0 %v3049
        %3713 = vmatpush.msra.mxu0 %v3048
        %3714 = vmatpush.msra.mxu0 %v3047
        %3715 = vmatpush.msra.mxu0 %v3046
        %3716 = vmatmul.f32.gmra.mxu0 %v3299
        %v3717 = vpop.f32.mrf.mxu0
        %v3718 = vadd.f32 %v3677, %v3717
        %3719 = vmatmul.f32.gmra.mxu0 %v3306
        %v3720 = vpop.f32.mrf.mxu0
        %v3721 = vadd.f32 %v3680, %v3720
        %3722 = vmatmul.f32.gmra.mxu0 %v3313
        %v3723 = vpop.f32.mrf.mxu0
        %v3724 = vadd.f32 %v3683, %v3723
        %3725 = vmatmul.f32.gmra.mxu0 %v3320
        %v3726 = vpop.f32.mrf.mxu0
        %v3727 = vadd.f32 %v3686, %v3726
        %3728 = vmatmul.f32.gmra.mxu0 %v3327
        %v3729 = vpop.f32.mrf.mxu0
        %v3730 = vadd.f32 %v3689, %v3729
        %3731 = vmatmul.f32.gmra.mxu0 %v3334
        %v3732 = vpop.f32.mrf.mxu0
        %v3733 = vadd.f32 %v3692, %v3732
        %3734 = vmatmul.f32.gmra.mxu0 %v3341
        %v3735 = vpop.f32.mrf.mxu0
        %v3736 = vadd.f32 %v3695, %v3735
        %3737 = vmatmul.f32.gmra.mxu0 %v3285
        %v3738 = vpop.f32.mrf.mxu0
        %v3739 = vadd.f32 %v3698, %v3738
        %3740 = vdwg.mxu0
        %vm3741 = vcmp.ge.f32.partialorder %v3718, 0.0
        %vm3742 = vcmp.ge.f32.partialorder %v3721, 0.0
        %vm3743 = vcmp.ge.f32.partialorder %v3724, 0.0
        %vm3744 = vcmp.ge.f32.partialorder %v3727, 0.0
        %vm3745 = vcmp.ge.f32.partialorder %v3730, 0.0
        %vm3746 = vcmp.ge.f32.partialorder %v3733, 0.0
        %vm3747 = vcmp.ge.f32.partialorder %v3736, 0.0
        %vm3748 = vcmp.ge.f32.partialorder %v3739, 0.0
        %v3749 = vmul.f32 %v3718, 0.01
        %v3750 = vmul.f32 %v3721, 0.01
        %v3751 = vmul.f32 %v3724, 0.01
        %v3752 = vmul.f32 %v3727, 0.01
        %v3753 = vmul.f32 %v3730, 0.01
        %v3754 = vmul.f32 %v3733, 0.01
        %v3755 = vmul.f32 %v3736, 0.01
        %v3756 = vmul.f32 %v3739, 0.01
        %v3757 = vsel %vm3741, %v3718, %v3749
        %v3758 = vsel %vm3742, %v3721, %v3750
        %v3759 = vsel %vm3743, %v3724, %v3751
        %v3760 = vsel %vm3744, %v3727, %v3752
        %v3761 = vsel %vm3745, %v3730, %v3753
        %v3762 = vsel %vm3746, %v3733, %v3754
        %v3763 = vsel %vm3747, %v3736, %v3755
        %v3764 = vsel %vm3748, %v3739, %v3756
        %v3773 = vrot.slane %v3757, 2
        %v3774 = vrot.slane %v3757, 4
        %v3775 = vrot.slane %v3757, 6
        %v3776 = vrot.slane %v3758, 2
        %v3777 = vrot.slane %v3758, 4
        %v3778 = vrot.slane %v3758, 6
        %v3779 = vrot.slane %v3759, 2
        %v3780 = vrot.slane %v3759, 4
        %v3781 = vrot.slane %v3759, 6
        %v3782 = vrot.slane %v3760, 2
        %v3783 = vrot.slane %v3760, 4
        %v3784 = vrot.slane %v3760, 6
        %v3785 = vrot.slane %v3761, 2
        %v3786 = vrot.slane %v3761, 4
        %v3787 = vrot.slane %v3761, 6
        %v3788 = vrot.slane %v3762, 2
        %v3789 = vrot.slane %v3762, 4
        %v3790 = vrot.slane %v3762, 6
        %v3791 = vrot.slane %v3763, 2
        %v3792 = vrot.slane %v3763, 4
        %v3793 = vrot.slane %v3763, 6
        %v3794 = vrot.slane %v3764, 2
        %v3795 = vrot.slane %v3764, 4
        %v3796 = vrot.slane %v3764, 6
        %v3821 = vrot.slane %v3757, 7
        %v3822 = vrot.slane %v3821, 2
        %v3823 = vrot.slane %v3773, 7
        %v3824 = vrot.slane %v3823, 2
        %v3825 = vrot.slane %v3774, 7
        %v3826 = vrot.slane %v3825, 2
        %v3827 = vrot.slane %v3775, 7
        %v3828 = vrot.slane %v3827, 2
        %v3829 = vrot.slane %v3758, 7
        %v3830 = vrot.slane %v3829, 2
        %v3831 = vrot.slane %v3776, 7
        %v3832 = vrot.slane %v3831, 2
        %v3833 = vrot.slane %v3777, 7
        %v3834 = vrot.slane %v3833, 2
        %v3835 = vrot.slane %v3778, 7
        %v3836 = vrot.slane %v3835, 2
        %v3837 = vrot.slane %v3759, 7
        %v3838 = vrot.slane %v3837, 2
        %v3839 = vrot.slane %v3779, 7
        %v3840 = vrot.slane %v3839, 2
        %v3841 = vrot.slane %v3780, 7
        %v3842 = vrot.slane %v3841, 2
        %v3843 = vrot.slane %v3781, 7
        %v3844 = vrot.slane %v3843, 2
        %v3845 = vrot.slane %v3760, 7
        %v3846 = vrot.slane %v3845, 2
        %v3847 = vrot.slane %v3782, 7
        %v3848 = vrot.slane %v3847, 2
        %v3849 = vrot.slane %v3783, 7
        %v3850 = vrot.slane %v3849, 2
        %v3851 = vrot.slane %v3784, 7
        %v3852 = vrot.slane %v3851, 2
        %v3853 = vrot.slane %v3761, 7
        %v3854 = vrot.slane %v3853, 2
        %v3855 = vrot.slane %v3785, 7
        %v3856 = vrot.slane %v3855, 2
        %v3857 = vrot.slane %v3786, 7
        %v3858 = vrot.slane %v3857, 2
        %v3859 = vrot.slane %v3787, 7
        %v3860 = vrot.slane %v3859, 2
        %v3861 = vrot.slane %v3762, 7
        %v3862 = vrot.slane %v3861, 2
        %v3863 = vrot.slane %v3788, 7
        %v3864 = vrot.slane %v3863, 2
        %v3865 = vrot.slane %v3789, 7
        %v3866 = vrot.slane %v3865, 2
        %v3867 = vrot.slane %v3790, 7
        %v3868 = vrot.slane %v3867, 2
        %v3869 = vrot.slane %v3763, 7
        %v3870 = vrot.slane %v3869, 2
        %v3871 = vrot.slane %v3791, 7
        %v3872 = vrot.slane %v3871, 2
        %v3873 = vrot.slane %v3792, 7
        %v3874 = vrot.slane %v3873, 2
        %v3875 = vrot.slane %v3793, 7
        %v3876 = vrot.slane %v3875, 2
        %v3877 = vrot.slane %v3764, 7
        %v3878 = vrot.slane %v3877, 2
        %v3879 = vrot.slane %v3794, 7
        %v3880 = vrot.slane %v3879, 2
        %v3881 = vrot.slane %v3795, 7
        %v3882 = vrot.slane %v3881, 2
        %v3883 = vrot.slane %v3796, 7
        %v3884 = vrot.slane %v3883, 2
        %v3917 = vmax.f32 %v3757, %v3822
        %v3918 = vmax.f32 %v3773, %v3824
        %v3919 = vmax.f32 %v3774, %v3826
        %v3920 = vmax.f32 %v3775, %v3828
        %v3921 = vmax.f32 %v3758, %v3830
        %v3922 = vmax.f32 %v3776, %v3832
        %v3923 = vmax.f32 %v3777, %v3834
        %v3924 = vmax.f32 %v3778, %v3836
        %v3925 = vmax.f32 %v3759, %v3838
        %v3926 = vmax.f32 %v3779, %v3840
        %v3927 = vmax.f32 %v3780, %v3842
        %v3928 = vmax.f32 %v3781, %v3844
        %v3929 = vmax.f32 %v3760, %v3846
        %v3930 = vmax.f32 %v3782, %v3848
        %v3931 = vmax.f32 %v3783, %v3850
        %v3932 = vmax.f32 %v3784, %v3852
        %v3933 = vmax.f32 %v3761, %v3854
        %v3934 = vmax.f32 %v3785, %v3856
        %v3935 = vmax.f32 %v3786, %v3858
        %v3936 = vmax.f32 %v3787, %v3860
        %v3937 = vmax.f32 %v3762, %v3862
        %v3938 = vmax.f32 %v3788, %v3864
        %v3939 = vmax.f32 %v3789, %v3866
        %v3940 = vmax.f32 %v3790, %v3868
        %v3941 = vmax.f32 %v3763, %v3870
        %v3942 = vmax.f32 %v3791, %v3872
        %v3943 = vmax.f32 %v3792, %v3874
        %v3944 = vmax.f32 %v3793, %v3876
        %v3945 = vmax.f32 %v3764, %v3878
        %v3946 = vmax.f32 %v3794, %v3880
        %v3947 = vmax.f32 %v3795, %v3882
        %v3948 = vmax.f32 %v3796, %v3884
        %v3949 = vmax.f32 %v3917, %v3921
        %v3950 = vmax.f32 %v3918, %v3922
        %v3951 = vmax.f32 %v3919, %v3923
        %v3952 = vmax.f32 %v3920, %v3924
        %v3953 = vmax.f32 %v3925, %v3929
        %v3954 = vmax.f32 %v3926, %v3930
        %v3955 = vmax.f32 %v3927, %v3931
        %v3956 = vmax.f32 %v3928, %v3932
        %v3957 = vmax.f32 %v3933, %v3937
        %v3958 = vmax.f32 %v3934, %v3938
        %v3959 = vmax.f32 %v3935, %v3939
        %v3960 = vmax.f32 %v3936, %v3940
        %v3961 = vmax.f32 %v3941, %v3945
        %v3962 = vmax.f32 %v3942, %v3946
        %v3963 = vmax.f32 %v3943, %v3947
        %v3964 = vmax.f32 %v3944, %v3948
        %v3965 = vld [vmem:[#allocation5] sm:$0xff]
        %v3966 = vld [vmem:[#allocation5 + $0x8] sm:$0xff]
        %v3967 = vld [vmem:[#allocation5 + $0x10] sm:$0xff]
        %v3968 = vld [vmem:[#allocation5 + $0x18] sm:$0xff]
        %v3969 = vld [vmem:[#allocation5 + $0x20] sm:$0xff]
        %v3970 = vld [vmem:[#allocation5 + $0x28] sm:$0xff]
        %v3971 = vld [vmem:[#allocation5 + $0x30] sm:$0xff]
        %v3972 = vld [vmem:[#allocation5 + $0x38] sm:$0xff]
        %v3973 = vld [vmem:[#allocation5 + $0x40] sm:$0xff]
        %v3974 = vld [vmem:[#allocation5 + $0x48] sm:$0xff]
        %v3975 = vld [vmem:[#allocation5 + $0x50] sm:$0xff]
        %v3976 = vld [vmem:[#allocation5 + $0x58] sm:$0xff]
        %v3977 = vld [vmem:[#allocation5 + $0x60] sm:$0xff]
        %v3978 = vld [vmem:[#allocation5 + $0x68] sm:$0xff]
        %v3979 = vld [vmem:[#allocation5 + $0x70] sm:$0xff]
        %v3980 = vld [vmem:[#allocation5 + $0x78] sm:$0xff]
        %v3981 = vld [vmem:[#allocation5 + $0x80] sm:$0xff]
        %v3982 = vld [vmem:[#allocation5 + $0x88] sm:$0xff]
        %v3983 = vld [vmem:[#allocation5 + $0x90] sm:$0xff]
        %v3984 = vld [vmem:[#allocation5 + $0x98] sm:$0xff]
        %v3985 = vld [vmem:[#allocation5 + $0xa0] sm:$0xff]
        %v3986 = vld [vmem:[#allocation5 + $0xa8] sm:$0xff]
        %v3987 = vld [vmem:[#allocation5 + $0xb0] sm:$0xff]
        %v3988 = vld [vmem:[#allocation5 + $0xb8] sm:$0xff]
        %v3989 = vld [vmem:[#allocation5 + $0xc0] sm:$0xff]
        %v3990 = vld [vmem:[#allocation5 + $0xc8] sm:$0xff]
        %v3991 = vld [vmem:[#allocation5 + $0xd0] sm:$0xff]
        %v3992 = vld [vmem:[#allocation5 + $0xd8] sm:$0xff]
        %v3993 = vld [vmem:[#allocation5 + $0xe0] sm:$0xff]
        %v3994 = vld [vmem:[#allocation5 + $0xe8] sm:$0xff]
        %v3995 = vld [vmem:[#allocation5 + $0xf0] sm:$0xff]
        %v3996 = vld [vmem:[#allocation5 + $0xf8] sm:$0xff]
        %v3997 = vld [vmem:[#allocation5 + $0x100] sm:$0xff]
        %v3998 = vld [vmem:[#allocation5 + $0x108] sm:$0xff]
        %v3999 = vld [vmem:[#allocation5 + $0x110] sm:$0xff]
        %v4000 = vld [vmem:[#allocation5 + $0x118] sm:$0xff]
        %v4001 = vld [vmem:[#allocation5 + $0x120] sm:$0xff]
        %v4002 = vld [vmem:[#allocation5 + $0x128] sm:$0xff]
        %v4003 = vld [vmem:[#allocation5 + $0x130] sm:$0xff]
        %v4004 = vld [vmem:[#allocation5 + $0x138] sm:$0xff]
        %v4005 = vld [vmem:[#allocation5 + $0x140] sm:$0xff]
        %v4006 = vld [vmem:[#allocation5 + $0x148] sm:$0xff]
        %v4007 = vld [vmem:[#allocation5 + $0x150] sm:$0xff]
        %v4008 = vld [vmem:[#allocation5 + $0x158] sm:$0xff]
        %v4009 = vld [vmem:[#allocation5 + $0x160] sm:$0xff]
        %v4010 = vld [vmem:[#allocation5 + $0x168] sm:$0xff]
        %v4011 = vld [vmem:[#allocation5 + $0x170] sm:$0xff]
        %v4012 = vld [vmem:[#allocation5 + $0x178] sm:$0xff]
        %v4013 = vld [vmem:[#allocation5 + $0x180] sm:$0xff]
        %v4014 = vld [vmem:[#allocation5 + $0x188] sm:$0xff]
        %v4015 = vld [vmem:[#allocation5 + $0x190] sm:$0xff]
        %v4016 = vld [vmem:[#allocation5 + $0x198] sm:$0xff]
        %v4017 = vld [vmem:[#allocation5 + $0x1a0] sm:$0xff]
        %v4018 = vld [vmem:[#allocation5 + $0x1a8] sm:$0xff]
        %v4019 = vld [vmem:[#allocation5 + $0x1b0] sm:$0xff]
        %v4020 = vld [vmem:[#allocation5 + $0x1b8] sm:$0xff]
        %v4021 = vld [vmem:[#allocation5 + $0x1c0] sm:$0xff]
        %v4022 = vld [vmem:[#allocation5 + $0x1c8] sm:$0xff]
        %v4023 = vld [vmem:[#allocation5 + $0x1d0] sm:$0xff]
        %v4024 = vld [vmem:[#allocation5 + $0x1d8] sm:$0xff]
        %v4025 = vld [vmem:[#allocation5 + $0x1e0] sm:$0xff]
        %v4026 = vld [vmem:[#allocation5 + $0x1e8] sm:$0xff]
        %v4027 = vld [vmem:[#allocation5 + $0x1f0] sm:$0xff]
        %v4028 = vld [vmem:[#allocation5 + $0x1f8] sm:$0xff]
        %v4029 = vld [vmem:[#allocation5 + $0x200] sm:$0xff]
        %v4030 = vld [vmem:[#allocation5 + $0x208] sm:$0xff]
        %v4031 = vld [vmem:[#allocation5 + $0x210] sm:$0xff]
        %v4032 = vld [vmem:[#allocation5 + $0x218] sm:$0xff]
        %v4033 = vld [vmem:[#allocation5 + $0x220] sm:$0xff]
        %v4034 = vld [vmem:[#allocation5 + $0x228] sm:$0xff]
        %v4035 = vld [vmem:[#allocation5 + $0x230] sm:$0xff]
        %v4036 = vld [vmem:[#allocation5 + $0x238] sm:$0xff]
        %v4037 = vld [vmem:[#allocation5 + $0x240] sm:$0xff]
        %v4038 = vld [vmem:[#allocation5 + $0x248] sm:$0xff]
        %v4039 = vld [vmem:[#allocation5 + $0x250] sm:$0xff]
        %v4040 = vld [vmem:[#allocation5 + $0x258] sm:$0xff]
        %v4041 = vld [vmem:[#allocation5 + $0x260] sm:$0xff]
        %v4042 = vld [vmem:[#allocation5 + $0x268] sm:$0xff]
        %v4043 = vld [vmem:[#allocation5 + $0x270] sm:$0xff]
        %v4044 = vld [vmem:[#allocation5 + $0x278] sm:$0xff]
        %v4045 = vld [vmem:[#allocation5 + $0x280] sm:$0xff]
        %v4046 = vld [vmem:[#allocation5 + $0x288] sm:$0xff]
        %v4047 = vld [vmem:[#allocation5 + $0x290] sm:$0xff]
        %v4048 = vld [vmem:[#allocation5 + $0x298] sm:$0xff]
        %v4049 = vld [vmem:[#allocation5 + $0x2a0] sm:$0xff]
        %v4050 = vld [vmem:[#allocation5 + $0x2a8] sm:$0xff]
        %v4051 = vld [vmem:[#allocation5 + $0x2b0] sm:$0xff]
        %v4052 = vld [vmem:[#allocation5 + $0x2b8] sm:$0xff]
        %v4053 = vld [vmem:[#allocation5 + $0x2c0] sm:$0xff]
        %v4054 = vld [vmem:[#allocation5 + $0x2c8] sm:$0xff]
        %v4055 = vld [vmem:[#allocation5 + $0x2d0] sm:$0xff]
        %v4056 = vld [vmem:[#allocation5 + $0x2d8] sm:$0xff]
        %v4057 = vld [vmem:[#allocation5 + $0x2e0] sm:$0xff]
        %v4058 = vld [vmem:[#allocation5 + $0x2e8] sm:$0xff]
        %v4059 = vld [vmem:[#allocation5 + $0x2f0] sm:$0xff]
        %v4060 = vld [vmem:[#allocation5 + $0x2f8] sm:$0xff]
        %v4061 = vld [vmem:[#allocation5 + $0x300] sm:$0xff]
        %v4062 = vld [vmem:[#allocation5 + $0x308] sm:$0xff]
        %v4063 = vld [vmem:[#allocation5 + $0x310] sm:$0xff]
        %v4064 = vld [vmem:[#allocation5 + $0x318] sm:$0xff]
        %v4065 = vld [vmem:[#allocation5 + $0x320] sm:$0xff]
        %v4066 = vld [vmem:[#allocation5 + $0x328] sm:$0xff]
        %v4067 = vld [vmem:[#allocation5 + $0x330] sm:$0xff]
        %v4068 = vld [vmem:[#allocation5 + $0x338] sm:$0xff]
        %v4069 = vld [vmem:[#allocation5 + $0x340] sm:$0xff]
        %v4070 = vld [vmem:[#allocation5 + $0x348] sm:$0xff]
        %v4071 = vld [vmem:[#allocation5 + $0x350] sm:$0xff]
        %v4072 = vld [vmem:[#allocation5 + $0x358] sm:$0xff]
        %v4073 = vld [vmem:[#allocation5 + $0x360] sm:$0xff]
        %v4074 = vld [vmem:[#allocation5 + $0x368] sm:$0xff]
        %v4075 = vld [vmem:[#allocation5 + $0x370] sm:$0xff]
        %v4076 = vld [vmem:[#allocation5 + $0x378] sm:$0xff]
        %v4077 = vld [vmem:[#allocation5 + $0x380] sm:$0xff]
        %v4078 = vld [vmem:[#allocation5 + $0x388] sm:$0xff]
        %v4079 = vld [vmem:[#allocation5 + $0x390] sm:$0xff]
        %v4080 = vld [vmem:[#allocation5 + $0x398] sm:$0xff]
        %v4081 = vld [vmem:[#allocation5 + $0x3a0] sm:$0xff]
        %v4082 = vld [vmem:[#allocation5 + $0x3a8] sm:$0xff]
        %v4083 = vld [vmem:[#allocation5 + $0x3b0] sm:$0xff]
        %v4084 = vld [vmem:[#allocation5 + $0x3b8] sm:$0xff]
        %v4085 = vld [vmem:[#allocation5 + $0x3c0] sm:$0xff]
        %v4086 = vld [vmem:[#allocation5 + $0x3c8] sm:$0xff]
        %v4087 = vld [vmem:[#allocation5 + $0x3d0] sm:$0xff]
        %v4088 = vld [vmem:[#allocation5 + $0x3d8] sm:$0xff]
        %v4089 = vld [vmem:[#allocation5 + $0x3e0] sm:$0xff]
        %v4090 = vld [vmem:[#allocation5 + $0x3e8] sm:$0xff]
        %v4091 = vld [vmem:[#allocation5 + $0x3f0] sm:$0xff]
        %v4092 = vld [vmem:[#allocation5 + $0x3f8] sm:$0xff]
        %v4093 = vld [vmem:[#allocation5 + $0x400] sm:$0xff]
        %v4094 = vld [vmem:[#allocation5 + $0x408] sm:$0xff]
        %v4095 = vld [vmem:[#allocation5 + $0x410] sm:$0xff]
        %v4096 = vld [vmem:[#allocation5 + $0x418] sm:$0xff]
        %v4097 = vld [vmem:[#allocation5 + $0x420] sm:$0xff]
        %v4098 = vld [vmem:[#allocation5 + $0x428] sm:$0xff]
        %v4099 = vld [vmem:[#allocation5 + $0x430] sm:$0xff]
        %v4100 = vld [vmem:[#allocation5 + $0x438] sm:$0xff]
        %v4101 = vld [vmem:[#allocation5 + $0x440] sm:$0xff]
        %v4102 = vld [vmem:[#allocation5 + $0x448] sm:$0xff]
        %v4103 = vld [vmem:[#allocation5 + $0x450] sm:$0xff]
        %v4104 = vld [vmem:[#allocation5 + $0x458] sm:$0xff]
        %v4105 = vld [vmem:[#allocation5 + $0x460] sm:$0xff]
        %v4106 = vld [vmem:[#allocation5 + $0x468] sm:$0xff]
        %v4107 = vld [vmem:[#allocation5 + $0x470] sm:$0xff]
        %v4108 = vld [vmem:[#allocation5 + $0x478] sm:$0xff]
        %v4109 = vld [vmem:[#allocation5 + $0x480] sm:$0xff]
        %v4110 = vld [vmem:[#allocation5 + $0x488] sm:$0xff]
        %v4111 = vld [vmem:[#allocation5 + $0x490] sm:$0xff]
        %v4112 = vld [vmem:[#allocation5 + $0x498] sm:$0xff]
        %v4113 = vld [vmem:[#allocation5 + $0x4a0] sm:$0xff]
        %v4114 = vld [vmem:[#allocation5 + $0x4a8] sm:$0xff]
        %v4115 = vld [vmem:[#allocation5 + $0x4b0] sm:$0xff]
        %v4116 = vld [vmem:[#allocation5 + $0x4b8] sm:$0xff]
        %v4117 = vld [vmem:[#allocation5 + $0x4c0] sm:$0xff]
        %v4118 = vld [vmem:[#allocation5 + $0x4c8] sm:$0xff]
        %v4119 = vld [vmem:[#allocation5 + $0x4d0] sm:$0xff]
        %v4120 = vld [vmem:[#allocation5 + $0x4d8] sm:$0xff]
        %v4121 = vld [vmem:[#allocation5 + $0x4e0] sm:$0xff]
        %v4122 = vld [vmem:[#allocation5 + $0x4e8] sm:$0xff]
        %v4123 = vld [vmem:[#allocation5 + $0x4f0] sm:$0xff]
        %v4124 = vld [vmem:[#allocation5 + $0x4f8] sm:$0xff]
        %v4125 = vld [vmem:[#allocation5 + $0x500] sm:$0xff]
        %v4126 = vld [vmem:[#allocation5 + $0x508] sm:$0xff]
        %v4127 = vld [vmem:[#allocation5 + $0x510] sm:$0xff]
        %v4128 = vld [vmem:[#allocation5 + $0x518] sm:$0xff]
        %v4129 = vld [vmem:[#allocation5 + $0x520] sm:$0xff]
        %v4130 = vld [vmem:[#allocation5 + $0x528] sm:$0xff]
        %v4131 = vld [vmem:[#allocation5 + $0x530] sm:$0xff]
        %v4132 = vld [vmem:[#allocation5 + $0x538] sm:$0xff]
        %v4133 = vld [vmem:[#allocation5 + $0x540] sm:$0xff]
        %v4134 = vld [vmem:[#allocation5 + $0x548] sm:$0xff]
        %v4135 = vld [vmem:[#allocation5 + $0x550] sm:$0xff]
        %v4136 = vld [vmem:[#allocation5 + $0x558] sm:$0xff]
        %v4137 = vld [vmem:[#allocation5 + $0x560] sm:$0xff]
        %v4138 = vld [vmem:[#allocation5 + $0x568] sm:$0xff]
        %v4139 = vld [vmem:[#allocation5 + $0x570] sm:$0xff]
        %v4140 = vld [vmem:[#allocation5 + $0x578] sm:$0xff]
        %v4141 = vld [vmem:[#allocation5 + $0x580] sm:$0xff]
        %v4142 = vld [vmem:[#allocation5 + $0x588] sm:$0xff]
        %v4143 = vld [vmem:[#allocation5 + $0x590] sm:$0xff]
        %v4144 = vld [vmem:[#allocation5 + $0x598] sm:$0xff]
        %v4145 = vld [vmem:[#allocation5 + $0x5a0] sm:$0xff]
        %v4146 = vld [vmem:[#allocation5 + $0x5a8] sm:$0xff]
        %v4147 = vld [vmem:[#allocation5 + $0x5b0] sm:$0xff]
        %v4148 = vld [vmem:[#allocation5 + $0x5b8] sm:$0xff]
        %v4149 = vld [vmem:[#allocation5 + $0x5c0] sm:$0xff]
        %v4150 = vld [vmem:[#allocation5 + $0x5c8] sm:$0xff]
        %v4151 = vld [vmem:[#allocation5 + $0x5d0] sm:$0xff]
        %v4152 = vld [vmem:[#allocation5 + $0x5d8] sm:$0xff]
        %v4153 = vld [vmem:[#allocation5 + $0x5e0] sm:$0xff]
        %v4154 = vld [vmem:[#allocation5 + $0x5e8] sm:$0xff]
        %v4155 = vld [vmem:[#allocation5 + $0x5f0] sm:$0xff]
        %v4156 = vld [vmem:[#allocation5 + $0x5f8] sm:$0xff]
        %v4157 = vld [vmem:[#allocation5 + $0x600] sm:$0xff]
        %v4158 = vld [vmem:[#allocation5 + $0x608] sm:$0xff]
        %v4159 = vld [vmem:[#allocation5 + $0x610] sm:$0xff]
        %v4160 = vld [vmem:[#allocation5 + $0x618] sm:$0xff]
        %v4161 = vld [vmem:[#allocation5 + $0x620] sm:$0xff]
        %v4162 = vld [vmem:[#allocation5 + $0x628] sm:$0xff]
        %v4163 = vld [vmem:[#allocation5 + $0x630] sm:$0xff]
        %v4164 = vld [vmem:[#allocation5 + $0x638] sm:$0xff]
        %v4165 = vld [vmem:[#allocation5 + $0x640] sm:$0xff]
        %v4166 = vld [vmem:[#allocation5 + $0x648] sm:$0xff]
        %v4167 = vld [vmem:[#allocation5 + $0x650] sm:$0xff]
        %v4168 = vld [vmem:[#allocation5 + $0x658] sm:$0xff]
        %v4169 = vld [vmem:[#allocation5 + $0x660] sm:$0xff]
        %v4170 = vld [vmem:[#allocation5 + $0x668] sm:$0xff]
        %v4171 = vld [vmem:[#allocation5 + $0x670] sm:$0xff]
        %v4172 = vld [vmem:[#allocation5 + $0x678] sm:$0xff]
        %v4173 = vld [vmem:[#allocation5 + $0x680] sm:$0xff]
        %v4174 = vld [vmem:[#allocation5 + $0x688] sm:$0xff]
        %v4175 = vld [vmem:[#allocation5 + $0x690] sm:$0xff]
        %v4176 = vld [vmem:[#allocation5 + $0x698] sm:$0xff]
        %v4177 = vld [vmem:[#allocation5 + $0x6a0] sm:$0xff]
        %v4178 = vld [vmem:[#allocation5 + $0x6a8] sm:$0xff]
        %v4179 = vld [vmem:[#allocation5 + $0x6b0] sm:$0xff]
        %v4180 = vld [vmem:[#allocation5 + $0x6b8] sm:$0xff]
        %v4181 = vld [vmem:[#allocation5 + $0x6c0] sm:$0xff]
        %v4182 = vld [vmem:[#allocation5 + $0x6c8] sm:$0xff]
        %v4183 = vld [vmem:[#allocation5 + $0x6d0] sm:$0xff]
        %v4184 = vld [vmem:[#allocation5 + $0x6d8] sm:$0xff]
        %v4185 = vld [vmem:[#allocation5 + $0x6e0] sm:$0xff]
        %v4186 = vld [vmem:[#allocation5 + $0x6e8] sm:$0xff]
        %v4187 = vld [vmem:[#allocation5 + $0x6f0] sm:$0xff]
        %v4188 = vld [vmem:[#allocation5 + $0x6f8] sm:$0xff]
        %v4189 = vld [vmem:[#allocation5 + $0x700] sm:$0xff]
        %v4190 = vld [vmem:[#allocation5 + $0x708] sm:$0xff]
        %v4191 = vld [vmem:[#allocation5 + $0x710] sm:$0xff]
        %v4192 = vld [vmem:[#allocation5 + $0x718] sm:$0xff]
        %v4193 = vld [vmem:[#allocation5 + $0x720] sm:$0xff]
        %v4194 = vld [vmem:[#allocation5 + $0x728] sm:$0xff]
        %v4195 = vld [vmem:[#allocation5 + $0x730] sm:$0xff]
        %v4196 = vld [vmem:[#allocation5 + $0x738] sm:$0xff]
        %v4197 = vld [vmem:[#allocation5 + $0x740] sm:$0xff]
        %v4198 = vld [vmem:[#allocation5 + $0x748] sm:$0xff]
        %v4199 = vld [vmem:[#allocation5 + $0x750] sm:$0xff]
        %v4200 = vld [vmem:[#allocation5 + $0x758] sm:$0xff]
        %v4201 = vld [vmem:[#allocation5 + $0x760] sm:$0xff]
        %v4202 = vld [vmem:[#allocation5 + $0x768] sm:$0xff]
        %v4203 = vld [vmem:[#allocation5 + $0x770] sm:$0xff]
        %v4204 = vld [vmem:[#allocation5 + $0x778] sm:$0xff]
        %v4205 = vld [vmem:[#allocation5 + $0x780] sm:$0xff]
        %v4206 = vld [vmem:[#allocation5 + $0x788] sm:$0xff]
        %v4207 = vld [vmem:[#allocation5 + $0x790] sm:$0xff]
        %v4208 = vld [vmem:[#allocation5 + $0x798] sm:$0xff]
        %v4209 = vld [vmem:[#allocation5 + $0x7a0] sm:$0xff]
        %v4210 = vld [vmem:[#allocation5 + $0x7a8] sm:$0xff]
        %v4211 = vld [vmem:[#allocation5 + $0x7b0] sm:$0xff]
        %v4212 = vld [vmem:[#allocation5 + $0x7b8] sm:$0xff]
        %v4213 = vld [vmem:[#allocation5 + $0x7c0] sm:$0xff]
        %v4214 = vld [vmem:[#allocation5 + $0x7c8] sm:$0xff]
        %v4215 = vld [vmem:[#allocation5 + $0x7d0] sm:$0xff]
        %v4216 = vld [vmem:[#allocation5 + $0x7d8] sm:$0xff]
        %v4217 = vld [vmem:[#allocation5 + $0x7e0] sm:$0xff]
        %v4218 = vld [vmem:[#allocation5 + $0x7e8] sm:$0xff]
        %v4219 = vld [vmem:[#allocation5 + $0x7f0] sm:$0xff]
        %v4220 = vld [vmem:[#allocation5 + $0x7f8] sm:$0xff]
        %v4221 = vld [vmem:[%s6] sm:$0x1]
        %4222 = vmatpush.msra.mxu0 %v3980
        %4223 = vmatpush.msra.mxu0 %v3979
        %4224 = vmatpush.msra.mxu0 %v3978
        %4225 = vmatpush.msra.mxu0 %v3977
        %4226 = vmatpush.msra.mxu0 %v3976
        %4227 = vmatpush.msra.mxu0 %v3975
        %4228 = vmatpush.msra.mxu0 %v3974
        %4229 = vmatpush.msra.mxu0 %v3973
        %4230 = vmatpush.msra.mxu0 %v3972
        %4231 = vmatpush.msra.mxu0 %v3971
        %4232 = vmatpush.msra.mxu0 %v3970
        %4233 = vmatpush.msra.mxu0 %v3969
        %4234 = vmatpush.msra.mxu0 %v3968
        %4235 = vmatpush.msra.mxu0 %v3967
        %4236 = vmatpush.msra.mxu0 %v3966
        %4237 = vmatpush.msra.mxu0 %v3965
        %4238 = vmatmul.f32.gmra.mxu0 %v3949
        %v4239 = vpop.f32.mrf.mxu0
        %v4240 = vadd.f32 %v4221, %v4239
        %4241 = vdwg.mxu0
        %4242 = vmatpush.msra.mxu0 %v3996
        %4243 = vmatpush.msra.mxu0 %v3995
        %4244 = vmatpush.msra.mxu0 %v3994
        %4245 = vmatpush.msra.mxu0 %v3993
        %4246 = vmatpush.msra.mxu0 %v3992
        %4247 = vmatpush.msra.mxu0 %v3991
        %4248 = vmatpush.msra.mxu0 %v3990
        %4249 = vmatpush.msra.mxu0 %v3989
        %4250 = vmatpush.msra.mxu0 %v3988
        %4251 = vmatpush.msra.mxu0 %v3987
        %4252 = vmatpush.msra.mxu0 %v3986
        %4253 = vmatpush.msra.mxu0 %v3985
        %4254 = vmatpush.msra.mxu0 %v3984
        %4255 = vmatpush.msra.mxu0 %v3983
        %4256 = vmatpush.msra.mxu0 %v3982
        %4257 = vmatpush.msra.mxu0 %v3981
        %4258 = vmatmul.f32.gmra.mxu0 %v3950
        %v4259 = vpop.f32.mrf.mxu0
        %v4260 = vadd.f32 %v4240, %v4259
        %4261 = vdwg.mxu0
        %4262 = vmatpush.msra.mxu0 %v4012
        %4263 = vmatpush.msra.mxu0 %v4011
        %4264 = vmatpush.msra.mxu0 %v4010
        %4265 = vmatpush.msra.mxu0 %v4009
        %4266 = vmatpush.msra.mxu0 %v4008
        %4267 = vmatpush.msra.mxu0 %v4007
        %4268 = vmatpush.msra.mxu0 %v4006
        %4269 = vmatpush.msra.mxu0 %v4005
        %4270 = vmatpush.msra.mxu0 %v4004
        %4271 = vmatpush.msra.mxu0 %v4003
        %4272 = vmatpush.msra.mxu0 %v4002
        %4273 = vmatpush.msra.mxu0 %v4001
        %4274 = vmatpush.msra.mxu0 %v4000
        %4275 = vmatpush.msra.mxu0 %v3999
        %4276 = vmatpush.msra.mxu0 %v3998
        %4277 = vmatpush.msra.mxu0 %v3997
        %4278 = vmatmul.f32.gmra.mxu0 %v3951
        %v4279 = vpop.f32.mrf.mxu0
        %v4280 = vadd.f32 %v4260, %v4279
        %4281 = vdwg.mxu0
        %4282 = vmatpush.msra.mxu0 %v4028
        %4283 = vmatpush.msra.mxu0 %v4027
        %4284 = vmatpush.msra.mxu0 %v4026
        %4285 = vmatpush.msra.mxu0 %v4025
        %4286 = vmatpush.msra.mxu0 %v4024
        %4287 = vmatpush.msra.mxu0 %v4023
        %4288 = vmatpush.msra.mxu0 %v4022
        %4289 = vmatpush.msra.mxu0 %v4021
        %4290 = vmatpush.msra.mxu0 %v4020
        %4291 = vmatpush.msra.mxu0 %v4019
        %4292 = vmatpush.msra.mxu0 %v4018
        %4293 = vmatpush.msra.mxu0 %v4017
        %4294 = vmatpush.msra.mxu0 %v4016
        %4295 = vmatpush.msra.mxu0 %v4015
        %4296 = vmatpush.msra.mxu0 %v4014
        %4297 = vmatpush.msra.mxu0 %v4013
        %4298 = vmatmul.f32.gmra.mxu0 %v3952
        %v4299 = vpop.f32.mrf.mxu0
        %v4300 = vadd.f32 %v4280, %v4299
        %4301 = vdwg.mxu0
        %4302 = vmatpush.msra.mxu0 %v4044
        %4303 = vmatpush.msra.mxu0 %v4043
        %4304 = vmatpush.msra.mxu0 %v4042
        %4305 = vmatpush.msra.mxu0 %v4041
        %4306 = vmatpush.msra.mxu0 %v4040
        %4307 = vmatpush.msra.mxu0 %v4039
        %4308 = vmatpush.msra.mxu0 %v4038
        %4309 = vmatpush.msra.mxu0 %v4037
        %4310 = vmatpush.msra.mxu0 %v4036
        %4311 = vmatpush.msra.mxu0 %v4035
        %4312 = vmatpush.msra.mxu0 %v4034
        %4313 = vmatpush.msra.mxu0 %v4033
        %4314 = vmatpush.msra.mxu0 %v4032
        %4315 = vmatpush.msra.mxu0 %v4031
        %4316 = vmatpush.msra.mxu0 %v4030
        %4317 = vmatpush.msra.mxu0 %v4029
        %4318 = vmatmul.f32.gmra.mxu0 %v3953
        %v4319 = vpop.f32.mrf.mxu0
        %v4320 = vadd.f32 %v4300, %v4319
        %4321 = vdwg.mxu0
        %4322 = vmatpush.msra.mxu0 %v4060
        %4323 = vmatpush.msra.mxu0 %v4059
        %4324 = vmatpush.msra.mxu0 %v4058
        %4325 = vmatpush.msra.mxu0 %v4057
        %4326 = vmatpush.msra.mxu0 %v4056
        %4327 = vmatpush.msra.mxu0 %v4055
        %4328 = vmatpush.msra.mxu0 %v4054
        %4329 = vmatpush.msra.mxu0 %v4053
        %4330 = vmatpush.msra.mxu0 %v4052
        %4331 = vmatpush.msra.mxu0 %v4051
        %4332 = vmatpush.msra.mxu0 %v4050
        %4333 = vmatpush.msra.mxu0 %v4049
        %4334 = vmatpush.msra.mxu0 %v4048
        %4335 = vmatpush.msra.mxu0 %v4047
        %4336 = vmatpush.msra.mxu0 %v4046
        %4337 = vmatpush.msra.mxu0 %v4045
        %4338 = vmatmul.f32.gmra.mxu0 %v3954
        %v4339 = vpop.f32.mrf.mxu0
        %v4340 = vadd.f32 %v4320, %v4339
        %4341 = vdwg.mxu0
        %4342 = vmatpush.msra.mxu0 %v4076
        %4343 = vmatpush.msra.mxu0 %v4075
        %4344 = vmatpush.msra.mxu0 %v4074
        %4345 = vmatpush.msra.mxu0 %v4073
        %4346 = vmatpush.msra.mxu0 %v4072
        %4347 = vmatpush.msra.mxu0 %v4071
        %4348 = vmatpush.msra.mxu0 %v4070
        %4349 = vmatpush.msra.mxu0 %v4069
        %4350 = vmatpush.msra.mxu0 %v4068
        %4351 = vmatpush.msra.mxu0 %v4067
        %4352 = vmatpush.msra.mxu0 %v4066
        %4353 = vmatpush.msra.mxu0 %v4065
        %4354 = vmatpush.msra.mxu0 %v4064
        %4355 = vmatpush.msra.mxu0 %v4063
        %4356 = vmatpush.msra.mxu0 %v4062
        %4357 = vmatpush.msra.mxu0 %v4061
        %4358 = vmatmul.f32.gmra.mxu0 %v3955
        %v4359 = vpop.f32.mrf.mxu0
        %v4360 = vadd.f32 %v4340, %v4359
        %4361 = vdwg.mxu0
        %4362 = vmatpush.msra.mxu0 %v4092
        %4363 = vmatpush.msra.mxu0 %v4091
        %4364 = vmatpush.msra.mxu0 %v4090
        %4365 = vmatpush.msra.mxu0 %v4089
        %4366 = vmatpush.msra.mxu0 %v4088
        %4367 = vmatpush.msra.mxu0 %v4087
        %4368 = vmatpush.msra.mxu0 %v4086
        %4369 = vmatpush.msra.mxu0 %v4085
        %4370 = vmatpush.msra.mxu0 %v4084
        %4371 = vmatpush.msra.mxu0 %v4083
        %4372 = vmatpush.msra.mxu0 %v4082
        %4373 = vmatpush.msra.mxu0 %v4081
        %4374 = vmatpush.msra.mxu0 %v4080
        %4375 = vmatpush.msra.mxu0 %v4079
        %4376 = vmatpush.msra.mxu0 %v4078
        %4377 = vmatpush.msra.mxu0 %v4077
        %4378 = vmatmul.f32.gmra.mxu0 %v3956
        %v4379 = vpop.f32.mrf.mxu0
        %v4380 = vadd.f32 %v4360, %v4379
        %4381 = vdwg.mxu0
        %4382 = vmatpush.msra.mxu0 %v4108
        %4383 = vmatpush.msra.mxu0 %v4107
        %4384 = vmatpush.msra.mxu0 %v4106
        %4385 = vmatpush.msra.mxu0 %v4105
        %4386 = vmatpush.msra.mxu0 %v4104
        %4387 = vmatpush.msra.mxu0 %v4103
        %4388 = vmatpush.msra.mxu0 %v4102
        %4389 = vmatpush.msra.mxu0 %v4101
        %4390 = vmatpush.msra.mxu0 %v4100
        %4391 = vmatpush.msra.mxu0 %v4099
        %4392 = vmatpush.msra.mxu0 %v4098
        %4393 = vmatpush.msra.mxu0 %v4097
        %4394 = vmatpush.msra.mxu0 %v4096
        %4395 = vmatpush.msra.mxu0 %v4095
        %4396 = vmatpush.msra.mxu0 %v4094
        %4397 = vmatpush.msra.mxu0 %v4093
        %4398 = vmatmul.f32.gmra.mxu0 %v3957
        %v4399 = vpop.f32.mrf.mxu0
        %v4400 = vadd.f32 %v4380, %v4399
        %4401 = vdwg.mxu0
        %4402 = vmatpush.msra.mxu0 %v4124
        %4403 = vmatpush.msra.mxu0 %v4123
        %4404 = vmatpush.msra.mxu0 %v4122
        %4405 = vmatpush.msra.mxu0 %v4121
        %4406 = vmatpush.msra.mxu0 %v4120
        %4407 = vmatpush.msra.mxu0 %v4119
        %4408 = vmatpush.msra.mxu0 %v4118
        %4409 = vmatpush.msra.mxu0 %v4117
        %4410 = vmatpush.msra.mxu0 %v4116
        %4411 = vmatpush.msra.mxu0 %v4115
        %4412 = vmatpush.msra.mxu0 %v4114
        %4413 = vmatpush.msra.mxu0 %v4113
        %4414 = vmatpush.msra.mxu0 %v4112
        %4415 = vmatpush.msra.mxu0 %v4111
        %4416 = vmatpush.msra.mxu0 %v4110
        %4417 = vmatpush.msra.mxu0 %v4109
        %4418 = vmatmul.f32.gmra.mxu0 %v3958
        %v4419 = vpop.f32.mrf.mxu0
        %v4420 = vadd.f32 %v4400, %v4419
        %4421 = vdwg.mxu0
        %4422 = vmatpush.msra.mxu0 %v4140
        %4423 = vmatpush.msra.mxu0 %v4139
        %4424 = vmatpush.msra.mxu0 %v4138
        %4425 = vmatpush.msra.mxu0 %v4137
        %4426 = vmatpush.msra.mxu0 %v4136
        %4427 = vmatpush.msra.mxu0 %v4135
        %4428 = vmatpush.msra.mxu0 %v4134
        %4429 = vmatpush.msra.mxu0 %v4133
        %4430 = vmatpush.msra.mxu0 %v4132
        %4431 = vmatpush.msra.mxu0 %v4131
        %4432 = vmatpush.msra.mxu0 %v4130
        %4433 = vmatpush.msra.mxu0 %v4129
        %4434 = vmatpush.msra.mxu0 %v4128
        %4435 = vmatpush.msra.mxu0 %v4127
        %4436 = vmatpush.msra.mxu0 %v4126
        %4437 = vmatpush.msra.mxu0 %v4125
        %4438 = vmatmul.f32.gmra.mxu0 %v3959
        %v4439 = vpop.f32.mrf.mxu0
        %v4440 = vadd.f32 %v4420, %v4439
        %4441 = vdwg.mxu0
        %4442 = vmatpush.msra.mxu0 %v4156
        %4443 = vmatpush.msra.mxu0 %v4155
        %4444 = vmatpush.msra.mxu0 %v4154
        %4445 = vmatpush.msra.mxu0 %v4153
        %4446 = vmatpush.msra.mxu0 %v4152
        %4447 = vmatpush.msra.mxu0 %v4151
        %4448 = vmatpush.msra.mxu0 %v4150
        %4449 = vmatpush.msra.mxu0 %v4149
        %4450 = vmatpush.msra.mxu0 %v4148
        %4451 = vmatpush.msra.mxu0 %v4147
        %4452 = vmatpush.msra.mxu0 %v4146
        %4453 = vmatpush.msra.mxu0 %v4145
        %4454 = vmatpush.msra.mxu0 %v4144
        %4455 = vmatpush.msra.mxu0 %v4143
        %4456 = vmatpush.msra.mxu0 %v4142
        %4457 = vmatpush.msra.mxu0 %v4141
        %4458 = vmatmul.f32.gmra.mxu0 %v3960
        %v4459 = vpop.f32.mrf.mxu0
        %v4460 = vadd.f32 %v4440, %v4459
        %4461 = vdwg.mxu0
        %4462 = vmatpush.msra.mxu0 %v4172
        %4463 = vmatpush.msra.mxu0 %v4171
        %4464 = vmatpush.msra.mxu0 %v4170
        %4465 = vmatpush.msra.mxu0 %v4169
        %4466 = vmatpush.msra.mxu0 %v4168
        %4467 = vmatpush.msra.mxu0 %v4167
        %4468 = vmatpush.msra.mxu0 %v4166
        %4469 = vmatpush.msra.mxu0 %v4165
        %4470 = vmatpush.msra.mxu0 %v4164
        %4471 = vmatpush.msra.mxu0 %v4163
        %4472 = vmatpush.msra.mxu0 %v4162
        %4473 = vmatpush.msra.mxu0 %v4161
        %4474 = vmatpush.msra.mxu0 %v4160
        %4475 = vmatpush.msra.mxu0 %v4159
        %4476 = vmatpush.msra.mxu0 %v4158
        %4477 = vmatpush.msra.mxu0 %v4157
        %4478 = vmatmul.f32.gmra.mxu0 %v3961
        %v4479 = vpop.f32.mrf.mxu0
        %v4480 = vadd.f32 %v4460, %v4479
        %4481 = vdwg.mxu0
        %4482 = vmatpush.msra.mxu0 %v4188
        %4483 = vmatpush.msra.mxu0 %v4187
        %4484 = vmatpush.msra.mxu0 %v4186
        %4485 = vmatpush.msra.mxu0 %v4185
        %4486 = vmatpush.msra.mxu0 %v4184
        %4487 = vmatpush.msra.mxu0 %v4183
        %4488 = vmatpush.msra.mxu0 %v4182
        %4489 = vmatpush.msra.mxu0 %v4181
        %4490 = vmatpush.msra.mxu0 %v4180
        %4491 = vmatpush.msra.mxu0 %v4179
        %4492 = vmatpush.msra.mxu0 %v4178
        %4493 = vmatpush.msra.mxu0 %v4177
        %4494 = vmatpush.msra.mxu0 %v4176
        %4495 = vmatpush.msra.mxu0 %v4175
        %4496 = vmatpush.msra.mxu0 %v4174
        %4497 = vmatpush.msra.mxu0 %v4173
        %4498 = vmatmul.f32.gmra.mxu0 %v3962
        %v4499 = vpop.f32.mrf.mxu0
        %v4500 = vadd.f32 %v4480, %v4499
        %4501 = vdwg.mxu0
        %4502 = vmatpush.msra.mxu0 %v4204
        %4503 = vmatpush.msra.mxu0 %v4203
        %4504 = vmatpush.msra.mxu0 %v4202
        %4505 = vmatpush.msra.mxu0 %v4201
        %4506 = vmatpush.msra.mxu0 %v4200
        %4507 = vmatpush.msra.mxu0 %v4199
        %4508 = vmatpush.msra.mxu0 %v4198
        %4509 = vmatpush.msra.mxu0 %v4197
        %4510 = vmatpush.msra.mxu0 %v4196
        %4511 = vmatpush.msra.mxu0 %v4195
        %4512 = vmatpush.msra.mxu0 %v4194
        %4513 = vmatpush.msra.mxu0 %v4193
        %4514 = vmatpush.msra.mxu0 %v4192
        %4515 = vmatpush.msra.mxu0 %v4191
        %4516 = vmatpush.msra.mxu0 %v4190
        %4517 = vmatpush.msra.mxu0 %v4189
        %4518 = vmatmul.f32.gmra.mxu0 %v3963
        %v4519 = vpop.f32.mrf.mxu0
        %v4520 = vadd.f32 %v4500, %v4519
        %4521 = vdwg.mxu0
        %4522 = vmatpush.msra.mxu0 %v4220
        %4523 = vmatpush.msra.mxu0 %v4219
        %4524 = vmatpush.msra.mxu0 %v4218
        %4525 = vmatpush.msra.mxu0 %v4217
        %4526 = vmatpush.msra.mxu0 %v4216
        %4527 = vmatpush.msra.mxu0 %v4215
        %4528 = vmatpush.msra.mxu0 %v4214
        %4529 = vmatpush.msra.mxu0 %v4213
        %4530 = vmatpush.msra.mxu0 %v4212
        %4531 = vmatpush.msra.mxu0 %v4211
        %4532 = vmatpush.msra.mxu0 %v4210
        %4533 = vmatpush.msra.mxu0 %v4209
        %4534 = vmatpush.msra.mxu0 %v4208
        %4535 = vmatpush.msra.mxu0 %v4207
        %4536 = vmatpush.msra.mxu0 %v4206
        %4537 = vmatpush.msra.mxu0 %v4205
        %4538 = vmatmul.f32.gmra.mxu0 %v3964
        %v4539 = vpop.f32.mrf.mxu0
        %v4540 = vadd.f32 %v4520, %v4539
        %4541 = vdwg.mxu0
        %4542 = vst [vmem:[%s304] sm:$0x1] %v4540
        %s4543 = sand.u32 %s183, 1
        %s4544 = scalar_lea.sflag [#allocation4], %s4543
        %s4545 = sand.u32 %s183, 1
        %s4546 = scalar_lea.vmem [#allocation7], %s4545
        // Predicated region
        $region57: #{tpu_custom_call.1} parent=47 // pred_check
          %p4547 = pneg %p193
        $region58: #{tpu_custom_call.1} parent=47 // pred_check_branch
          %4549 = sbr.rel (%p4547) target = $region60
        $region59: #{tpu_custom_call.1} parent=47 // pred_region
          %4551 = vsyncadd %s4544, 0
          %s4552 = scalar_lea.hbm %s7, %s23
          %s4554 = sshll.u32 %s4546, 4
          %s4555 = int_to_ptr.vmem [resolvable:$true] %s4554
          %s4556 = sshll.u32 %s4552, 4
          %s4557 = int_to_ptr.hbm [resolvable:$true] %s4556
          %4559 = dma.vmem_to_hbm [thread:$0]  %s4555, 16, %s4557, %s4544
        $region60: #{tpu_custom_call.1} parent=47 // pred_fallthru
          _
      $region48: #{tpu_custom_call.1} parent=5 // pred_fallthru
        _
      %p4560 = scmp.le.s32.totalorder 2, %s18
      // Predicated region
      $region61: #{tpu_custom_call.1} parent=5 // pred_check
        %p4561 = pneg %p4560
      $region62: #{tpu_custom_call.1} parent=5 // pred_check_branch
        %4563 = sbr.rel (%p4561) target = $region64
      $region63: #{tpu_custom_call.1} parent=5 // pred_region
        %s4564 = ssub.s32 %s18, 2
        // Predicated region
        $region65: #{tpu_custom_call.1} parent=63 // pred_check
          %p4565 = pneg %p199
        $region66: #{tpu_custom_call.1} parent=63 // pred_check_branch
          %4567 = sbr.rel (%p4565) target = $region68
        $region67: #{tpu_custom_call.1} parent=63 // pred_region
          %s4568 = sand.u32 %s184, 1
          %s4569 = scalar_lea.sflag [#allocation4], %s4568
          %s4570 = sand.u32 %s184, 1
          %s4571 = scalar_lea.vmem [#allocation7], %s4570
          %4573 = dma.done %s4569, 16
        $region68: #{tpu_custom_call.1} parent=63 // pred_fallthru
          _
      $region64: #{tpu_custom_call.1} parent=5 // pred_fallthru
        _
    $region6: #{tpu_custom_call.1} parent=1 // loop_footer
      %s22 = sadd.s32 1, %s18
    $region7: #{tpu_custom_call.1} parent=1 // loop_footer_branch
      %17 = sbr.rel target = $region3
    $region8: #{tpu_custom_call.1} parent=1 // loop_exit
      _
    %4574 = vsyncpa [#allocation3], 1
    %s4575 = scalar_lea.sflag [#allocation3], 1
    %4576 = vsyncpa %s4575, 1
    %4577 = vsyncpa [#allocation6], 1
    %4578 = vsyncpa [#allocation4], 1
    %s4579 = scalar_lea.sflag [#allocation4], 1
    %4580 = vsyncpa %s4579, 1

</llo_original>
